<compile_context>
chip_gen: v7x
topology: tpu7x:2x2x1
jax: 0.10.0
libtpu: 0.0.40
codegen_flags: <defaults>
</compile_context>

<pallas_src>
import functools

import jax
import jax.numpy as jnp
from jax.experimental import pallas as pl
from jax.experimental.pallas import tpu as pltpu


def _lstm_kernel(num_layers, hidden_size, window_size, *refs):
    """Per-batch-block kernel: runs the whole LSTM stack + fused linear head.

    refs layout:
      x_ref  -- (T*bb, I) when pre-flattened, else (T, bb, I),
      [w_ih_l (in_dim, 4H), w_hh_l (H, 4H), b_l (1, 4H)] * num_layers,
      w_out_ref (T*H, I), b_out_ref (1, I),
      out_ref (bb, I),
      h_seq scratch (T*bb, H) f32   -- only present if num_layers > 1.
    Gate columns are pre-permuted to (i, f, o, g).
    """
    H = hidden_size
    T = window_size

    x_ref = refs[0]
    layer_refs = refs[1:1 + 3 * num_layers]
    w_out_ref, b_out_ref, out_ref = refs[1 + 3 * num_layers:4 + 3 * num_layers]
    h_seq = refs[4 + 3 * num_layers] if num_layers > 1 else None

    bb = out_ref.shape[0]
    out_dim = out_ref.shape[1]

    # Layer-0 input, time-major flattened (T*bb, in_dim).
    if x_ref.ndim == 3:
        # Batch-tiled path: bb % 8 == 0 is enforced by the wrapper, so this
        # reshape is layout-free (pure sublane-tile merge, no concat/XLU).
        layer_in = x_ref[...].reshape(T * bb, x_ref.shape[-1])
    else:
        layer_in = x_ref[...]

    # Fused head accumulator (replaces head_cols + lane concat + big matmul).
    out_acc = jnp.zeros((bb, out_dim), jnp.float32)

    for l in range(num_layers):
        w_ih = layer_refs[3 * l][...]       # (in_dim, 4H), gate order (i,f,o,g)
        w_hh = layer_refs[3 * l + 1][...]   # (H, 4H)
        b = layer_refs[3 * l + 2][...]      # (1, 4H) f32, b_ih + b_hh folded

        # Hoisted input projection for ALL timesteps + folded bias: one
        # (T*bb, in_dim) @ (in_dim, 4H) MXU matmul per layer, f32 accumulation.
        pre = jnp.dot(layer_in.astype(w_ih.dtype), w_ih,
                      preferred_element_type=jnp.float32) + b   # (T*bb, 4H)

        # h / c live in vregs across the (statically unrolled) recurrence.
        h = jnp.zeros((bb, H), jnp.float32)
        c = jnp.zeros((bb, H), jnp.float32)
        last = (l + 1 == num_layers)
        for t in range(T):
            gates = pre[t * bb:(t + 1) * bb, :] + jnp.dot(
                h.astype(w_hh.dtype), w_hh,
                preferred_element_type=jnp.float32)              # (bb, 4H)

            # Gate order (i, f, o, g): one sigmoid over 3H lanes, one tanh
            # over H lanes (half the EUP work of two full-width passes).
            sig = jax.nn.sigmoid(gates[:, :3 * H])
            g_g = jnp.tanh(gates[:, 3 * H:])
            i_g = sig[:, 0 * H:1 * H]
            f_g = sig[:, 1 * H:2 * H]
            o_g = sig[:, 2 * H:3 * H]

            c = f_g * c + i_g * g_g
            h = o_g * jnp.tanh(c)

            if last:
                # Fused head: tanh (module's head tanh) + Flatten + Linear as a
                # per-step accumulation against a static slice of w_out.
                out_acc = out_acc + jnp.dot(
                    jnp.tanh(h).astype(w_out_ref.dtype),
                    w_out_ref[t * H:(t + 1) * H, :],
                    preferred_element_type=jnp.float32)
            else:
                # Store off the h->h critical path; read back as next layer's
                # input (no live hs list, no sublane concat).
                h_seq[t * bb:(t + 1) * bb, :] = h

        if not last:
            layer_in = h_seq[...]                                # (T*bb, H)

    # Dropout: identity in eval mode.
    out_ref[...] = (out_acc + b_out_ref[...]).astype(out_ref.dtype)


def _to_ifog(a, H):
    """Permute PyTorch gate order (i, f, g, o) -> (i, f, o, g) along axis 0."""
    return jnp.concatenate([a[:2 * H], a[3 * H:4 * H], a[2 * H:3 * H]], axis=0)


def _vmem_estimate_bytes(bb, input_size, H, T, num_layers, compute_dtype):
    w_item = jnp.dtype(compute_dtype).itemsize
    est = 2 * T * bb * input_size * w_item                          # x block (x2 buffers)
    for l in range(num_layers):
        in_dim = input_size if l == 0 else H
        est += 2 * (in_dim * 4 * H + H * 4 * H) * w_item + 2 * 4 * H * 4
    est += 2 * (T * H * input_size * w_item + input_size * 4)       # head weights
    est += 2 * bb * input_size * 4                                  # output block
    if num_layers > 1:
        est += T * bb * H * 4                                       # hidden-seq scratch
    est += T * bb * 4 * H * 4 + T * bb * max(input_size, H) * 4     # pre + layer_in temps
    return est


def lstm_model_forward(x, params, *, hidden_size, window_size, num_layers,
                       compute_dtype=jnp.float32, batch_block=None):
    """x: (B, input_size, window_size) float32 -> (B, input_size).

    compute_dtype=jnp.bfloat16 feeds the MXU bf16 inputs (f32 accumulation) --
    recommended on v6e/v7x; expect ~1e-2 tolerance vs the f32 reference.
    batch_block < B (must be a multiple of 8) tiles the batch over a parallel
    grid axis (engages both v7x TensorCores and bounds VMEM for large B);
    on v5e/v6e keep the default batch_block = B (grid=(1,)).
    """
    B, input_size, T = x.shape
    assert T == window_size
    H = hidden_size
    if batch_block is None:
        batch_block = B
    assert B % batch_block == 0
    if batch_block != B:
        # (8,128) tiling rule for the (bb, I) output block and layout-free
        # in-kernel reshape of the (T, bb, I) input block.
        assert batch_block % 8 == 0, "batch_block < B must be a multiple of 8"

    # Time-major input: per-timestep rows are contiguous.
    x_tbi = jnp.transpose(x, (2, 0, 1)).astype(compute_dtype)       # (T, B, I)
    if batch_block == B:
        # Pre-flatten outside the kernel: no in-kernel reshape/concat at all.
        x_arg = x_tbi.reshape(T * B, input_size)
        x_spec = pl.BlockSpec((T * B, input_size), lambda j: (0, 0))
    else:
        x_arg = x_tbi
        x_spec = pl.BlockSpec((T, batch_block, input_size), lambda j: (0, j, 0))

    args = [x_arg]
    in_specs = [x_spec]
    for l in range(num_layers):
        w_ih, w_hh, b_ih, b_hh = params["layers"][l]
        in_dim = input_size if l == 0 else H
        # Permute gates to (i, f, o, g), pre-transpose so the kernel does
        # (rows, in) @ (in, 4H) with no in-kernel transpose, fold both biases.
        args += [_to_ifog(w_ih, H).T.astype(compute_dtype),
                 _to_ifog(w_hh, H).T.astype(compute_dtype),
                 _to_ifog(b_ih + b_hh, H)[None, :].astype(jnp.float32)]
        in_specs += [
            pl.BlockSpec((in_dim, 4 * H), lambda j: (0, 0)),
            pl.BlockSpec((H, 4 * H), lambda j: (0, 0)),
            pl.BlockSpec((1, 4 * H), lambda j: (0, 0)),
        ]
    w_out, b_out = params["out"]            # (I, T*H), (I,)
    args += [w_out.T.astype(compute_dtype), b_out[None, :].astype(jnp.float32)]
    in_specs += [
        pl.BlockSpec((T * H, input_size), lambda j: (0, 0)),
        pl.BlockSpec((1, input_size), lambda j: (0, 0)),
    ]

    scratch_shapes = []
    if num_layers > 1:
        scratch_shapes.append(pltpu.VMEM((T * batch_block, H), jnp.float32))

    est = _vmem_estimate_bytes(batch_block, input_size, H, T, num_layers,
                               compute_dtype)
    vmem_limit = int(min(max(2 * est, 32 * 1024 * 1024), 100 * 1024 * 1024))

    kernel = functools.partial(_lstm_kernel, num_layers, H, T)

    out = pl.pallas_call(
        kernel,
        out_shape=jax.ShapeDtypeStruct((B, input_size), jnp.float32),
        grid=(B // batch_block,),
        in_specs=in_specs,
        out_specs=pl.BlockSpec((batch_block, input_size), lambda j: (j, 0)),
        scratch_shapes=scratch_shapes,
        compiler_params=pltpu.CompilerParams(
            dimension_semantics=("parallel",),
            vmem_limit_bytes=vmem_limit),
    )(*args)
    return out


def init_params(key, input_size, hidden_size, window_size, num_layers):
    """Deterministic PyTorch-style uniform init (PyTorch gate order i,f,g,o)."""
    ks = jax.random.split(key, num_layers * 4 + 2)
    k_lstm = 1.0 / jnp.sqrt(hidden_size)
    layers = []
    idx = 0
    for l in range(num_layers):
        in_dim = input_size if l == 0 else hidden_size
        w_ih = jax.random.uniform(ks[idx], (4 * hidden_size, in_dim),
                                  minval=-k_lstm, maxval=k_lstm); idx += 1
        w_hh = jax.random.uniform(ks[idx], (4 * hidden_size, hidden_size),
                                  minval=-k_lstm, maxval=k_lstm); idx += 1
        b_ih = jax.random.uniform(ks[idx], (4 * hidden_size,),
                                  minval=-k_lstm, maxval=k_lstm); idx += 1
        b_hh = jax.random.uniform(ks[idx], (4 * hidden_size,),
                                  minval=-k_lstm, maxval=k_lstm); idx += 1
        layers.append((w_ih, w_hh, b_ih, b_hh))
    k_out = 1.0 / jnp.sqrt(hidden_size * window_size)
    w_out = jax.random.uniform(ks[idx], (input_size, hidden_size * window_size),
                               minval=-k_out, maxval=k_out); idx += 1
    b_out = jax.random.uniform(ks[idx], (input_size,),
                               minval=-k_out, maxval=k_out)
    return {"layers": layers, "out": (w_out, b_out)}


def reference_forward(x, params, *, hidden_size, window_size, num_layers):
    """Pure-JAX reference mirroring the PyTorch forward (eval mode)."""
    B, input_size, T = x.shape
    H = hidden_size
    inp = jnp.transpose(x, (0, 2, 1)).astype(jnp.float32)     # (B, T, I)
    for l in range(num_layers):
        w_ih, w_hh, b_ih, b_hh = params["layers"][l]
        h = jnp.zeros((B, H), jnp.float32)
        c = jnp.zeros((B, H), jnp.float32)
        outs = []
        for t in range(T):
            g = inp[:, t, :] @ w_ih.T + b_ih + h @ w_hh.T + b_hh
            i_g = jax.nn.sigmoid(g[:, 0 * H:1 * H])
            f_g = jax.nn.sigmoid(g[:, 1 * H:2 * H])
            g_g = jnp.tanh(g[:, 2 * H:3 * H])
            o_g = jax.nn.sigmoid(g[:, 3 * H:4 * H])
            c = f_g * c + i_g * g_g
            h = o_g * jnp.tanh(c)
            outs.append(h)
        inp = jnp.stack(outs, axis=1)                         # (B, T, H)
    w_out, b_out = params["out"]
    flat = jnp.tanh(inp).reshape(B, T * H)
    return flat @ w_out.T + b_out


if __name__ == "__main__":
    # Small, forward-consistent shapes.
    batch = 2
    input_size = 4
    hidden_size = 32
    window_size = 8
    num_layers = 2

    key = jax.random.PRNGKey(0)
    k_param, k_x = jax.random.split(key)

    params = init_params(k_param, input_size, hidden_size, window_size, num_layers)
    x = jax.random.normal(k_x, (batch, input_size, window_size), dtype=jnp.float32)

    out = lstm_model_forward(x, params,
                             hidden_size=hidden_size,
                             window_size=window_size,
                             num_layers=num_layers)
    out = jax.block_until_ready(out)

    ref = reference_forward(x, params,
                            hidden_size=hidden_size,
                            window_size=window_size,
                            num_layers=num_layers)
    assert out.shape == (batch, input_size)
    assert jnp.allclose(out, ref, atol=1e-4, rtol=1e-4)

    print("KERNEL_OK")
</pallas_src>

<mosaic_0001>
module attributes {stable_mosaic.version = 11 : i64} {
  func.func @_lstm_kernel(%arg0: i32, %arg1: memref<16x4xf32, #tpu.memory_space<vmem>>, %arg2: memref<4x128xf32, #tpu.memory_space<vmem>>, %arg3: memref<32x128xf32, #tpu.memory_space<vmem>>, %arg4: memref<1x128xf32, #tpu.memory_space<vmem>>, %arg5: memref<32x128xf32, #tpu.memory_space<vmem>>, %arg6: memref<32x128xf32, #tpu.memory_space<vmem>>, %arg7: memref<1x128xf32, #tpu.memory_space<vmem>>, %arg8: memref<256x4xf32, #tpu.memory_space<vmem>>, %arg9: memref<1x4xf32, #tpu.memory_space<vmem>>, %arg10: memref<2x4xf32, #tpu.memory_space<vmem>>, %arg11: memref<16x32xf32, #tpu.memory_space<vmem>>) attributes {dimension_semantics = [#tpu.dimension_semantics<parallel>], iteration_bounds = array<i64: 1>, scalar_prefetch = 0 : i64, scratch_operands = 1 : i64, tpu.core_type = #tpu.core_type<tc>, window_params = [{pipeline_mode = #tpu.pipeline_mode<synchronous>, transform_indices = @transform_0, window_bounds = array<i64: 16, 4>}, {pipeline_mode = #tpu.pipeline_mode<synchronous>, transform_indices = @transform_1, window_bounds = array<i64: 4, 128>}, {pipeline_mode = #tpu.pipeline_mode<synchronous>, transform_indices = @transform_2, window_bounds = array<i64: 32, 128>}, {pipeline_mode = #tpu.pipeline_mode<synchronous>, transform_indices = @transform_3, window_bounds = array<i64: 1, 128>}, {pipeline_mode = #tpu.pipeline_mode<synchronous>, transform_indices = @transform_4, window_bounds = array<i64: 32, 128>}, {pipeline_mode = #tpu.pipeline_mode<synchronous>, transform_indices = @transform_5, window_bounds = array<i64: 32, 128>}, {pipeline_mode = #tpu.pipeline_mode<synchronous>, transform_indices = @transform_6, window_bounds = array<i64: 1, 128>}, {pipeline_mode = #tpu.pipeline_mode<synchronous>, transform_indices = @transform_7, window_bounds = array<i64: 256, 4>}, {pipeline_mode = #tpu.pipeline_mode<synchronous>, transform_indices = @transform_8, window_bounds = array<i64: 1, 4>}, {transform_indices = @transform_9, window_bounds = array<i64: 2, 4>}]} {
    %c0 = arith.constant 0 : index
    %c0_0 = arith.constant 0 : index
    %0 = vector.load %arg1[%c0, %c0_0] : memref<16x4xf32, #tpu.memory_space<vmem>>, vector<16x4xf32>
    %cst = arith.constant 0.000000e+00 : f32
    %1 = vector.broadcast %cst : f32 to vector<2x4xf32>
    %c0_1 = arith.constant 0 : index
    %c0_2 = arith.constant 0 : index
    %2 = vector.load %arg2[%c0_1, %c0_2] : memref<4x128xf32, #tpu.memory_space<vmem>>, vector<4x128xf32>
    %c0_3 = arith.constant 0 : index
    %c0_4 = arith.constant 0 : index
    %3 = vector.load %arg3[%c0_3, %c0_4] : memref<32x128xf32, #tpu.memory_space<vmem>>, vector<32x128xf32>
    %c0_5 = arith.constant 0 : index
    %c0_6 = arith.constant 0 : index
    %4 = vector.load %arg4[%c0_5, %c0_6] : memref<1x128xf32, #tpu.memory_space<vmem>>, vector<1x128xf32>
    %cst_7 = arith.constant dense<0.000000e+00> : vector<16x128xf32>
    %5 = tpu.matmul %0, %2, %cst_7 {dimension_numbers = #tpu.dot_dimension_numbers<[1], [0], [0], [1], [0, 0, 1, 1], [], []>} : vector<16x4xf32>, vector<4x128xf32>, vector<16x128xf32> -> vector<16x128xf32>
    %6 = vector.broadcast %4 : vector<1x128xf32> to vector<16x128xf32>
    %7 = arith.addf %5, %6 : vector<16x128xf32>
    %cst_8 = arith.constant 0.000000e+00 : f32
    %8 = vector.broadcast %cst_8 : f32 to vector<2x32xf32>
    %cst_9 = arith.constant 0.000000e+00 : f32
    %9 = vector.broadcast %cst_9 : f32 to vector<2x32xf32>
    %10 = vector.extract_strided_slice %7 {offsets = [0, 0], sizes = [2, 128], strides = [1, 1]} : vector<16x128xf32> to vector<2x128xf32>
    %cst_10 = arith.constant dense<0.000000e+00> : vector<2x128xf32>
    %11 = tpu.matmul %8, %3, %cst_10 {dimension_numbers = #tpu.dot_dimension_numbers<[1], [0], [0], [1], [0, 0, 1, 1], [], []>} : vector<2x32xf32>, vector<32x128xf32>, vector<2x128xf32> -> vector<2x128xf32>
    %12 = arith.addf %10, %11 : vector<2x128xf32>
    %13 = vector.extract_strided_slice %12 {offsets = [0, 0], sizes = [2, 96], strides = [1, 1]} : vector<2x128xf32> to vector<2x96xf32>
    %14 = arith.negf %13 : vector<2x96xf32>
    %15 = math.exp %14 : vector<2x96xf32>
    %cst_11 = arith.constant 1.000000e+00 : f32
    %16 = vector.broadcast %cst_11 : f32 to vector<2x96xf32>
    %17 = arith.addf %16, %15 : vector<2x96xf32>
    %18 = arith.divf %16, %17 : vector<2x96xf32>
    %19 = vector.extract_strided_slice %12 {offsets = [0, 96], sizes = [2, 32], strides = [1, 1]} : vector<2x128xf32> to vector<2x32xf32>
    %20 = math.tanh %19 : vector<2x32xf32>
    %21 = vector.extract_strided_slice %18 {offsets = [0, 0], sizes = [2, 32], strides = [1, 1]} : vector<2x96xf32> to vector<2x32xf32>
    %22 = vector.extract_strided_slice %18 {offsets = [0, 32], sizes = [2, 32], strides = [1, 1]} : vector<2x96xf32> to vector<2x32xf32>
    %23 = vector.extract_strided_slice %18 {offsets = [0, 64], sizes = [2, 32], strides = [1, 1]} : vector<2x96xf32> to vector<2x32xf32>
    %24 = arith.mulf %22, %9 : vector<2x32xf32>
    %25 = arith.mulf %21, %20 : vector<2x32xf32>
    %26 = arith.addf %24, %25 : vector<2x32xf32>
    %27 = math.tanh %26 : vector<2x32xf32>
    %28 = arith.mulf %23, %27 : vector<2x32xf32>
    %c0_12 = arith.constant 0 : index
    %c0_13 = arith.constant 0 : index
    %29 = vector.load %arg11[%c0_12, %c0_13] : memref<16x32xf32, #tpu.memory_space<vmem>>, vector<2x32xf32>
    tpu.vector_store %arg11[%c0_12, %c0_13], %28 {strides = array<i32>} : memref<16x32xf32, #tpu.memory_space<vmem>>, vector<2x32xf32>,
    %30 = vector.extract_strided_slice %7 {offsets = [2, 0], sizes = [2, 128], strides = [1, 1]} : vector<16x128xf32> to vector<2x128xf32>
    %cst_14 = arith.constant dense<0.000000e+00> : vector<2x128xf32>
    %31 = tpu.matmul %28, %3, %cst_14 {dimension_numbers = #tpu.dot_dimension_numbers<[1], [0], [0], [1], [0, 0, 1, 1], [], []>} : vector<2x32xf32>, vector<32x128xf32>, vector<2x128xf32> -> vector<2x128xf32>
    %32 = arith.addf %30, %31 : vector<2x128xf32>
    %33 = vector.extract_strided_slice %32 {offsets = [0, 0], sizes = [2, 96], strides = [1, 1]} : vector<2x128xf32> to vector<2x96xf32>
    %34 = arith.negf %33 : vector<2x96xf32>
    %35 = math.exp %34 : vector<2x96xf32>
    %cst_15 = arith.constant 1.000000e+00 : f32
    %36 = vector.broadcast %cst_15 : f32 to vector<2x96xf32>
    %37 = arith.addf %36, %35 : vector<2x96xf32>
    %38 = arith.divf %36, %37 : vector<2x96xf32>
    %39 = vector.extract_strided_slice %32 {offsets = [0, 96], sizes = [2, 32], strides = [1, 1]} : vector<2x128xf32> to vector<2x32xf32>
    %40 = math.tanh %39 : vector<2x32xf32>
    %41 = vector.extract_strided_slice %38 {offsets = [0, 0], sizes = [2, 32], strides = [1, 1]} : vector<2x96xf32> to vector<2x32xf32>
    %42 = vector.extract_strided_slice %38 {offsets = [0, 32], sizes = [2, 32], strides = [1, 1]} : vector<2x96xf32> to vector<2x32xf32>
    %43 = vector.extract_strided_slice %38 {offsets = [0, 64], sizes = [2, 32], strides = [1, 1]} : vector<2x96xf32> to vector<2x32xf32>
    %44 = arith.mulf %42, %26 : vector<2x32xf32>
    %45 = arith.mulf %41, %40 : vector<2x32xf32>
    %46 = arith.addf %44, %45 : vector<2x32xf32>
    %47 = math.tanh %46 : vector<2x32xf32>
    %48 = arith.mulf %43, %47 : vector<2x32xf32>
    %c2 = arith.constant 2 : index
    %c0_16 = arith.constant 0 : index
    %49 = vector.load %arg11[%c2, %c0_16] : memref<16x32xf32, #tpu.memory_space<vmem>>, vector<2x32xf32>
    tpu.vector_store %arg11[%c2, %c0_16], %48 {strides = array<i32>} : memref<16x32xf32, #tpu.memory_space<vmem>>, vector<2x32xf32>,
    %50 = vector.extract_strided_slice %7 {offsets = [4, 0], sizes = [2, 128], strides = [1, 1]} : vector<16x128xf32> to vector<2x128xf32>
    %cst_17 = arith.constant dense<0.000000e+00> : vector<2x128xf32>
    %51 = tpu.matmul %48, %3, %cst_17 {dimension_numbers = #tpu.dot_dimension_numbers<[1], [0], [0], [1], [0, 0, 1, 1], [], []>} : vector<2x32xf32>, vector<32x128xf32>, vector<2x128xf32> -> vector<2x128xf32>
    %52 = arith.addf %50, %51 : vector<2x128xf32>
    %53 = vector.extract_strided_slice %52 {offsets = [0, 0], sizes = [2, 96], strides = [1, 1]} : vector<2x128xf32> to vector<2x96xf32>
    %54 = arith.negf %53 : vector<2x96xf32>
    %55 = math.exp %54 : vector<2x96xf32>
    %cst_18 = arith.constant 1.000000e+00 : f32
    %56 = vector.broadcast %cst_18 : f32 to vector<2x96xf32>
    %57 = arith.addf %56, %55 : vector<2x96xf32>
    %58 = arith.divf %56, %57 : vector<2x96xf32>
    %59 = vector.extract_strided_slice %52 {offsets = [0, 96], sizes = [2, 32], strides = [1, 1]} : vector<2x128xf32> to vector<2x32xf32>
    %60 = math.tanh %59 : vector<2x32xf32>
    %61 = vector.extract_strided_slice %58 {offsets = [0, 0], sizes = [2, 32], strides = [1, 1]} : vector<2x96xf32> to vector<2x32xf32>
    %62 = vector.extract_strided_slice %58 {offsets = [0, 32], sizes = [2, 32], strides = [1, 1]} : vector<2x96xf32> to vector<2x32xf32>
    %63 = vector.extract_strided_slice %58 {offsets = [0, 64], sizes = [2, 32], strides = [1, 1]} : vector<2x96xf32> to vector<2x32xf32>
    %64 = arith.mulf %62, %46 : vector<2x32xf32>
    %65 = arith.mulf %61, %60 : vector<2x32xf32>
    %66 = arith.addf %64, %65 : vector<2x32xf32>
    %67 = math.tanh %66 : vector<2x32xf32>
    %68 = arith.mulf %63, %67 : vector<2x32xf32>
    %c4 = arith.constant 4 : index
    %c0_19 = arith.constant 0 : index
    %69 = vector.load %arg11[%c4, %c0_19] : memref<16x32xf32, #tpu.memory_space<vmem>>, vector<2x32xf32>
    tpu.vector_store %arg11[%c4, %c0_19], %68 {strides = array<i32>} : memref<16x32xf32, #tpu.memory_space<vmem>>, vector<2x32xf32>,
    %70 = vector.extract_strided_slice %7 {offsets = [6, 0], sizes = [2, 128], strides = [1, 1]} : vector<16x128xf32> to vector<2x128xf32>
    %cst_20 = arith.constant dense<0.000000e+00> : vector<2x128xf32>
    %71 = tpu.matmul %68, %3, %cst_20 {dimension_numbers = #tpu.dot_dimension_numbers<[1], [0], [0], [1], [0, 0, 1, 1], [], []>} : vector<2x32xf32>, vector<32x128xf32>, vector<2x128xf32> -> vector<2x128xf32>
    %72 = arith.addf %70, %71 : vector<2x128xf32>
    %73 = vector.extract_strided_slice %72 {offsets = [0, 0], sizes = [2, 96], strides = [1, 1]} : vector<2x128xf32> to vector<2x96xf32>
    %74 = arith.negf %73 : vector<2x96xf32>
    %75 = math.exp %74 : vector<2x96xf32>
    %cst_21 = arith.constant 1.000000e+00 : f32
    %76 = vector.broadcast %cst_21 : f32 to vector<2x96xf32>
    %77 = arith.addf %76, %75 : vector<2x96xf32>
    %78 = arith.divf %76, %77 : vector<2x96xf32>
    %79 = vector.extract_strided_slice %72 {offsets = [0, 96], sizes = [2, 32], strides = [1, 1]} : vector<2x128xf32> to vector<2x32xf32>
    %80 = math.tanh %79 : vector<2x32xf32>
    %81 = vector.extract_strided_slice %78 {offsets = [0, 0], sizes = [2, 32], strides = [1, 1]} : vector<2x96xf32> to vector<2x32xf32>
    %82 = vector.extract_strided_slice %78 {offsets = [0, 32], sizes = [2, 32], strides = [1, 1]} : vector<2x96xf32> to vector<2x32xf32>
    %83 = vector.extract_strided_slice %78 {offsets = [0, 64], sizes = [2, 32], strides = [1, 1]} : vector<2x96xf32> to vector<2x32xf32>
    %84 = arith.mulf %82, %66 : vector<2x32xf32>
    %85 = arith.mulf %81, %80 : vector<2x32xf32>
    %86 = arith.addf %84, %85 : vector<2x32xf32>
    %87 = math.tanh %86 : vector<2x32xf32>
    %88 = arith.mulf %83, %87 : vector<2x32xf32>
    %c6 = arith.constant 6 : index
    %c0_22 = arith.constant 0 : index
    %89 = vector.load %arg11[%c6, %c0_22] : memref<16x32xf32, #tpu.memory_space<vmem>>, vector<2x32xf32>
    tpu.vector_store %arg11[%c6, %c0_22], %88 {strides = array<i32>} : memref<16x32xf32, #tpu.memory_space<vmem>>, vector<2x32xf32>,
    %90 = vector.extract_strided_slice %7 {offsets = [8, 0], sizes = [2, 128], strides = [1, 1]} : vector<16x128xf32> to vector<2x128xf32>
    %cst_23 = arith.constant dense<0.000000e+00> : vector<2x128xf32>
    %91 = tpu.matmul %88, %3, %cst_23 {dimension_numbers = #tpu.dot_dimension_numbers<[1], [0], [0], [1], [0, 0, 1, 1], [], []>} : vector<2x32xf32>, vector<32x128xf32>, vector<2x128xf32> -> vector<2x128xf32>
    %92 = arith.addf %90, %91 : vector<2x128xf32>
    %93 = vector.extract_strided_slice %92 {offsets = [0, 0], sizes = [2, 96], strides = [1, 1]} : vector<2x128xf32> to vector<2x96xf32>
    %94 = arith.negf %93 : vector<2x96xf32>
    %95 = math.exp %94 : vector<2x96xf32>
    %cst_24 = arith.constant 1.000000e+00 : f32
    %96 = vector.broadcast %cst_24 : f32 to vector<2x96xf32>
    %97 = arith.addf %96, %95 : vector<2x96xf32>
    %98 = arith.divf %96, %97 : vector<2x96xf32>
    %99 = vector.extract_strided_slice %92 {offsets = [0, 96], sizes = [2, 32], strides = [1, 1]} : vector<2x128xf32> to vector<2x32xf32>
    %100 = math.tanh %99 : vector<2x32xf32>
    %101 = vector.extract_strided_slice %98 {offsets = [0, 0], sizes = [2, 32], strides = [1, 1]} : vector<2x96xf32> to vector<2x32xf32>
    %102 = vector.extract_strided_slice %98 {offsets = [0, 32], sizes = [2, 32], strides = [1, 1]} : vector<2x96xf32> to vector<2x32xf32>
    %103 = vector.extract_strided_slice %98 {offsets = [0, 64], sizes = [2, 32], strides = [1, 1]} : vector<2x96xf32> to vector<2x32xf32>
    %104 = arith.mulf %102, %86 : vector<2x32xf32>
    %105 = arith.mulf %101, %100 : vector<2x32xf32>
    %106 = arith.addf %104, %105 : vector<2x32xf32>
    %107 = math.tanh %106 : vector<2x32xf32>
    %108 = arith.mulf %103, %107 : vector<2x32xf32>
    %c8 = arith.constant 8 : index
    %c0_25 = arith.constant 0 : index
    %109 = vector.load %arg11[%c8, %c0_25] : memref<16x32xf32, #tpu.memory_space<vmem>>, vector<2x32xf32>
    tpu.vector_store %arg11[%c8, %c0_25], %108 {strides = array<i32>} : memref<16x32xf32, #tpu.memory_space<vmem>>, vector<2x32xf32>,
    %110 = vector.extract_strided_slice %7 {offsets = [10, 0], sizes = [2, 128], strides = [1, 1]} : vector<16x128xf32> to vector<2x128xf32>
    %cst_26 = arith.constant dense<0.000000e+00> : vector<2x128xf32>
    %111 = tpu.matmul %108, %3, %cst_26 {dimension_numbers = #tpu.dot_dimension_numbers<[1], [0], [0], [1], [0, 0, 1, 1], [], []>} : vector<2x32xf32>, vector<32x128xf32>, vector<2x128xf32> -> vector<2x128xf32>
    %112 = arith.addf %110, %111 : vector<2x128xf32>
    %113 = vector.extract_strided_slice %112 {offsets = [0, 0], sizes = [2, 96], strides = [1, 1]} : vector<2x128xf32> to vector<2x96xf32>
    %114 = arith.negf %113 : vector<2x96xf32>
    %115 = math.exp %114 : vector<2x96xf32>
    %cst_27 = arith.constant 1.000000e+00 : f32
    %116 = vector.broadcast %cst_27 : f32 to vector<2x96xf32>
    %117 = arith.addf %116, %115 : vector<2x96xf32>
    %118 = arith.divf %116, %117 : vector<2x96xf32>
    %119 = vector.extract_strided_slice %112 {offsets = [0, 96], sizes = [2, 32], strides = [1, 1]} : vector<2x128xf32> to vector<2x32xf32>
    %120 = math.tanh %119 : vector<2x32xf32>
    %121 = vector.extract_strided_slice %118 {offsets = [0, 0], sizes = [2, 32], strides = [1, 1]} : vector<2x96xf32> to vector<2x32xf32>
    %122 = vector.extract_strided_slice %118 {offsets = [0, 32], sizes = [2, 32], strides = [1, 1]} : vector<2x96xf32> to vector<2x32xf32>
    %123 = vector.extract_strided_slice %118 {offsets = [0, 64], sizes = [2, 32], strides = [1, 1]} : vector<2x96xf32> to vector<2x32xf32>
    %124 = arith.mulf %122, %106 : vector<2x32xf32>
    %125 = arith.mulf %121, %120 : vector<2x32xf32>
    %126 = arith.addf %124, %125 : vector<2x32xf32>
    %127 = math.tanh %126 : vector<2x32xf32>
    %128 = arith.mulf %123, %127 : vector<2x32xf32>
    %c10 = arith.constant 10 : index
    %c0_28 = arith.constant 0 : index
    %129 = vector.load %arg11[%c10, %c0_28] : memref<16x32xf32, #tpu.memory_space<vmem>>, vector<2x32xf32>
    tpu.vector_store %arg11[%c10, %c0_28], %128 {strides = array<i32>} : memref<16x32xf32, #tpu.memory_space<vmem>>, vector<2x32xf32>,
    %130 = vector.extract_strided_slice %7 {offsets = [12, 0], sizes = [2, 128], strides = [1, 1]} : vector<16x128xf32> to vector<2x128xf32>
    %cst_29 = arith.constant dense<0.000000e+00> : vector<2x128xf32>
    %131 = tpu.matmul %128, %3, %cst_29 {dimension_numbers = #tpu.dot_dimension_numbers<[1], [0], [0], [1], [0, 0, 1, 1], [], []>} : vector<2x32xf32>, vector<32x128xf32>, vector<2x128xf32> -> vector<2x128xf32>
    %132 = arith.addf %130, %131 : vector<2x128xf32>
    %133 = vector.extract_strided_slice %132 {offsets = [0, 0], sizes = [2, 96], strides = [1, 1]} : vector<2x128xf32> to vector<2x96xf32>
    %134 = arith.negf %133 : vector<2x96xf32>
    %135 = math.exp %134 : vector<2x96xf32>
    %cst_30 = arith.constant 1.000000e+00 : f32
    %136 = vector.broadcast %cst_30 : f32 to vector<2x96xf32>
    %137 = arith.addf %136, %135 : vector<2x96xf32>
    %138 = arith.divf %136, %137 : vector<2x96xf32>
    %139 = vector.extract_strided_slice %132 {offsets = [0, 96], sizes = [2, 32], strides = [1, 1]} : vector<2x128xf32> to vector<2x32xf32>
    %140 = math.tanh %139 : vector<2x32xf32>
    %141 = vector.extract_strided_slice %138 {offsets = [0, 0], sizes = [2, 32], strides = [1, 1]} : vector<2x96xf32> to vector<2x32xf32>
    %142 = vector.extract_strided_slice %138 {offsets = [0, 32], sizes = [2, 32], strides = [1, 1]} : vector<2x96xf32> to vector<2x32xf32>
    %143 = vector.extract_strided_slice %138 {offsets = [0, 64], sizes = [2, 32], strides = [1, 1]} : vector<2x96xf32> to vector<2x32xf32>
    %144 = arith.mulf %142, %126 : vector<2x32xf32>
    %145 = arith.mulf %141, %140 : vector<2x32xf32>
    %146 = arith.addf %144, %145 : vector<2x32xf32>
    %147 = math.tanh %146 : vector<2x32xf32>
    %148 = arith.mulf %143, %147 : vector<2x32xf32>
    %c12 = arith.constant 12 : index
    %c0_31 = arith.constant 0 : index
    %149 = vector.load %arg11[%c12, %c0_31] : memref<16x32xf32, #tpu.memory_space<vmem>>, vector<2x32xf32>
    tpu.vector_store %arg11[%c12, %c0_31], %148 {strides = array<i32>} : memref<16x32xf32, #tpu.memory_space<vmem>>, vector<2x32xf32>,
    %150 = vector.extract_strided_slice %7 {offsets = [14, 0], sizes = [2, 128], strides = [1, 1]} : vector<16x128xf32> to vector<2x128xf32>
    %cst_32 = arith.constant dense<0.000000e+00> : vector<2x128xf32>
    %151 = tpu.matmul %148, %3, %cst_32 {dimension_numbers = #tpu.dot_dimension_numbers<[1], [0], [0], [1], [0, 0, 1, 1], [], []>} : vector<2x32xf32>, vector<32x128xf32>, vector<2x128xf32> -> vector<2x128xf32>
    %152 = arith.addf %150, %151 : vector<2x128xf32>
    %153 = vector.extract_strided_slice %152 {offsets = [0, 0], sizes = [2, 96], strides = [1, 1]} : vector<2x128xf32> to vector<2x96xf32>
    %154 = arith.negf %153 : vector<2x96xf32>
    %155 = math.exp %154 : vector<2x96xf32>
    %cst_33 = arith.constant 1.000000e+00 : f32
    %156 = vector.broadcast %cst_33 : f32 to vector<2x96xf32>
    %157 = arith.addf %156, %155 : vector<2x96xf32>
    %158 = arith.divf %156, %157 : vector<2x96xf32>
    %159 = vector.extract_strided_slice %152 {offsets = [0, 96], sizes = [2, 32], strides = [1, 1]} : vector<2x128xf32> to vector<2x32xf32>
    %160 = math.tanh %159 : vector<2x32xf32>
    %161 = vector.extract_strided_slice %158 {offsets = [0, 0], sizes = [2, 32], strides = [1, 1]} : vector<2x96xf32> to vector<2x32xf32>
    %162 = vector.extract_strided_slice %158 {offsets = [0, 32], sizes = [2, 32], strides = [1, 1]} : vector<2x96xf32> to vector<2x32xf32>
    %163 = vector.extract_strided_slice %158 {offsets = [0, 64], sizes = [2, 32], strides = [1, 1]} : vector<2x96xf32> to vector<2x32xf32>
    %164 = arith.mulf %162, %146 : vector<2x32xf32>
    %165 = arith.mulf %161, %160 : vector<2x32xf32>
    %166 = arith.addf %164, %165 : vector<2x32xf32>
    %167 = math.tanh %166 : vector<2x32xf32>
    %168 = arith.mulf %163, %167 : vector<2x32xf32>
    %c14 = arith.constant 14 : index
    %c0_34 = arith.constant 0 : index
    %169 = vector.load %arg11[%c14, %c0_34] : memref<16x32xf32, #tpu.memory_space<vmem>>, vector<2x32xf32>
    tpu.vector_store %arg11[%c14, %c0_34], %168 {strides = array<i32>} : memref<16x32xf32, #tpu.memory_space<vmem>>, vector<2x32xf32>,
    %c0_35 = arith.constant 0 : index
    %c0_36 = arith.constant 0 : index
    %170 = vector.load %arg11[%c0_35, %c0_36] : memref<16x32xf32, #tpu.memory_space<vmem>>, vector<16x32xf32>
    %c0_37 = arith.constant 0 : index
    %c0_38 = arith.constant 0 : index
    %171 = vector.load %arg5[%c0_37, %c0_38] : memref<32x128xf32, #tpu.memory_space<vmem>>, vector<32x128xf32>
    %c0_39 = arith.constant 0 : index
    %c0_40 = arith.constant 0 : index
    %172 = vector.load %arg6[%c0_39, %c0_40] : memref<32x128xf32, #tpu.memory_space<vmem>>, vector<32x128xf32>
    %c0_41 = arith.constant 0 : index
    %c0_42 = arith.constant 0 : index
    %173 = vector.load %arg7[%c0_41, %c0_42] : memref<1x128xf32, #tpu.memory_space<vmem>>, vector<1x128xf32>
    %cst_43 = arith.constant dense<0.000000e+00> : vector<16x128xf32>
    %174 = tpu.matmul %170, %171, %cst_43 {dimension_numbers = #tpu.dot_dimension_numbers<[1], [0], [0], [1], [0, 0, 1, 1], [], []>} : vector<16x32xf32>, vector<32x128xf32>, vector<16x128xf32> -> vector<16x128xf32>
    %175 = vector.broadcast %173 : vector<1x128xf32> to vector<16x128xf32>
    %176 = arith.addf %174, %175 : vector<16x128xf32>
    %cst_44 = arith.constant 0.000000e+00 : f32
    %177 = vector.broadcast %cst_44 : f32 to vector<2x32xf32>
    %cst_45 = arith.constant 0.000000e+00 : f32
    %178 = vector.broadcast %cst_45 : f32 to vector<2x32xf32>
    %179 = vector.extract_strided_slice %176 {offsets = [0, 0], sizes = [2, 128], strides = [1, 1]} : vector<16x128xf32> to vector<2x128xf32>
    %cst_46 = arith.constant dense<0.000000e+00> : vector<2x128xf32>
    %180 = tpu.matmul %177, %172, %cst_46 {dimension_numbers = #tpu.dot_dimension_numbers<[1], [0], [0], [1], [0, 0, 1, 1], [], []>} : vector<2x32xf32>, vector<32x128xf32>, vector<2x128xf32> -> vector<2x128xf32>
    %181 = arith.addf %179, %180 : vector<2x128xf32>
    %182 = vector.extract_strided_slice %181 {offsets = [0, 0], sizes = [2, 96], strides = [1, 1]} : vector<2x128xf32> to vector<2x96xf32>
    %183 = arith.negf %182 : vector<2x96xf32>
    %184 = math.exp %183 : vector<2x96xf32>
    %cst_47 = arith.constant 1.000000e+00 : f32
    %185 = vector.broadcast %cst_47 : f32 to vector<2x96xf32>
    %186 = arith.addf %185, %184 : vector<2x96xf32>
    %187 = arith.divf %185, %186 : vector<2x96xf32>
    %188 = vector.extract_strided_slice %181 {offsets = [0, 96], sizes = [2, 32], strides = [1, 1]} : vector<2x128xf32> to vector<2x32xf32>
    %189 = math.tanh %188 : vector<2x32xf32>
    %190 = vector.extract_strided_slice %187 {offsets = [0, 0], sizes = [2, 32], strides = [1, 1]} : vector<2x96xf32> to vector<2x32xf32>
    %191 = vector.extract_strided_slice %187 {offsets = [0, 32], sizes = [2, 32], strides = [1, 1]} : vector<2x96xf32> to vector<2x32xf32>
    %192 = vector.extract_strided_slice %187 {offsets = [0, 64], sizes = [2, 32], strides = [1, 1]} : vector<2x96xf32> to vector<2x32xf32>
    %193 = arith.mulf %191, %178 : vector<2x32xf32>
    %194 = arith.mulf %190, %189 : vector<2x32xf32>
    %195 = arith.addf %193, %194 : vector<2x32xf32>
    %196 = math.tanh %195 : vector<2x32xf32>
    %197 = arith.mulf %192, %196 : vector<2x32xf32>
    %198 = math.tanh %197 : vector<2x32xf32>
    %c0_48 = arith.constant 0 : index
    %c0_49 = arith.constant 0 : index
    %199 = vector.load %arg8[%c0_48, %c0_49] : memref<256x4xf32, #tpu.memory_space<vmem>>, vector<32x4xf32>
    %cst_50 = arith.constant dense<0.000000e+00> : vector<2x4xf32>
    %200 = tpu.matmul %198, %199, %cst_50 {dimension_numbers = #tpu.dot_dimension_numbers<[1], [0], [0], [1], [0, 0, 1, 1], [], []>} : vector<2x32xf32>, vector<32x4xf32>, vector<2x4xf32> -> vector<2x4xf32>
    %201 = arith.addf %1, %200 : vector<2x4xf32>
    %202 = vector.extract_strided_slice %176 {offsets = [2, 0], sizes = [2, 128], strides = [1, 1]} : vector<16x128xf32> to vector<2x128xf32>
    %cst_51 = arith.constant dense<0.000000e+00> : vector<2x128xf32>
    %203 = tpu.matmul %197, %172, %cst_51 {dimension_numbers = #tpu.dot_dimension_numbers<[1], [0], [0], [1], [0, 0, 1, 1], [], []>} : vector<2x32xf32>, vector<32x128xf32>, vector<2x128xf32> -> vector<2x128xf32>
    %204 = arith.addf %202, %203 : vector<2x128xf32>
    %205 = vector.extract_strided_slice %204 {offsets = [0, 0], sizes = [2, 96], strides = [1, 1]} : vector<2x128xf32> to vector<2x96xf32>
    %206 = arith.negf %205 : vector<2x96xf32>
    %207 = math.exp %206 : vector<2x96xf32>
    %cst_52 = arith.constant 1.000000e+00 : f32
    %208 = vector.broadcast %cst_52 : f32 to vector<2x96xf32>
    %209 = arith.addf %208, %207 : vector<2x96xf32>
    %210 = arith.divf %208, %209 : vector<2x96xf32>
    %211 = vector.extract_strided_slice %204 {offsets = [0, 96], sizes = [2, 32], strides = [1, 1]} : vector<2x128xf32> to vector<2x32xf32>
    %212 = math.tanh %211 : vector<2x32xf32>
    %213 = vector.extract_strided_slice %210 {offsets = [0, 0], sizes = [2, 32], strides = [1, 1]} : vector<2x96xf32> to vector<2x32xf32>
    %214 = vector.extract_strided_slice %210 {offsets = [0, 32], sizes = [2, 32], strides = [1, 1]} : vector<2x96xf32> to vector<2x32xf32>
    %215 = vector.extract_strided_slice %210 {offsets = [0, 64], sizes = [2, 32], strides = [1, 1]} : vector<2x96xf32> to vector<2x32xf32>
    %216 = arith.mulf %214, %195 : vector<2x32xf32>
    %217 = arith.mulf %213, %212 : vector<2x32xf32>
    %218 = arith.addf %216, %217 : vector<2x32xf32>
    %219 = math.tanh %218 : vector<2x32xf32>
    %220 = arith.mulf %215, %219 : vector<2x32xf32>
    %221 = math.tanh %220 : vector<2x32xf32>
    %c32 = arith.constant 32 : index
    %c0_53 = arith.constant 0 : index
    %222 = vector.load %arg8[%c32, %c0_53] : memref<256x4xf32, #tpu.memory_space<vmem>>, vector<32x4xf32>
    %cst_54 = arith.constant dense<0.000000e+00> : vector<2x4xf32>
    %223 = tpu.matmul %221, %222, %cst_54 {dimension_numbers = #tpu.dot_dimension_numbers<[1], [0], [0], [1], [0, 0, 1, 1], [], []>} : vector<2x32xf32>, vector<32x4xf32>, vector<2x4xf32> -> vector<2x4xf32>
    %224 = arith.addf %201, %223 : vector<2x4xf32>
    %225 = vector.extract_strided_slice %176 {offsets = [4, 0], sizes = [2, 128], strides = [1, 1]} : vector<16x128xf32> to vector<2x128xf32>
    %cst_55 = arith.constant dense<0.000000e+00> : vector<2x128xf32>
    %226 = tpu.matmul %220, %172, %cst_55 {dimension_numbers = #tpu.dot_dimension_numbers<[1], [0], [0], [1], [0, 0, 1, 1], [], []>} : vector<2x32xf32>, vector<32x128xf32>, vector<2x128xf32> -> vector<2x128xf32>
    %227 = arith.addf %225, %226 : vector<2x128xf32>
    %228 = vector.extract_strided_slice %227 {offsets = [0, 0], sizes = [2, 96], strides = [1, 1]} : vector<2x128xf32> to vector<2x96xf32>
    %229 = arith.negf %228 : vector<2x96xf32>
    %230 = math.exp %229 : vector<2x96xf32>
    %cst_56 = arith.constant 1.000000e+00 : f32
    %231 = vector.broadcast %cst_56 : f32 to vector<2x96xf32>
    %232 = arith.addf %231, %230 : vector<2x96xf32>
    %233 = arith.divf %231, %232 : vector<2x96xf32>
    %234 = vector.extract_strided_slice %227 {offsets = [0, 96], sizes = [2, 32], strides = [1, 1]} : vector<2x128xf32> to vector<2x32xf32>
    %235 = math.tanh %234 : vector<2x32xf32>
    %236 = vector.extract_strided_slice %233 {offsets = [0, 0], sizes = [2, 32], strides = [1, 1]} : vector<2x96xf32> to vector<2x32xf32>
    %237 = vector.extract_strided_slice %233 {offsets = [0, 32], sizes = [2, 32], strides = [1, 1]} : vector<2x96xf32> to vector<2x32xf32>
    %238 = vector.extract_strided_slice %233 {offsets = [0, 64], sizes = [2, 32], strides = [1, 1]} : vector<2x96xf32> to vector<2x32xf32>
    %239 = arith.mulf %237, %218 : vector<2x32xf32>
    %240 = arith.mulf %236, %235 : vector<2x32xf32>
    %241 = arith.addf %239, %240 : vector<2x32xf32>
    %242 = math.tanh %241 : vector<2x32xf32>
    %243 = arith.mulf %238, %242 : vector<2x32xf32>
    %244 = math.tanh %243 : vector<2x32xf32>
    %c64 = arith.constant 64 : index
    %c0_57 = arith.constant 0 : index
    %245 = vector.load %arg8[%c64, %c0_57] : memref<256x4xf32, #tpu.memory_space<vmem>>, vector<32x4xf32>
    %cst_58 = arith.constant dense<0.000000e+00> : vector<2x4xf32>
    %246 = tpu.matmul %244, %245, %cst_58 {dimension_numbers = #tpu.dot_dimension_numbers<[1], [0], [0], [1], [0, 0, 1, 1], [], []>} : vector<2x32xf32>, vector<32x4xf32>, vector<2x4xf32> -> vector<2x4xf32>
    %247 = arith.addf %224, %246 : vector<2x4xf32>
    %248 = vector.extract_strided_slice %176 {offsets = [6, 0], sizes = [2, 128], strides = [1, 1]} : vector<16x128xf32> to vector<2x128xf32>
    %cst_59 = arith.constant dense<0.000000e+00> : vector<2x128xf32>
    %249 = tpu.matmul %243, %172, %cst_59 {dimension_numbers = #tpu.dot_dimension_numbers<[1], [0], [0], [1], [0, 0, 1, 1], [], []>} : vector<2x32xf32>, vector<32x128xf32>, vector<2x128xf32> -> vector<2x128xf32>
    %250 = arith.addf %248, %249 : vector<2x128xf32>
    %251 = vector.extract_strided_slice %250 {offsets = [0, 0], sizes = [2, 96], strides = [1, 1]} : vector<2x128xf32> to vector<2x96xf32>
    %252 = arith.negf %251 : vector<2x96xf32>
    %253 = math.exp %252 : vector<2x96xf32>
    %cst_60 = arith.constant 1.000000e+00 : f32
    %254 = vector.broadcast %cst_60 : f32 to vector<2x96xf32>
    %255 = arith.addf %254, %253 : vector<2x96xf32>
    %256 = arith.divf %254, %255 : vector<2x96xf32>
    %257 = vector.extract_strided_slice %250 {offsets = [0, 96], sizes = [2, 32], strides = [1, 1]} : vector<2x128xf32> to vector<2x32xf32>
    %258 = math.tanh %257 : vector<2x32xf32>
    %259 = vector.extract_strided_slice %256 {offsets = [0, 0], sizes = [2, 32], strides = [1, 1]} : vector<2x96xf32> to vector<2x32xf32>
    %260 = vector.extract_strided_slice %256 {offsets = [0, 32], sizes = [2, 32], strides = [1, 1]} : vector<2x96xf32> to vector<2x32xf32>
    %261 = vector.extract_strided_slice %256 {offsets = [0, 64], sizes = [2, 32], strides = [1, 1]} : vector<2x96xf32> to vector<2x32xf32>
    %262 = arith.mulf %260, %241 : vector<2x32xf32>
    %263 = arith.mulf %259, %258 : vector<2x32xf32>
    %264 = arith.addf %262, %263 : vector<2x32xf32>
    %265 = math.tanh %264 : vector<2x32xf32>
    %266 = arith.mulf %261, %265 : vector<2x32xf32>
    %267 = math.tanh %266 : vector<2x32xf32>
    %c96 = arith.constant 96 : index
    %c0_61 = arith.constant 0 : index
    %268 = vector.load %arg8[%c96, %c0_61] : memref<256x4xf32, #tpu.memory_space<vmem>>, vector<32x4xf32>
    %cst_62 = arith.constant dense<0.000000e+00> : vector<2x4xf32>
    %269 = tpu.matmul %267, %268, %cst_62 {dimension_numbers = #tpu.dot_dimension_numbers<[1], [0], [0], [1], [0, 0, 1, 1], [], []>} : vector<2x32xf32>, vector<32x4xf32>, vector<2x4xf32> -> vector<2x4xf32>
    %270 = arith.addf %247, %269 : vector<2x4xf32>
    %271 = vector.extract_strided_slice %176 {offsets = [8, 0], sizes = [2, 128], strides = [1, 1]} : vector<16x128xf32> to vector<2x128xf32>
    %cst_63 = arith.constant dense<0.000000e+00> : vector<2x128xf32>
    %272 = tpu.matmul %266, %172, %cst_63 {dimension_numbers = #tpu.dot_dimension_numbers<[1], [0], [0], [1], [0, 0, 1, 1], [], []>} : vector<2x32xf32>, vector<32x128xf32>, vector<2x128xf32> -> vector<2x128xf32>
    %273 = arith.addf %271, %272 : vector<2x128xf32>
    %274 = vector.extract_strided_slice %273 {offsets = [0, 0], sizes = [2, 96], strides = [1, 1]} : vector<2x128xf32> to vector<2x96xf32>
    %275 = arith.negf %274 : vector<2x96xf32>
    %276 = math.exp %275 : vector<2x96xf32>
    %cst_64 = arith.constant 1.000000e+00 : f32
    %277 = vector.broadcast %cst_64 : f32 to vector<2x96xf32>
    %278 = arith.addf %277, %276 : vector<2x96xf32>
    %279 = arith.divf %277, %278 : vector<2x96xf32>
    %280 = vector.extract_strided_slice %273 {offsets = [0, 96], sizes = [2, 32], strides = [1, 1]} : vector<2x128xf32> to vector<2x32xf32>
    %281 = math.tanh %280 : vector<2x32xf32>
    %282 = vector.extract_strided_slice %279 {offsets = [0, 0], sizes = [2, 32], strides = [1, 1]} : vector<2x96xf32> to vector<2x32xf32>
    %283 = vector.extract_strided_slice %279 {offsets = [0, 32], sizes = [2, 32], strides = [1, 1]} : vector<2x96xf32> to vector<2x32xf32>
    %284 = vector.extract_strided_slice %279 {offsets = [0, 64], sizes = [2, 32], strides = [1, 1]} : vector<2x96xf32> to vector<2x32xf32>
    %285 = arith.mulf %283, %264 : vector<2x32xf32>
    %286 = arith.mulf %282, %281 : vector<2x32xf32>
    %287 = arith.addf %285, %286 : vector<2x32xf32>
    %288 = math.tanh %287 : vector<2x32xf32>
    %289 = arith.mulf %284, %288 : vector<2x32xf32>
    %290 = math.tanh %289 : vector<2x32xf32>
    %c128 = arith.constant 128 : index
    %c0_65 = arith.constant 0 : index
    %291 = vector.load %arg8[%c128, %c0_65] : memref<256x4xf32, #tpu.memory_space<vmem>>, vector<32x4xf32>
    %cst_66 = arith.constant dense<0.000000e+00> : vector<2x4xf32>
    %292 = tpu.matmul %290, %291, %cst_66 {dimension_numbers = #tpu.dot_dimension_numbers<[1], [0], [0], [1], [0, 0, 1, 1], [], []>} : vector<2x32xf32>, vector<32x4xf32>, vector<2x4xf32> -> vector<2x4xf32>
    %293 = arith.addf %270, %292 : vector<2x4xf32>
    %294 = vector.extract_strided_slice %176 {offsets = [10, 0], sizes = [2, 128], strides = [1, 1]} : vector<16x128xf32> to vector<2x128xf32>
    %cst_67 = arith.constant dense<0.000000e+00> : vector<2x128xf32>
    %295 = tpu.matmul %289, %172, %cst_67 {dimension_numbers = #tpu.dot_dimension_numbers<[1], [0], [0], [1], [0, 0, 1, 1], [], []>} : vector<2x32xf32>, vector<32x128xf32>, vector<2x128xf32> -> vector<2x128xf32>
    %296 = arith.addf %294, %295 : vector<2x128xf32>
    %297 = vector.extract_strided_slice %296 {offsets = [0, 0], sizes = [2, 96], strides = [1, 1]} : vector<2x128xf32> to vector<2x96xf32>
    %298 = arith.negf %297 : vector<2x96xf32>
    %299 = math.exp %298 : vector<2x96xf32>
    %cst_68 = arith.constant 1.000000e+00 : f32
    %300 = vector.broadcast %cst_68 : f32 to vector<2x96xf32>
    %301 = arith.addf %300, %299 : vector<2x96xf32>
    %302 = arith.divf %300, %301 : vector<2x96xf32>
    %303 = vector.extract_strided_slice %296 {offsets = [0, 96], sizes = [2, 32], strides = [1, 1]} : vector<2x128xf32> to vector<2x32xf32>
    %304 = math.tanh %303 : vector<2x32xf32>
    %305 = vector.extract_strided_slice %302 {offsets = [0, 0], sizes = [2, 32], strides = [1, 1]} : vector<2x96xf32> to vector<2x32xf32>
    %306 = vector.extract_strided_slice %302 {offsets = [0, 32], sizes = [2, 32], strides = [1, 1]} : vector<2x96xf32> to vector<2x32xf32>
    %307 = vector.extract_strided_slice %302 {offsets = [0, 64], sizes = [2, 32], strides = [1, 1]} : vector<2x96xf32> to vector<2x32xf32>
    %308 = arith.mulf %306, %287 : vector<2x32xf32>
    %309 = arith.mulf %305, %304 : vector<2x32xf32>
    %310 = arith.addf %308, %309 : vector<2x32xf32>
    %311 = math.tanh %310 : vector<2x32xf32>
    %312 = arith.mulf %307, %311 : vector<2x32xf32>
    %313 = math.tanh %312 : vector<2x32xf32>
    %c160 = arith.constant 160 : index
    %c0_69 = arith.constant 0 : index
    %314 = vector.load %arg8[%c160, %c0_69] : memref<256x4xf32, #tpu.memory_space<vmem>>, vector<32x4xf32>
    %cst_70 = arith.constant dense<0.000000e+00> : vector<2x4xf32>
    %315 = tpu.matmul %313, %314, %cst_70 {dimension_numbers = #tpu.dot_dimension_numbers<[1], [0], [0], [1], [0, 0, 1, 1], [], []>} : vector<2x32xf32>, vector<32x4xf32>, vector<2x4xf32> -> vector<2x4xf32>
    %316 = arith.addf %293, %315 : vector<2x4xf32>
    %317 = vector.extract_strided_slice %176 {offsets = [12, 0], sizes = [2, 128], strides = [1, 1]} : vector<16x128xf32> to vector<2x128xf32>
    %cst_71 = arith.constant dense<0.000000e+00> : vector<2x128xf32>
    %318 = tpu.matmul %312, %172, %cst_71 {dimension_numbers = #tpu.dot_dimension_numbers<[1], [0], [0], [1], [0, 0, 1, 1], [], []>} : vector<2x32xf32>, vector<32x128xf32>, vector<2x128xf32> -> vector<2x128xf32>
    %319 = arith.addf %317, %318 : vector<2x128xf32>
    %320 = vector.extract_strided_slice %319 {offsets = [0, 0], sizes = [2, 96], strides = [1, 1]} : vector<2x128xf32> to vector<2x96xf32>
    %321 = arith.negf %320 : vector<2x96xf32>
    %322 = math.exp %321 : vector<2x96xf32>
    %cst_72 = arith.constant 1.000000e+00 : f32
    %323 = vector.broadcast %cst_72 : f32 to vector<2x96xf32>
    %324 = arith.addf %323, %322 : vector<2x96xf32>
    %325 = arith.divf %323, %324 : vector<2x96xf32>
    %326 = vector.extract_strided_slice %319 {offsets = [0, 96], sizes = [2, 32], strides = [1, 1]} : vector<2x128xf32> to vector<2x32xf32>
    %327 = math.tanh %326 : vector<2x32xf32>
    %328 = vector.extract_strided_slice %325 {offsets = [0, 0], sizes = [2, 32], strides = [1, 1]} : vector<2x96xf32> to vector<2x32xf32>
    %329 = vector.extract_strided_slice %325 {offsets = [0, 32], sizes = [2, 32], strides = [1, 1]} : vector<2x96xf32> to vector<2x32xf32>
    %330 = vector.extract_strided_slice %325 {offsets = [0, 64], sizes = [2, 32], strides = [1, 1]} : vector<2x96xf32> to vector<2x32xf32>
    %331 = arith.mulf %329, %310 : vector<2x32xf32>
    %332 = arith.mulf %328, %327 : vector<2x32xf32>
    %333 = arith.addf %331, %332 : vector<2x32xf32>
    %334 = math.tanh %333 : vector<2x32xf32>
    %335 = arith.mulf %330, %334 : vector<2x32xf32>
    %336 = math.tanh %335 : vector<2x32xf32>
    %c192 = arith.constant 192 : index
    %c0_73 = arith.constant 0 : index
    %337 = vector.load %arg8[%c192, %c0_73] : memref<256x4xf32, #tpu.memory_space<vmem>>, vector<32x4xf32>
    %cst_74 = arith.constant dense<0.000000e+00> : vector<2x4xf32>
    %338 = tpu.matmul %336, %337, %cst_74 {dimension_numbers = #tpu.dot_dimension_numbers<[1], [0], [0], [1], [0, 0, 1, 1], [], []>} : vector<2x32xf32>, vector<32x4xf32>, vector<2x4xf32> -> vector<2x4xf32>
    %339 = arith.addf %316, %338 : vector<2x4xf32>
    %340 = vector.extract_strided_slice %176 {offsets = [14, 0], sizes = [2, 128], strides = [1, 1]} : vector<16x128xf32> to vector<2x128xf32>
    %cst_75 = arith.constant dense<0.000000e+00> : vector<2x128xf32>
    %341 = tpu.matmul %335, %172, %cst_75 {dimension_numbers = #tpu.dot_dimension_numbers<[1], [0], [0], [1], [0, 0, 1, 1], [], []>} : vector<2x32xf32>, vector<32x128xf32>, vector<2x128xf32> -> vector<2x128xf32>
    %342 = arith.addf %340, %341 : vector<2x128xf32>
    %343 = vector.extract_strided_slice %342 {offsets = [0, 0], sizes = [2, 96], strides = [1, 1]} : vector<2x128xf32> to vector<2x96xf32>
    %344 = arith.negf %343 : vector<2x96xf32>
    %345 = math.exp %344 : vector<2x96xf32>
    %cst_76 = arith.constant 1.000000e+00 : f32
    %346 = vector.broadcast %cst_76 : f32 to vector<2x96xf32>
    %347 = arith.addf %346, %345 : vector<2x96xf32>
    %348 = arith.divf %346, %347 : vector<2x96xf32>
    %349 = vector.extract_strided_slice %342 {offsets = [0, 96], sizes = [2, 32], strides = [1, 1]} : vector<2x128xf32> to vector<2x32xf32>
    %350 = math.tanh %349 : vector<2x32xf32>
    %351 = vector.extract_strided_slice %348 {offsets = [0, 0], sizes = [2, 32], strides = [1, 1]} : vector<2x96xf32> to vector<2x32xf32>
    %352 = vector.extract_strided_slice %348 {offsets = [0, 32], sizes = [2, 32], strides = [1, 1]} : vector<2x96xf32> to vector<2x32xf32>
    %353 = vector.extract_strided_slice %348 {offsets = [0, 64], sizes = [2, 32], strides = [1, 1]} : vector<2x96xf32> to vector<2x32xf32>
    %354 = arith.mulf %352, %333 : vector<2x32xf32>
    %355 = arith.mulf %351, %350 : vector<2x32xf32>
    %356 = arith.addf %354, %355 : vector<2x32xf32>
    %357 = math.tanh %356 : vector<2x32xf32>
    %358 = arith.mulf %353, %357 : vector<2x32xf32>
    %359 = math.tanh %358 : vector<2x32xf32>
    %c224 = arith.constant 224 : index
    %c0_77 = arith.constant 0 : index
    %360 = vector.load %arg8[%c224, %c0_77] : memref<256x4xf32, #tpu.memory_space<vmem>>, vector<32x4xf32>
    %cst_78 = arith.constant dense<0.000000e+00> : vector<2x4xf32>
    %361 = tpu.matmul %359, %360, %cst_78 {dimension_numbers = #tpu.dot_dimension_numbers<[1], [0], [0], [1], [0, 0, 1, 1], [], []>} : vector<2x32xf32>, vector<32x4xf32>, vector<2x4xf32> -> vector<2x4xf32>
    %362 = arith.addf %339, %361 : vector<2x4xf32>
    %c0_79 = arith.constant 0 : index
    %c0_80 = arith.constant 0 : index
    %363 = vector.load %arg9[%c0_79, %c0_80] : memref<1x4xf32, #tpu.memory_space<vmem>>, vector<1x4xf32>
    %364 = vector.broadcast %363 : vector<1x4xf32> to vector<2x4xf32>
    %365 = arith.addf %362, %364 : vector<2x4xf32>
    %c0_81 = arith.constant 0 : index
    %c0_82 = arith.constant 0 : index
    %366 = vector.load %arg10[%c0_81, %c0_82] : memref<2x4xf32, #tpu.memory_space<vmem>>, vector<2x4xf32>
    tpu.vector_store %arg10[%c0_81, %c0_82], %365 {strides = array<i32>} : memref<2x4xf32, #tpu.memory_space<vmem>>, vector<2x4xf32>,
    return
  }
  func.func @transform_0(%arg0: i32) -> (i32, i32) {
    %c0_i32 = arith.constant 0 : i32
    %c0_i32_0 = arith.constant 0 : i32
    %c0_i32_1 = arith.constant 0 : i32
    return %c0_i32, %c0_i32_0 : i32, i32
  }
  func.func @transform_1(%arg0: i32) -> (i32, i32) {
    %c0_i32 = arith.constant 0 : i32
    %c0_i32_0 = arith.constant 0 : i32
    %c0_i32_1 = arith.constant 0 : i32
    return %c0_i32, %c0_i32_0 : i32, i32
  }
  func.func @transform_2(%arg0: i32) -> (i32, i32) {
    %c0_i32 = arith.constant 0 : i32
    %c0_i32_0 = arith.constant 0 : i32
    %c0_i32_1 = arith.constant 0 : i32
    return %c0_i32, %c0_i32_0 : i32, i32
  }
  func.func @transform_3(%arg0: i32) -> (i32, i32) {
    %c0_i32 = arith.constant 0 : i32
    %c0_i32_0 = arith.constant 0 : i32
    %c0_i32_1 = arith.constant 0 : i32
    return %c0_i32, %c0_i32_0 : i32, i32
  }
  func.func @transform_4(%arg0: i32) -> (i32, i32) {
    %c0_i32 = arith.constant 0 : i32
    %c0_i32_0 = arith.constant 0 : i32
    %c0_i32_1 = arith.constant 0 : i32
    return %c0_i32, %c0_i32_0 : i32, i32
  }
  func.func @transform_5(%arg0: i32) -> (i32, i32) {
    %c0_i32 = arith.constant 0 : i32
    %c0_i32_0 = arith.constant 0 : i32
    %c0_i32_1 = arith.constant 0 : i32
    return %c0_i32, %c0_i32_0 : i32, i32
  }
  func.func @transform_6(%arg0: i32) -> (i32, i32) {
    %c0_i32 = arith.constant 0 : i32
    %c0_i32_0 = arith.constant 0 : i32
    %c0_i32_1 = arith.constant 0 : i32
    return %c0_i32, %c0_i32_0 : i32, i32
  }
  func.func @transform_7(%arg0: i32) -> (i32, i32) {
    %c0_i32 = arith.constant 0 : i32
    %c0_i32_0 = arith.constant 0 : i32
    %c0_i32_1 = arith.constant 0 : i32
    return %c0_i32, %c0_i32_0 : i32, i32
  }
  func.func @transform_8(%arg0: i32) -> (i32, i32) {
    %c0_i32 = arith.constant 0 : i32
    %c0_i32_0 = arith.constant 0 : i32
    %c0_i32_1 = arith.constant 0 : i32
    return %c0_i32, %c0_i32_0 : i32, i32
  }
  func.func @transform_9(%arg0: i32) -> (i32, i32) {
    %c0_i32 = arith.constant 0 : i32
    %c0_i32_0 = arith.constant 0 : i32
    return %arg0, %c0_i32 : i32, i32
  }
}

</mosaic_0001>

<llo_original>
// kernel: tpu_custom_call.1
$region0: #{tpu_custom_call.1}
  #allocation0 [shape = 'u32[]', space=smem, size = 0x4, offset = 0x4, fixed_abs, tag = 'smem constant byte address 0x4 - core index']
  #allocation1 [shape = 'u32[144,128]{1,0:T(1,128)}', space=vmem, size = 0x12000, scoped, tag = 'internal scratch']
  #allocation2 [shape = 'f32[16,32]{1,0:T(8,128)}', space=vmem, size = 0x2000, scoped, tag = 'scratch operand']
  %s0 = inlined_call_operand.vmem [shape: f32[16,4], index: 0, kind: input, shape index: {}]
  %s1 = inlined_call_operand.vmem [shape: f32[4,128], index: 1, kind: input, shape index: {}]
  %s2 = inlined_call_operand.vmem [shape: f32[32,128], index: 2, kind: input, shape index: {}]
  %s3 = inlined_call_operand.vmem [shape: f32[1,128], index: 3, kind: input, shape index: {}]
  %s4 = inlined_call_operand.vmem [shape: f32[32,128], index: 4, kind: input, shape index: {}]
  %s5 = inlined_call_operand.vmem [shape: f32[32,128], index: 5, kind: input, shape index: {}]
  %s6 = inlined_call_operand.vmem [shape: f32[1,128], index: 6, kind: input, shape index: {}]
  %s7 = inlined_call_operand.vmem [shape: f32[256,4], index: 7, kind: input, shape index: {}]
  %s8 = inlined_call_operand.vmem [shape: f32[1,4], index: 8, kind: input, shape index: {}]
  %s9 = inlined_call_operand.hbm [shape: f32[2,4], index: 9, kind: output, shape index: {}]
  %s10 = sld [smem:[#allocation0]]
  $region46: #{tpu_custom_call.1} parent=0
    _
  %s12 = ssub.s32 1, %s10
  %s13 = scalar_select 0, %s12, %s10
  $region1: #{tpu_custom_call.1} parent=0
    #allocation3 [shape = 'u8[1024]{0}', space=vmem, size = 0x400, scoped, tag = 'output window, operand 0, single buffered']
    #allocation4 [shape = 's32[1]{0}', space=sflag, size = 0x4, scoped, tag = 'scoped memory for tpu_custom_call.1']
    %14 = vsyncpa [#allocation4], 0
    // Predicated region
    $region2: #{tpu_custom_call.1} parent=1 // pred_check
      _
    $region3: #{tpu_custom_call.1} parent=1 // pred_check_branch
      %16 = sbr.rel (0) target = $region5
    $region4: #{tpu_custom_call.1} parent=1 // pred_region
      _
    $region5: #{tpu_custom_call.1} parent=1 // pred_fallthru
      _
    // Predicated region
    $region6: #{tpu_custom_call.1} parent=1 // pred_check
      _
    $region7: #{tpu_custom_call.1} parent=1 // pred_check_branch
      %18 = sbr.rel (0) target = $region9
    $region8: #{tpu_custom_call.1} parent=1 // pred_region
      _
    $region9: #{tpu_custom_call.1} parent=1 // pred_fallthru
      _
    // Predicated region
    $region10: #{tpu_custom_call.1} parent=1 // pred_check
      _
    $region11: #{tpu_custom_call.1} parent=1 // pred_check_branch
      %20 = sbr.rel (0) target = $region13
    $region12: #{tpu_custom_call.1} parent=1 // pred_region
      _
    $region13: #{tpu_custom_call.1} parent=1 // pred_fallthru
      _
    // Predicated region
    $region14: #{tpu_custom_call.1} parent=1 // pred_check
      _
    $region15: #{tpu_custom_call.1} parent=1 // pred_check_branch
      %22 = sbr.rel (0) target = $region17
    $region16: #{tpu_custom_call.1} parent=1 // pred_region
      _
    $region17: #{tpu_custom_call.1} parent=1 // pred_fallthru
      _
    // Predicated region
    $region18: #{tpu_custom_call.1} parent=1 // pred_check
      _
    $region19: #{tpu_custom_call.1} parent=1 // pred_check_branch
      %24 = sbr.rel (0) target = $region21
    $region20: #{tpu_custom_call.1} parent=1 // pred_region
      _
    $region21: #{tpu_custom_call.1} parent=1 // pred_fallthru
      _
    // Predicated region
    $region22: #{tpu_custom_call.1} parent=1 // pred_check
      _
    $region23: #{tpu_custom_call.1} parent=1 // pred_check_branch
      %26 = sbr.rel (0) target = $region25
    $region24: #{tpu_custom_call.1} parent=1 // pred_region
      _
    $region25: #{tpu_custom_call.1} parent=1 // pred_fallthru
      _
    // Predicated region
    $region26: #{tpu_custom_call.1} parent=1 // pred_check
      _
    $region27: #{tpu_custom_call.1} parent=1 // pred_check_branch
      %28 = sbr.rel (0) target = $region29
    $region28: #{tpu_custom_call.1} parent=1 // pred_region
      _
    $region29: #{tpu_custom_call.1} parent=1 // pred_fallthru
      _
    // Predicated region
    $region30: #{tpu_custom_call.1} parent=1 // pred_check
      _
    $region31: #{tpu_custom_call.1} parent=1 // pred_check_branch
      %30 = sbr.rel (0) target = $region33
    $region32: #{tpu_custom_call.1} parent=1 // pred_region
      _
    $region33: #{tpu_custom_call.1} parent=1 // pred_fallthru
      _
    // Predicated region
    $region34: #{tpu_custom_call.1} parent=1 // pred_check
      _
    $region35: #{tpu_custom_call.1} parent=1 // pred_check_branch
      %32 = sbr.rel (0) target = $region37
    $region36: #{tpu_custom_call.1} parent=1 // pred_region
      _
    $region37: #{tpu_custom_call.1} parent=1 // pred_fallthru
      _
    %v33 = vld [vmem:[%s0] sm:$0xff]
    %v34 = vld [vmem:[%s0 + $0x8] sm:$0xff]
    %v35 = vld [vmem:[%s1] sm:$0xf]
    %v36 = vld [vmem:[%s2] sm:$0xff]
    %v37 = vld [vmem:[%s2 + $0x8] sm:$0xff]
    %v38 = vld [vmem:[%s2 + $0x10] sm:$0xff]
    %v39 = vld [vmem:[%s2 + $0x18] sm:$0xff]
    %v40 = vld [vmem:[%s3] sm:$0x1]
    %v42 = vlaneseq
    %v43 = vshrl.u32 %v42, 7
    %v44 = vsub.s32 0, %v43
    %v45 = vrot.slane %v40, %v44
    %vm47 = vcmask 31744
    %v49 = vsel %vm47, %v33, 0
    %v52 = vsel %vm47, %v34, 0
    %vm54 = vcmask 1043456
    %v56 = vsel %vm54, %v35, 0
    %58 = vmatprep.subr.mxu0 0.0
    %59 = vmatpush1.msra.mxu0 %v56
    %60 = vmatprep.subr.mxu0 0.0
    %61 = vmatpush1.msra.mxu0 0.0
    %62 = vmatprep.subr.mxu0 0.0
    %63 = vmatpush1.msra.mxu0 0.0
    %64 = vmatprep.subr.mxu0 0.0
    %65 = vmatpush1.msra.mxu0 0.0
    %66 = vmatprep.subr.mxu0 0.0
    %67 = vmatpush1.msra.mxu0 0.0
    %68 = vmatprep.subr.mxu0 0.0
    %69 = vmatpush1.msra.mxu0 0.0
    %70 = vmatprep.subr.mxu0 0.0
    %71 = vmatpush1.msra.mxu0 0.0
    %72 = vmatprep.subr.mxu0 0.0
    %73 = vmatpush1.msra.mxu0 0.0
    %74 = vmatprep.subr.mxu0 0.0
    %75 = vmatpush1.msra.mxu0 0.0
    %76 = vmatprep.subr.mxu0 0.0
    %77 = vmatpush1.msra.mxu0 0.0
    %78 = vmatprep.subr.mxu0 0.0
    %79 = vmatpush1.msra.mxu0 0.0
    %80 = vmatprep.subr.mxu0 0.0
    %81 = vmatpush1.msra.mxu0 0.0
    %82 = vmatprep.subr.mxu0 0.0
    %83 = vmatpush1.msra.mxu0 0.0
    %84 = vmatprep.subr.mxu0 0.0
    %85 = vmatpush1.msra.mxu0 0.0
    %86 = vmatprep.subr.mxu0 0.0
    %87 = vmatpush1.msra.mxu0 0.0
    %88 = vmatprep.subr.mxu0 0.0
    %89 = vmatpush1.msra.mxu0 0.0
    %90 = vmatprep.subr.mxu0 0.0
    %91 = vmatpush1.msra.mxu0 0.0
    %92 = vmatprep.subr.mxu0 0.0
    %93 = vmatpush1.msra.mxu0 0.0
    %94 = vmatprep.subr.mxu0 0.0
    %95 = vmatpush1.msra.mxu0 0.0
    %96 = vmatprep.subr.mxu0 0.0
    %97 = vmatpush1.msra.mxu0 0.0
    %98 = vmatprep.subr.mxu0 0.0
    %99 = vmatpush1.msra.mxu0 0.0
    %100 = vmatprep.subr.mxu0 0.0
    %101 = vmatpush1.msra.mxu0 0.0
    %102 = vmatprep.subr.mxu0 0.0
    %103 = vmatpush1.msra.mxu0 0.0
    %104 = vmatprep.subr.mxu0 0.0
    %105 = vmatpush1.msra.mxu0 0.0
    %106 = vmatprep.subr.mxu0 0.0
    %107 = vmatpush1.msra.mxu0 0.0
    %108 = vmatprep.subr.mxu0 0.0
    %109 = vmatpush1.msra.mxu0 0.0
    %110 = vmatprep.subr.mxu0 0.0
    %111 = vmatpush1.msra.mxu0 0.0
    %112 = vmatprep.subr.mxu0 0.0
    %113 = vmatpush1.msra.mxu0 0.0
    %114 = vmatprep.subr.mxu0 0.0
    %115 = vmatpush1.msra.mxu0 0.0
    %116 = vmatprep.subr.mxu0 0.0
    %117 = vmatpush1.msra.mxu0 0.0
    %118 = vmatprep.subr.mxu0 0.0
    %119 = vmatpush1.msra.mxu0 0.0
    %120 = vmatprep.subr.mxu0 0.0
    %121 = vmatpush1.msra.mxu0 0.0
    %122 = vmatprep.mubr.f32.mxu0 0.0
    %123 = vmatmul.mubr.f32.gmra.mrb[0].mxu0 %v49
    %v124 = vpop.f32.mrb[0].mxu0
    %v125 = vadd.f32 %v45, %v124
    %v126 = vpop.f32.mrb[0].mxu0
    %127 = vmatprep.mubr.f32.mxu0 0.0
    %128 = vmatmul.mubr.f32.gmra.mrb[0].mxu0 %v52
    %v129 = vpop.f32.mrb[0].mxu0
    %v130 = vadd.f32 %v45, %v129
    %v131 = vpop.f32.mrb[0].mxu0
    %132 = vdwg.mxu0
    %vm133 = vcmask 261120
    %v135 = vsel %vm133, 0.0, 0
    %137 = vmatprep.subr.mxu0 0.0
    %138 = vmatpush1.msra.mxu0 %v36
    %139 = vmatprep.subr.mxu0 0.0
    %140 = vmatpush1.msra.mxu0 %v37
    %141 = vmatprep.subr.mxu0 0.0
    %142 = vmatpush1.msra.mxu0 %v38
    %143 = vmatprep.subr.mxu0 0.0
    %144 = vmatpush1.msra.mxu0 %v39
    %145 = vmatprep.subr.mxu0 0.0
    %146 = vmatpush1.msra.mxu0 0.0
    %147 = vmatprep.subr.mxu0 0.0
    %148 = vmatpush1.msra.mxu0 0.0
    %149 = vmatprep.subr.mxu0 0.0
    %150 = vmatpush1.msra.mxu0 0.0
    %151 = vmatprep.subr.mxu0 0.0
    %152 = vmatpush1.msra.mxu0 0.0
    %153 = vmatprep.subr.mxu0 0.0
    %154 = vmatpush1.msra.mxu0 0.0
    %155 = vmatprep.subr.mxu0 0.0
    %156 = vmatpush1.msra.mxu0 0.0
    %157 = vmatprep.subr.mxu0 0.0
    %158 = vmatpush1.msra.mxu0 0.0
    %159 = vmatprep.subr.mxu0 0.0
    %160 = vmatpush1.msra.mxu0 0.0
    %161 = vmatprep.subr.mxu0 0.0
    %162 = vmatpush1.msra.mxu0 0.0
    %163 = vmatprep.subr.mxu0 0.0
    %164 = vmatpush1.msra.mxu0 0.0
    %165 = vmatprep.subr.mxu0 0.0
    %166 = vmatpush1.msra.mxu0 0.0
    %167 = vmatprep.subr.mxu0 0.0
    %168 = vmatpush1.msra.mxu0 0.0
    %169 = vmatprep.subr.mxu0 0.0
    %170 = vmatpush1.msra.mxu0 0.0
    %171 = vmatprep.subr.mxu0 0.0
    %172 = vmatpush1.msra.mxu0 0.0
    %173 = vmatprep.subr.mxu0 0.0
    %174 = vmatpush1.msra.mxu0 0.0
    %175 = vmatprep.subr.mxu0 0.0
    %176 = vmatpush1.msra.mxu0 0.0
    %177 = vmatprep.subr.mxu0 0.0
    %178 = vmatpush1.msra.mxu0 0.0
    %179 = vmatprep.subr.mxu0 0.0
    %180 = vmatpush1.msra.mxu0 0.0
    %181 = vmatprep.subr.mxu0 0.0
    %182 = vmatpush1.msra.mxu0 0.0
    %183 = vmatprep.subr.mxu0 0.0
    %184 = vmatpush1.msra.mxu0 0.0
    %185 = vmatprep.subr.mxu0 0.0
    %186 = vmatpush1.msra.mxu0 0.0
    %187 = vmatprep.subr.mxu0 0.0
    %188 = vmatpush1.msra.mxu0 0.0
    %189 = vmatprep.subr.mxu0 0.0
    %190 = vmatpush1.msra.mxu0 0.0
    %191 = vmatprep.subr.mxu0 0.0
    %192 = vmatpush1.msra.mxu0 0.0
    %193 = vmatprep.subr.mxu0 0.0
    %194 = vmatpush1.msra.mxu0 0.0
    %195 = vmatprep.subr.mxu0 0.0
    %196 = vmatpush1.msra.mxu0 0.0
    %197 = vmatprep.subr.mxu0 0.0
    %198 = vmatpush1.msra.mxu0 0.0
    %199 = vmatprep.subr.mxu0 0.0
    %200 = vmatpush1.msra.mxu0 0.0
    %201 = vmatprep.mubr.f32.mxu0 0.0
    %202 = vmatmul.mubr.f32.gmra.mrb[0].mxu0 %v135
    %v203 = vpop.f32.mrb[0].mxu0
    %v204 = vadd.f32 0.0, %v203
    %v205 = vpop.f32.mrb[0].mxu0
    %206 = vdwg.mxu0
    %v207 = vadd.f32 %v125, %v204
    %v208 = vxor.u32 %v207, 2147483648
    %v209 = vmul.f32 %v208, 1.442695
    %v210 = vpow.pop %v209
    %v211 = vadd.f32 %v210, 1.0
    %v212 = vrcp.pop %v211
    %v213 = vmul.f32 1.0, %v212
    %v214 = vtanh.pop %v207
    %v215 = vmul.f32 %v213, 0.0
    %217 = vrot.lane.b32.xlu0 %v214, 32
    %v218 = vpop.permute.xlu0 %217
    %v220 = vmul.f32 %v213, %v218
    %222 = vrot.lane.b32.xlu0 %v220, 32
    %v223 = vpop.permute.xlu0 %222
    %v225 = vadd.f32 %v215, %v223
    %v226 = vtanh.pop %v225
    %228 = vrot.lane.b32.xlu0 %v226, 32
    %v229 = vpop.permute.xlu0 %228
    %v231 = vmul.f32 %v213, %v229
    %233 = vrot.lane.b32.xlu0 %v231, 64
    %v234 = vpop.permute.xlu0 %233
    %vm236 = vcmask 254976
    %237 = vst.msk [vmem:[#allocation2] sm:$0x3] %vm236, %v234
    %v238 = vsel %vm133, %v234, 0
    %240 = vmatprep.subr.mxu0 0.0
    %241 = vmatpush1.msra.mxu0 %v36
    %242 = vmatprep.subr.mxu0 0.0
    %243 = vmatpush1.msra.mxu0 %v37
    %244 = vmatprep.subr.mxu0 0.0
    %245 = vmatpush1.msra.mxu0 %v38
    %246 = vmatprep.subr.mxu0 0.0
    %247 = vmatpush1.msra.mxu0 %v39
    %248 = vmatprep.subr.mxu0 0.0
    %249 = vmatpush1.msra.mxu0 0.0
    %250 = vmatprep.subr.mxu0 0.0
    %251 = vmatpush1.msra.mxu0 0.0
    %252 = vmatprep.subr.mxu0 0.0
    %253 = vmatpush1.msra.mxu0 0.0
    %254 = vmatprep.subr.mxu0 0.0
    %255 = vmatpush1.msra.mxu0 0.0
    %256 = vmatprep.subr.mxu0 0.0
    %257 = vmatpush1.msra.mxu0 0.0
    %258 = vmatprep.subr.mxu0 0.0
    %259 = vmatpush1.msra.mxu0 0.0
    %260 = vmatprep.subr.mxu0 0.0
    %261 = vmatpush1.msra.mxu0 0.0
    %262 = vmatprep.subr.mxu0 0.0
    %263 = vmatpush1.msra.mxu0 0.0
    %264 = vmatprep.subr.mxu0 0.0
    %265 = vmatpush1.msra.mxu0 0.0
    %266 = vmatprep.subr.mxu0 0.0
    %267 = vmatpush1.msra.mxu0 0.0
    %268 = vmatprep.subr.mxu0 0.0
    %269 = vmatpush1.msra.mxu0 0.0
    %270 = vmatprep.subr.mxu0 0.0
    %271 = vmatpush1.msra.mxu0 0.0
    %272 = vmatprep.subr.mxu0 0.0
    %273 = vmatpush1.msra.mxu0 0.0
    %274 = vmatprep.subr.mxu0 0.0
    %275 = vmatpush1.msra.mxu0 0.0
    %276 = vmatprep.subr.mxu0 0.0
    %277 = vmatpush1.msra.mxu0 0.0
    %278 = vmatprep.subr.mxu0 0.0
    %279 = vmatpush1.msra.mxu0 0.0
    %280 = vmatprep.subr.mxu0 0.0
    %281 = vmatpush1.msra.mxu0 0.0
    %282 = vmatprep.subr.mxu0 0.0
    %283 = vmatpush1.msra.mxu0 0.0
    %284 = vmatprep.subr.mxu0 0.0
    %285 = vmatpush1.msra.mxu0 0.0
    %286 = vmatprep.subr.mxu0 0.0
    %287 = vmatpush1.msra.mxu0 0.0
    %288 = vmatprep.subr.mxu0 0.0
    %289 = vmatpush1.msra.mxu0 0.0
    %290 = vmatprep.subr.mxu0 0.0
    %291 = vmatpush1.msra.mxu0 0.0
    %292 = vmatprep.subr.mxu0 0.0
    %293 = vmatpush1.msra.mxu0 0.0
    %294 = vmatprep.subr.mxu0 0.0
    %295 = vmatpush1.msra.mxu0 0.0
    %296 = vmatprep.subr.mxu0 0.0
    %297 = vmatpush1.msra.mxu0 0.0
    %298 = vmatprep.subr.mxu0 0.0
    %299 = vmatpush1.msra.mxu0 0.0
    %300 = vmatprep.subr.mxu0 0.0
    %301 = vmatpush1.msra.mxu0 0.0
    %302 = vmatprep.subr.mxu0 0.0
    %303 = vmatpush1.msra.mxu0 0.0
    %304 = vmatprep.mubr.f32.mxu0 0.0
    %305 = vmatmul.mubr.f32.gmra.mrb[0].mxu0 %v238
    %v306 = vpop.f32.mrb[0].mxu0
    %v307 = vadd.f32 0.0, %v306
    %v308 = vpop.f32.mrb[0].mxu0
    %309 = vdwg.mxu0
    %v311 = vrot.slane %v307, 6
    %v313 = vadd.f32 %v125, %v311
    %v314 = vxor.u32 %v313, 2147483648
    %v315 = vmul.f32 %v314, 1.442695
    %v316 = vpow.pop %v315
    %v317 = vadd.f32 %v316, 1.0
    %v318 = vrcp.pop %v317
    %v319 = vmul.f32 1.0, %v318
    %v320 = vtanh.pop %v313
    %v322 = vrot.slane %v225, 6
    %v324 = vmul.f32 %v319, %v322
    %326 = vrot.lane.b32.xlu0 %v320, 32
    %v327 = vpop.permute.xlu0 %326
    %v329 = vmul.f32 %v319, %v327
    %331 = vrot.lane.b32.xlu0 %v329, 32
    %v332 = vpop.permute.xlu0 %331
    %v334 = vadd.f32 %v324, %v332
    %v335 = vtanh.pop %v334
    %337 = vrot.lane.b32.xlu0 %v335, 32
    %v338 = vpop.permute.xlu0 %337
    %v340 = vmul.f32 %v319, %v338
    %342 = vrot.lane.b32.xlu0 %v340, 64
    %v343 = vpop.permute.xlu0 %342
    %vm345 = vcmask 257026
    %346 = vst.msk [vmem:[#allocation2] sm:$0xc] %vm345, %v343
    %v347 = vrot.slane %v340, 2
    %348 = vrot.lane.b32.xlu0 %v347, 64
    %v349 = vpop.permute.xlu0 %348
    %v350 = vsel %vm133, %v349, 0
    %352 = vmatprep.subr.mxu0 0.0
    %353 = vmatpush1.msra.mxu0 %v36
    %354 = vmatprep.subr.mxu0 0.0
    %355 = vmatpush1.msra.mxu0 %v37
    %356 = vmatprep.subr.mxu0 0.0
    %357 = vmatpush1.msra.mxu0 %v38
    %358 = vmatprep.subr.mxu0 0.0
    %359 = vmatpush1.msra.mxu0 %v39
    %360 = vmatprep.subr.mxu0 0.0
    %361 = vmatpush1.msra.mxu0 0.0
    %362 = vmatprep.subr.mxu0 0.0
    %363 = vmatpush1.msra.mxu0 0.0
    %364 = vmatprep.subr.mxu0 0.0
    %365 = vmatpush1.msra.mxu0 0.0
    %366 = vmatprep.subr.mxu0 0.0
    %367 = vmatpush1.msra.mxu0 0.0
    %368 = vmatprep.subr.mxu0 0.0
    %369 = vmatpush1.msra.mxu0 0.0
    %370 = vmatprep.subr.mxu0 0.0
    %371 = vmatpush1.msra.mxu0 0.0
    %372 = vmatprep.subr.mxu0 0.0
    %373 = vmatpush1.msra.mxu0 0.0
    %374 = vmatprep.subr.mxu0 0.0
    %375 = vmatpush1.msra.mxu0 0.0
    %376 = vmatprep.subr.mxu0 0.0
    %377 = vmatpush1.msra.mxu0 0.0
    %378 = vmatprep.subr.mxu0 0.0
    %379 = vmatpush1.msra.mxu0 0.0
    %380 = vmatprep.subr.mxu0 0.0
    %381 = vmatpush1.msra.mxu0 0.0
    %382 = vmatprep.subr.mxu0 0.0
    %383 = vmatpush1.msra.mxu0 0.0
    %384 = vmatprep.subr.mxu0 0.0
    %385 = vmatpush1.msra.mxu0 0.0
    %386 = vmatprep.subr.mxu0 0.0
    %387 = vmatpush1.msra.mxu0 0.0
    %388 = vmatprep.subr.mxu0 0.0
    %389 = vmatpush1.msra.mxu0 0.0
    %390 = vmatprep.subr.mxu0 0.0
    %391 = vmatpush1.msra.mxu0 0.0
    %392 = vmatprep.subr.mxu0 0.0
    %393 = vmatpush1.msra.mxu0 0.0
    %394 = vmatprep.subr.mxu0 0.0
    %395 = vmatpush1.msra.mxu0 0.0
    %396 = vmatprep.subr.mxu0 0.0
    %397 = vmatpush1.msra.mxu0 0.0
    %398 = vmatprep.subr.mxu0 0.0
    %399 = vmatpush1.msra.mxu0 0.0
    %400 = vmatprep.subr.mxu0 0.0
    %401 = vmatpush1.msra.mxu0 0.0
    %402 = vmatprep.subr.mxu0 0.0
    %403 = vmatpush1.msra.mxu0 0.0
    %404 = vmatprep.subr.mxu0 0.0
    %405 = vmatpush1.msra.mxu0 0.0
    %406 = vmatprep.subr.mxu0 0.0
    %407 = vmatpush1.msra.mxu0 0.0
    %408 = vmatprep.subr.mxu0 0.0
    %409 = vmatpush1.msra.mxu0 0.0
    %410 = vmatprep.subr.mxu0 0.0
    %411 = vmatpush1.msra.mxu0 0.0
    %412 = vmatprep.subr.mxu0 0.0
    %413 = vmatpush1.msra.mxu0 0.0
    %414 = vmatprep.subr.mxu0 0.0
    %415 = vmatpush1.msra.mxu0 0.0
    %416 = vmatprep.mubr.f32.mxu0 0.0
    %417 = vmatmul.mubr.f32.gmra.mrb[0].mxu0 %v350
    %v418 = vpop.f32.mrb[0].mxu0
    %v419 = vadd.f32 0.0, %v418
    %v420 = vpop.f32.mrb[0].mxu0
    %421 = vdwg.mxu0
    %v423 = vrot.slane %v419, 4
    %v425 = vadd.f32 %v125, %v423
    %v426 = vxor.u32 %v425, 2147483648
    %v427 = vmul.f32 %v426, 1.442695
    %v428 = vpow.pop %v427
    %v429 = vadd.f32 %v428, 1.0
    %v430 = vrcp.pop %v429
    %v431 = vmul.f32 1.0, %v430
    %v432 = vtanh.pop %v425
    %v434 = vrot.slane %v334, 6
    %v436 = vmul.f32 %v431, %v434
    %438 = vrot.lane.b32.xlu0 %v432, 32
    %v439 = vpop.permute.xlu0 %438
    %v441 = vmul.f32 %v431, %v439
    %443 = vrot.lane.b32.xlu0 %v441, 32
    %v444 = vpop.permute.xlu0 %443
    %v446 = vadd.f32 %v436, %v444
    %v447 = vtanh.pop %v446
    %449 = vrot.lane.b32.xlu0 %v447, 32
    %v450 = vpop.permute.xlu0 %449
    %v452 = vmul.f32 %v431, %v450
    %454 = vrot.lane.b32.xlu0 %v452, 64
    %v455 = vpop.permute.xlu0 %454
    %vm457 = vcmask 259076
    %458 = vst.msk [vmem:[#allocation2] sm:$0x30] %vm457, %v455
    %v459 = vrot.slane %v452, 4
    %460 = vrot.lane.b32.xlu0 %v459, 64
    %v461 = vpop.permute.xlu0 %460
    %v462 = vsel %vm133, %v461, 0
    %464 = vmatprep.subr.mxu0 0.0
    %465 = vmatpush1.msra.mxu0 %v36
    %466 = vmatprep.subr.mxu0 0.0
    %467 = vmatpush1.msra.mxu0 %v37
    %468 = vmatprep.subr.mxu0 0.0
    %469 = vmatpush1.msra.mxu0 %v38
    %470 = vmatprep.subr.mxu0 0.0
    %471 = vmatpush1.msra.mxu0 %v39
    %472 = vmatprep.subr.mxu0 0.0
    %473 = vmatpush1.msra.mxu0 0.0
    %474 = vmatprep.subr.mxu0 0.0
    %475 = vmatpush1.msra.mxu0 0.0
    %476 = vmatprep.subr.mxu0 0.0
    %477 = vmatpush1.msra.mxu0 0.0
    %478 = vmatprep.subr.mxu0 0.0
    %479 = vmatpush1.msra.mxu0 0.0
    %480 = vmatprep.subr.mxu0 0.0
    %481 = vmatpush1.msra.mxu0 0.0
    %482 = vmatprep.subr.mxu0 0.0
    %483 = vmatpush1.msra.mxu0 0.0
    %484 = vmatprep.subr.mxu0 0.0
    %485 = vmatpush1.msra.mxu0 0.0
    %486 = vmatprep.subr.mxu0 0.0
    %487 = vmatpush1.msra.mxu0 0.0
    %488 = vmatprep.subr.mxu0 0.0
    %489 = vmatpush1.msra.mxu0 0.0
    %490 = vmatprep.subr.mxu0 0.0
    %491 = vmatpush1.msra.mxu0 0.0
    %492 = vmatprep.subr.mxu0 0.0
    %493 = vmatpush1.msra.mxu0 0.0
    %494 = vmatprep.subr.mxu0 0.0
    %495 = vmatpush1.msra.mxu0 0.0
    %496 = vmatprep.subr.mxu0 0.0
    %497 = vmatpush1.msra.mxu0 0.0
    %498 = vmatprep.subr.mxu0 0.0
    %499 = vmatpush1.msra.mxu0 0.0
    %500 = vmatprep.subr.mxu0 0.0
    %501 = vmatpush1.msra.mxu0 0.0
    %502 = vmatprep.subr.mxu0 0.0
    %503 = vmatpush1.msra.mxu0 0.0
    %504 = vmatprep.subr.mxu0 0.0
    %505 = vmatpush1.msra.mxu0 0.0
    %506 = vmatprep.subr.mxu0 0.0
    %507 = vmatpush1.msra.mxu0 0.0
    %508 = vmatprep.subr.mxu0 0.0
    %509 = vmatpush1.msra.mxu0 0.0
    %510 = vmatprep.subr.mxu0 0.0
    %511 = vmatpush1.msra.mxu0 0.0
    %512 = vmatprep.subr.mxu0 0.0
    %513 = vmatpush1.msra.mxu0 0.0
    %514 = vmatprep.subr.mxu0 0.0
    %515 = vmatpush1.msra.mxu0 0.0
    %516 = vmatprep.subr.mxu0 0.0
    %517 = vmatpush1.msra.mxu0 0.0
    %518 = vmatprep.subr.mxu0 0.0
    %519 = vmatpush1.msra.mxu0 0.0
    %520 = vmatprep.subr.mxu0 0.0
    %521 = vmatpush1.msra.mxu0 0.0
    %522 = vmatprep.subr.mxu0 0.0
    %523 = vmatpush1.msra.mxu0 0.0
    %524 = vmatprep.subr.mxu0 0.0
    %525 = vmatpush1.msra.mxu0 0.0
    %526 = vmatprep.subr.mxu0 0.0
    %527 = vmatpush1.msra.mxu0 0.0
    %528 = vmatprep.mubr.f32.mxu0 0.0
    %529 = vmatmul.mubr.f32.gmra.mrb[0].mxu0 %v462
    %v530 = vpop.f32.mrb[0].mxu0
    %v531 = vadd.f32 0.0, %v530
    %v532 = vpop.f32.mrb[0].mxu0
    %533 = vdwg.mxu0
    %v535 = vrot.slane %v531, 2
    %v537 = vadd.f32 %v125, %v535
    %v538 = vxor.u32 %v537, 2147483648
    %v539 = vmul.f32 %v538, 1.442695
    %v540 = vpow.pop %v539
    %v541 = vadd.f32 %v540, 1.0
    %v542 = vrcp.pop %v541
    %v543 = vmul.f32 1.0, %v542
    %v544 = vtanh.pop %v537
    %v546 = vrot.slane %v446, 6
    %v548 = vmul.f32 %v543, %v546
    %550 = vrot.lane.b32.xlu0 %v544, 32
    %v551 = vpop.permute.xlu0 %550
    %v553 = vmul.f32 %v543, %v551
    %555 = vrot.lane.b32.xlu0 %v553, 32
    %v556 = vpop.permute.xlu0 %555
    %v558 = vadd.f32 %v548, %v556
    %v559 = vtanh.pop %v558
    %561 = vrot.lane.b32.xlu0 %v559, 32
    %v562 = vpop.permute.xlu0 %561
    %v564 = vmul.f32 %v543, %v562
    %566 = vrot.lane.b32.xlu0 %v564, 64
    %v567 = vpop.permute.xlu0 %566
    %vm569 = vcmask 261126
    %570 = vst.msk [vmem:[#allocation2] sm:$0xc0] %vm569, %v567
    %v571 = vrot.slane %v564, 6
    %572 = vrot.lane.b32.xlu0 %v571, 64
    %v573 = vpop.permute.xlu0 %572
    %v574 = vsel %vm133, %v573, 0
    %576 = vmatprep.subr.mxu0 0.0
    %577 = vmatpush1.msra.mxu0 %v36
    %578 = vmatprep.subr.mxu0 0.0
    %579 = vmatpush1.msra.mxu0 %v37
    %580 = vmatprep.subr.mxu0 0.0
    %581 = vmatpush1.msra.mxu0 %v38
    %582 = vmatprep.subr.mxu0 0.0
    %583 = vmatpush1.msra.mxu0 %v39
    %584 = vmatprep.subr.mxu0 0.0
    %585 = vmatpush1.msra.mxu0 0.0
    %586 = vmatprep.subr.mxu0 0.0
    %587 = vmatpush1.msra.mxu0 0.0
    %588 = vmatprep.subr.mxu0 0.0
    %589 = vmatpush1.msra.mxu0 0.0
    %590 = vmatprep.subr.mxu0 0.0
    %591 = vmatpush1.msra.mxu0 0.0
    %592 = vmatprep.subr.mxu0 0.0
    %593 = vmatpush1.msra.mxu0 0.0
    %594 = vmatprep.subr.mxu0 0.0
    %595 = vmatpush1.msra.mxu0 0.0
    %596 = vmatprep.subr.mxu0 0.0
    %597 = vmatpush1.msra.mxu0 0.0
    %598 = vmatprep.subr.mxu0 0.0
    %599 = vmatpush1.msra.mxu0 0.0
    %600 = vmatprep.subr.mxu0 0.0
    %601 = vmatpush1.msra.mxu0 0.0
    %602 = vmatprep.subr.mxu0 0.0
    %603 = vmatpush1.msra.mxu0 0.0
    %604 = vmatprep.subr.mxu0 0.0
    %605 = vmatpush1.msra.mxu0 0.0
    %606 = vmatprep.subr.mxu0 0.0
    %607 = vmatpush1.msra.mxu0 0.0
    %608 = vmatprep.subr.mxu0 0.0
    %609 = vmatpush1.msra.mxu0 0.0
    %610 = vmatprep.subr.mxu0 0.0
    %611 = vmatpush1.msra.mxu0 0.0
    %612 = vmatprep.subr.mxu0 0.0
    %613 = vmatpush1.msra.mxu0 0.0
    %614 = vmatprep.subr.mxu0 0.0
    %615 = vmatpush1.msra.mxu0 0.0
    %616 = vmatprep.subr.mxu0 0.0
    %617 = vmatpush1.msra.mxu0 0.0
    %618 = vmatprep.subr.mxu0 0.0
    %619 = vmatpush1.msra.mxu0 0.0
    %620 = vmatprep.subr.mxu0 0.0
    %621 = vmatpush1.msra.mxu0 0.0
    %622 = vmatprep.subr.mxu0 0.0
    %623 = vmatpush1.msra.mxu0 0.0
    %624 = vmatprep.subr.mxu0 0.0
    %625 = vmatpush1.msra.mxu0 0.0
    %626 = vmatprep.subr.mxu0 0.0
    %627 = vmatpush1.msra.mxu0 0.0
    %628 = vmatprep.subr.mxu0 0.0
    %629 = vmatpush1.msra.mxu0 0.0
    %630 = vmatprep.subr.mxu0 0.0
    %631 = vmatpush1.msra.mxu0 0.0
    %632 = vmatprep.subr.mxu0 0.0
    %633 = vmatpush1.msra.mxu0 0.0
    %634 = vmatprep.subr.mxu0 0.0
    %635 = vmatpush1.msra.mxu0 0.0
    %636 = vmatprep.subr.mxu0 0.0
    %637 = vmatpush1.msra.mxu0 0.0
    %638 = vmatprep.subr.mxu0 0.0
    %639 = vmatpush1.msra.mxu0 0.0
    %640 = vmatprep.mubr.f32.mxu0 0.0
    %641 = vmatmul.mubr.f32.gmra.mrb[0].mxu0 %v574
    %v642 = vpop.f32.mrb[0].mxu0
    %v643 = vadd.f32 0.0, %v642
    %v644 = vpop.f32.mrb[0].mxu0
    %645 = vdwg.mxu0
    %v646 = vadd.f32 %v130, %v643
    %v647 = vxor.u32 %v646, 2147483648
    %v648 = vmul.f32 %v647, 1.442695
    %v649 = vpow.pop %v648
    %v650 = vadd.f32 %v649, 1.0
    %v651 = vrcp.pop %v650
    %v652 = vmul.f32 1.0, %v651
    %v653 = vtanh.pop %v646
    %v655 = vrot.slane %v558, 6
    %v657 = vmul.f32 %v652, %v655
    %659 = vrot.lane.b32.xlu0 %v653, 32
    %v660 = vpop.permute.xlu0 %659
    %v662 = vmul.f32 %v652, %v660
    %664 = vrot.lane.b32.xlu0 %v662, 32
    %v665 = vpop.permute.xlu0 %664
    %v667 = vadd.f32 %v657, %v665
    %v668 = vtanh.pop %v667
    %670 = vrot.lane.b32.xlu0 %v668, 32
    %v671 = vpop.permute.xlu0 %670
    %v673 = vmul.f32 %v652, %v671
    %675 = vrot.lane.b32.xlu0 %v673, 64
    %v676 = vpop.permute.xlu0 %675
    %678 = vst.msk [vmem:[#allocation2 + $0x8] sm:$0x3] %vm236, %v676
    %v679 = vsel %vm133, %v676, 0
    %681 = vmatprep.subr.mxu0 0.0
    %682 = vmatpush1.msra.mxu0 %v36
    %683 = vmatprep.subr.mxu0 0.0
    %684 = vmatpush1.msra.mxu0 %v37
    %685 = vmatprep.subr.mxu0 0.0
    %686 = vmatpush1.msra.mxu0 %v38
    %687 = vmatprep.subr.mxu0 0.0
    %688 = vmatpush1.msra.mxu0 %v39
    %689 = vmatprep.subr.mxu0 0.0
    %690 = vmatpush1.msra.mxu0 0.0
    %691 = vmatprep.subr.mxu0 0.0
    %692 = vmatpush1.msra.mxu0 0.0
    %693 = vmatprep.subr.mxu0 0.0
    %694 = vmatpush1.msra.mxu0 0.0
    %695 = vmatprep.subr.mxu0 0.0
    %696 = vmatpush1.msra.mxu0 0.0
    %697 = vmatprep.subr.mxu0 0.0
    %698 = vmatpush1.msra.mxu0 0.0
    %699 = vmatprep.subr.mxu0 0.0
    %700 = vmatpush1.msra.mxu0 0.0
    %701 = vmatprep.subr.mxu0 0.0
    %702 = vmatpush1.msra.mxu0 0.0
    %703 = vmatprep.subr.mxu0 0.0
    %704 = vmatpush1.msra.mxu0 0.0
    %705 = vmatprep.subr.mxu0 0.0
    %706 = vmatpush1.msra.mxu0 0.0
    %707 = vmatprep.subr.mxu0 0.0
    %708 = vmatpush1.msra.mxu0 0.0
    %709 = vmatprep.subr.mxu0 0.0
    %710 = vmatpush1.msra.mxu0 0.0
    %711 = vmatprep.subr.mxu0 0.0
    %712 = vmatpush1.msra.mxu0 0.0
    %713 = vmatprep.subr.mxu0 0.0
    %714 = vmatpush1.msra.mxu0 0.0
    %715 = vmatprep.subr.mxu0 0.0
    %716 = vmatpush1.msra.mxu0 0.0
    %717 = vmatprep.subr.mxu0 0.0
    %718 = vmatpush1.msra.mxu0 0.0
    %719 = vmatprep.subr.mxu0 0.0
    %720 = vmatpush1.msra.mxu0 0.0
    %721 = vmatprep.subr.mxu0 0.0
    %722 = vmatpush1.msra.mxu0 0.0
    %723 = vmatprep.subr.mxu0 0.0
    %724 = vmatpush1.msra.mxu0 0.0
    %725 = vmatprep.subr.mxu0 0.0
    %726 = vmatpush1.msra.mxu0 0.0
    %727 = vmatprep.subr.mxu0 0.0
    %728 = vmatpush1.msra.mxu0 0.0
    %729 = vmatprep.subr.mxu0 0.0
    %730 = vmatpush1.msra.mxu0 0.0
    %731 = vmatprep.subr.mxu0 0.0
    %732 = vmatpush1.msra.mxu0 0.0
    %733 = vmatprep.subr.mxu0 0.0
    %734 = vmatpush1.msra.mxu0 0.0
    %735 = vmatprep.subr.mxu0 0.0
    %736 = vmatpush1.msra.mxu0 0.0
    %737 = vmatprep.subr.mxu0 0.0
    %738 = vmatpush1.msra.mxu0 0.0
    %739 = vmatprep.subr.mxu0 0.0
    %740 = vmatpush1.msra.mxu0 0.0
    %741 = vmatprep.subr.mxu0 0.0
    %742 = vmatpush1.msra.mxu0 0.0
    %743 = vmatprep.subr.mxu0 0.0
    %744 = vmatpush1.msra.mxu0 0.0
    %745 = vmatprep.mubr.f32.mxu0 0.0
    %746 = vmatmul.mubr.f32.gmra.mrb[0].mxu0 %v679
    %v747 = vpop.f32.mrb[0].mxu0
    %v748 = vadd.f32 0.0, %v747
    %v749 = vpop.f32.mrb[0].mxu0
    %750 = vdwg.mxu0
    %v752 = vrot.slane %v748, 6
    %v754 = vadd.f32 %v130, %v752
    %v755 = vxor.u32 %v754, 2147483648
    %v756 = vmul.f32 %v755, 1.442695
    %v757 = vpow.pop %v756
    %v758 = vadd.f32 %v757, 1.0
    %v759 = vrcp.pop %v758
    %v760 = vmul.f32 1.0, %v759
    %v761 = vtanh.pop %v754
    %v763 = vrot.slane %v667, 6
    %v765 = vmul.f32 %v760, %v763
    %767 = vrot.lane.b32.xlu0 %v761, 32
    %v768 = vpop.permute.xlu0 %767
    %v770 = vmul.f32 %v760, %v768
    %772 = vrot.lane.b32.xlu0 %v770, 32
    %v773 = vpop.permute.xlu0 %772
    %v775 = vadd.f32 %v765, %v773
    %v776 = vtanh.pop %v775
    %778 = vrot.lane.b32.xlu0 %v776, 32
    %v779 = vpop.permute.xlu0 %778
    %v781 = vmul.f32 %v760, %v779
    %783 = vrot.lane.b32.xlu0 %v781, 64
    %v784 = vpop.permute.xlu0 %783
    %786 = vst.msk [vmem:[#allocation2 + $0x8] sm:$0xc] %vm345, %v784
    %v787 = vrot.slane %v781, 2
    %788 = vrot.lane.b32.xlu0 %v787, 64
    %v789 = vpop.permute.xlu0 %788
    %v790 = vsel %vm133, %v789, 0
    %792 = vmatprep.subr.mxu0 0.0
    %793 = vmatpush1.msra.mxu0 %v36
    %794 = vmatprep.subr.mxu0 0.0
    %795 = vmatpush1.msra.mxu0 %v37
    %796 = vmatprep.subr.mxu0 0.0
    %797 = vmatpush1.msra.mxu0 %v38
    %798 = vmatprep.subr.mxu0 0.0
    %799 = vmatpush1.msra.mxu0 %v39
    %800 = vmatprep.subr.mxu0 0.0
    %801 = vmatpush1.msra.mxu0 0.0
    %802 = vmatprep.subr.mxu0 0.0
    %803 = vmatpush1.msra.mxu0 0.0
    %804 = vmatprep.subr.mxu0 0.0
    %805 = vmatpush1.msra.mxu0 0.0
    %806 = vmatprep.subr.mxu0 0.0
    %807 = vmatpush1.msra.mxu0 0.0
    %808 = vmatprep.subr.mxu0 0.0
    %809 = vmatpush1.msra.mxu0 0.0
    %810 = vmatprep.subr.mxu0 0.0
    %811 = vmatpush1.msra.mxu0 0.0
    %812 = vmatprep.subr.mxu0 0.0
    %813 = vmatpush1.msra.mxu0 0.0
    %814 = vmatprep.subr.mxu0 0.0
    %815 = vmatpush1.msra.mxu0 0.0
    %816 = vmatprep.subr.mxu0 0.0
    %817 = vmatpush1.msra.mxu0 0.0
    %818 = vmatprep.subr.mxu0 0.0
    %819 = vmatpush1.msra.mxu0 0.0
    %820 = vmatprep.subr.mxu0 0.0
    %821 = vmatpush1.msra.mxu0 0.0
    %822 = vmatprep.subr.mxu0 0.0
    %823 = vmatpush1.msra.mxu0 0.0
    %824 = vmatprep.subr.mxu0 0.0
    %825 = vmatpush1.msra.mxu0 0.0
    %826 = vmatprep.subr.mxu0 0.0
    %827 = vmatpush1.msra.mxu0 0.0
    %828 = vmatprep.subr.mxu0 0.0
    %829 = vmatpush1.msra.mxu0 0.0
    %830 = vmatprep.subr.mxu0 0.0
    %831 = vmatpush1.msra.mxu0 0.0
    %832 = vmatprep.subr.mxu0 0.0
    %833 = vmatpush1.msra.mxu0 0.0
    %834 = vmatprep.subr.mxu0 0.0
    %835 = vmatpush1.msra.mxu0 0.0
    %836 = vmatprep.subr.mxu0 0.0
    %837 = vmatpush1.msra.mxu0 0.0
    %838 = vmatprep.subr.mxu0 0.0
    %839 = vmatpush1.msra.mxu0 0.0
    %840 = vmatprep.subr.mxu0 0.0
    %841 = vmatpush1.msra.mxu0 0.0
    %842 = vmatprep.subr.mxu0 0.0
    %843 = vmatpush1.msra.mxu0 0.0
    %844 = vmatprep.subr.mxu0 0.0
    %845 = vmatpush1.msra.mxu0 0.0
    %846 = vmatprep.subr.mxu0 0.0
    %847 = vmatpush1.msra.mxu0 0.0
    %848 = vmatprep.subr.mxu0 0.0
    %849 = vmatpush1.msra.mxu0 0.0
    %850 = vmatprep.subr.mxu0 0.0
    %851 = vmatpush1.msra.mxu0 0.0
    %852 = vmatprep.subr.mxu0 0.0
    %853 = vmatpush1.msra.mxu0 0.0
    %854 = vmatprep.subr.mxu0 0.0
    %855 = vmatpush1.msra.mxu0 0.0
    %856 = vmatprep.mubr.f32.mxu0 0.0
    %857 = vmatmul.mubr.f32.gmra.mrb[0].mxu0 %v790
    %v858 = vpop.f32.mrb[0].mxu0
    %v859 = vadd.f32 0.0, %v858
    %v860 = vpop.f32.mrb[0].mxu0
    %861 = vdwg.mxu0
    %v863 = vrot.slane %v859, 4
    %v865 = vadd.f32 %v130, %v863
    %v866 = vxor.u32 %v865, 2147483648
    %v867 = vmul.f32 %v866, 1.442695
    %v868 = vpow.pop %v867
    %v869 = vadd.f32 %v868, 1.0
    %v870 = vrcp.pop %v869
    %v871 = vmul.f32 1.0, %v870
    %v872 = vtanh.pop %v865
    %v874 = vrot.slane %v775, 6
    %v876 = vmul.f32 %v871, %v874
    %878 = vrot.lane.b32.xlu0 %v872, 32
    %v879 = vpop.permute.xlu0 %878
    %v881 = vmul.f32 %v871, %v879
    %883 = vrot.lane.b32.xlu0 %v881, 32
    %v884 = vpop.permute.xlu0 %883
    %v886 = vadd.f32 %v876, %v884
    %v887 = vtanh.pop %v886
    %889 = vrot.lane.b32.xlu0 %v887, 32
    %v890 = vpop.permute.xlu0 %889
    %v892 = vmul.f32 %v871, %v890
    %894 = vrot.lane.b32.xlu0 %v892, 64
    %v895 = vpop.permute.xlu0 %894
    %897 = vst.msk [vmem:[#allocation2 + $0x8] sm:$0x30] %vm457, %v895
    %v898 = vrot.slane %v892, 4
    %899 = vrot.lane.b32.xlu0 %v898, 64
    %v900 = vpop.permute.xlu0 %899
    %v901 = vsel %vm133, %v900, 0
    %903 = vmatprep.subr.mxu0 0.0
    %904 = vmatpush1.msra.mxu0 %v36
    %905 = vmatprep.subr.mxu0 0.0
    %906 = vmatpush1.msra.mxu0 %v37
    %907 = vmatprep.subr.mxu0 0.0
    %908 = vmatpush1.msra.mxu0 %v38
    %909 = vmatprep.subr.mxu0 0.0
    %910 = vmatpush1.msra.mxu0 %v39
    %911 = vmatprep.subr.mxu0 0.0
    %912 = vmatpush1.msra.mxu0 0.0
    %913 = vmatprep.subr.mxu0 0.0
    %914 = vmatpush1.msra.mxu0 0.0
    %915 = vmatprep.subr.mxu0 0.0
    %916 = vmatpush1.msra.mxu0 0.0
    %917 = vmatprep.subr.mxu0 0.0
    %918 = vmatpush1.msra.mxu0 0.0
    %919 = vmatprep.subr.mxu0 0.0
    %920 = vmatpush1.msra.mxu0 0.0
    %921 = vmatprep.subr.mxu0 0.0
    %922 = vmatpush1.msra.mxu0 0.0
    %923 = vmatprep.subr.mxu0 0.0
    %924 = vmatpush1.msra.mxu0 0.0
    %925 = vmatprep.subr.mxu0 0.0
    %926 = vmatpush1.msra.mxu0 0.0
    %927 = vmatprep.subr.mxu0 0.0
    %928 = vmatpush1.msra.mxu0 0.0
    %929 = vmatprep.subr.mxu0 0.0
    %930 = vmatpush1.msra.mxu0 0.0
    %931 = vmatprep.subr.mxu0 0.0
    %932 = vmatpush1.msra.mxu0 0.0
    %933 = vmatprep.subr.mxu0 0.0
    %934 = vmatpush1.msra.mxu0 0.0
    %935 = vmatprep.subr.mxu0 0.0
    %936 = vmatpush1.msra.mxu0 0.0
    %937 = vmatprep.subr.mxu0 0.0
    %938 = vmatpush1.msra.mxu0 0.0
    %939 = vmatprep.subr.mxu0 0.0
    %940 = vmatpush1.msra.mxu0 0.0
    %941 = vmatprep.subr.mxu0 0.0
    %942 = vmatpush1.msra.mxu0 0.0
    %943 = vmatprep.subr.mxu0 0.0
    %944 = vmatpush1.msra.mxu0 0.0
    %945 = vmatprep.subr.mxu0 0.0
    %946 = vmatpush1.msra.mxu0 0.0
    %947 = vmatprep.subr.mxu0 0.0
    %948 = vmatpush1.msra.mxu0 0.0
    %949 = vmatprep.subr.mxu0 0.0
    %950 = vmatpush1.msra.mxu0 0.0
    %951 = vmatprep.subr.mxu0 0.0
    %952 = vmatpush1.msra.mxu0 0.0
    %953 = vmatprep.subr.mxu0 0.0
    %954 = vmatpush1.msra.mxu0 0.0
    %955 = vmatprep.subr.mxu0 0.0
    %956 = vmatpush1.msra.mxu0 0.0
    %957 = vmatprep.subr.mxu0 0.0
    %958 = vmatpush1.msra.mxu0 0.0
    %959 = vmatprep.subr.mxu0 0.0
    %960 = vmatpush1.msra.mxu0 0.0
    %961 = vmatprep.subr.mxu0 0.0
    %962 = vmatpush1.msra.mxu0 0.0
    %963 = vmatprep.subr.mxu0 0.0
    %964 = vmatpush1.msra.mxu0 0.0
    %965 = vmatprep.subr.mxu0 0.0
    %966 = vmatpush1.msra.mxu0 0.0
    %967 = vmatprep.mubr.f32.mxu0 0.0
    %968 = vmatmul.mubr.f32.gmra.mrb[0].mxu0 %v901
    %v969 = vpop.f32.mrb[0].mxu0
    %v970 = vadd.f32 0.0, %v969
    %v971 = vpop.f32.mrb[0].mxu0
    %972 = vdwg.mxu0
    %v974 = vrot.slane %v970, 2
    %v976 = vadd.f32 %v130, %v974
    %v977 = vxor.u32 %v976, 2147483648
    %v978 = vmul.f32 %v977, 1.442695
    %v979 = vpow.pop %v978
    %v980 = vadd.f32 %v979, 1.0
    %v981 = vrcp.pop %v980
    %v982 = vmul.f32 1.0, %v981
    %v983 = vtanh.pop %v976
    %v985 = vrot.slane %v886, 6
    %v987 = vmul.f32 %v982, %v985
    %989 = vrot.lane.b32.xlu0 %v983, 32
    %v990 = vpop.permute.xlu0 %989
    %v992 = vmul.f32 %v982, %v990
    %994 = vrot.lane.b32.xlu0 %v992, 32
    %v995 = vpop.permute.xlu0 %994
    %v997 = vadd.f32 %v987, %v995
    %v998 = vtanh.pop %v997
    %1000 = vrot.lane.b32.xlu0 %v998, 32
    %v1001 = vpop.permute.xlu0 %1000
    %v1003 = vmul.f32 %v982, %v1001
    %1005 = vrot.lane.b32.xlu0 %v1003, 64
    %v1006 = vpop.permute.xlu0 %1005
    %1008 = vst.msk [vmem:[#allocation2 + $0x8] sm:$0xc0] %vm569, %v1006
    %v1009 = vld [vmem:[#allocation2] sm:$0xff]
    %v1010 = vld [vmem:[#allocation2 + $0x8] sm:$0xff]
    %v1011 = vld [vmem:[%s4] sm:$0xff]
    %v1012 = vld [vmem:[%s4 + $0x8] sm:$0xff]
    %v1013 = vld [vmem:[%s4 + $0x10] sm:$0xff]
    %v1014 = vld [vmem:[%s4 + $0x18] sm:$0xff]
    %v1015 = vld [vmem:[%s5] sm:$0xff]
    %v1016 = vld [vmem:[%s5 + $0x8] sm:$0xff]
    %v1017 = vld [vmem:[%s5 + $0x10] sm:$0xff]
    %v1018 = vld [vmem:[%s5 + $0x18] sm:$0xff]
    %v1019 = vld [vmem:[%s6] sm:$0x1]
    %v1021 = vlaneseq
    %v1022 = vshrl.u32 %v1021, 7
    %v1023 = vsub.s32 0, %v1022
    %v1024 = vrot.slane %v1019, %v1023
    %v1027 = vsel %vm133, %v1009, 0
    %v1030 = vsel %vm133, %v1010, 0
    %1032 = vmatprep.subr.mxu0 0.0
    %1033 = vmatpush1.msra.mxu0 %v1011
    %1034 = vmatprep.subr.mxu0 0.0
    %1035 = vmatpush1.msra.mxu0 %v1012
    %1036 = vmatprep.subr.mxu0 0.0
    %1037 = vmatpush1.msra.mxu0 %v1013
    %1038 = vmatprep.subr.mxu0 0.0
    %1039 = vmatpush1.msra.mxu0 %v1014
    %1040 = vmatprep.subr.mxu0 0.0
    %1041 = vmatpush1.msra.mxu0 0.0
    %1042 = vmatprep.subr.mxu0 0.0
    %1043 = vmatpush1.msra.mxu0 0.0
    %1044 = vmatprep.subr.mxu0 0.0
    %1045 = vmatpush1.msra.mxu0 0.0
    %1046 = vmatprep.subr.mxu0 0.0
    %1047 = vmatpush1.msra.mxu0 0.0
    %1048 = vmatprep.subr.mxu0 0.0
    %1049 = vmatpush1.msra.mxu0 0.0
    %1050 = vmatprep.subr.mxu0 0.0
    %1051 = vmatpush1.msra.mxu0 0.0
    %1052 = vmatprep.subr.mxu0 0.0
    %1053 = vmatpush1.msra.mxu0 0.0
    %1054 = vmatprep.subr.mxu0 0.0
    %1055 = vmatpush1.msra.mxu0 0.0
    %1056 = vmatprep.subr.mxu0 0.0
    %1057 = vmatpush1.msra.mxu0 0.0
    %1058 = vmatprep.subr.mxu0 0.0
    %1059 = vmatpush1.msra.mxu0 0.0
    %1060 = vmatprep.subr.mxu0 0.0
    %1061 = vmatpush1.msra.mxu0 0.0
    %1062 = vmatprep.subr.mxu0 0.0
    %1063 = vmatpush1.msra.mxu0 0.0
    %1064 = vmatprep.subr.mxu0 0.0
    %1065 = vmatpush1.msra.mxu0 0.0
    %1066 = vmatprep.subr.mxu0 0.0
    %1067 = vmatpush1.msra.mxu0 0.0
    %1068 = vmatprep.subr.mxu0 0.0
    %1069 = vmatpush1.msra.mxu0 0.0
    %1070 = vmatprep.subr.mxu0 0.0
    %1071 = vmatpush1.msra.mxu0 0.0
    %1072 = vmatprep.subr.mxu0 0.0
    %1073 = vmatpush1.msra.mxu0 0.0
    %1074 = vmatprep.subr.mxu0 0.0
    %1075 = vmatpush1.msra.mxu0 0.0
    %1076 = vmatprep.subr.mxu0 0.0
    %1077 = vmatpush1.msra.mxu0 0.0
    %1078 = vmatprep.subr.mxu0 0.0
    %1079 = vmatpush1.msra.mxu0 0.0
    %1080 = vmatprep.subr.mxu0 0.0
    %1081 = vmatpush1.msra.mxu0 0.0
    %1082 = vmatprep.subr.mxu0 0.0
    %1083 = vmatpush1.msra.mxu0 0.0
    %1084 = vmatprep.subr.mxu0 0.0
    %1085 = vmatpush1.msra.mxu0 0.0
    %1086 = vmatprep.subr.mxu0 0.0
    %1087 = vmatpush1.msra.mxu0 0.0
    %1088 = vmatprep.subr.mxu0 0.0
    %1089 = vmatpush1.msra.mxu0 0.0
    %1090 = vmatprep.subr.mxu0 0.0
    %1091 = vmatpush1.msra.mxu0 0.0
    %1092 = vmatprep.subr.mxu0 0.0
    %1093 = vmatpush1.msra.mxu0 0.0
    %1094 = vmatprep.subr.mxu0 0.0
    %1095 = vmatpush1.msra.mxu0 0.0
    %1096 = vmatprep.mubr.f32.mxu0 0.0
    %1097 = vmatmul.mubr.f32.gmra.mrb[0].mxu0 %v1027
    %v1098 = vpop.f32.mrb[0].mxu0
    %v1099 = vadd.f32 %v1024, %v1098
    %v1100 = vpop.f32.mrb[0].mxu0
    %1101 = vmatprep.mubr.f32.mxu0 0.0
    %1102 = vmatmul.mubr.f32.gmra.mrb[0].mxu0 %v1030
    %v1103 = vpop.f32.mrb[0].mxu0
    %v1104 = vadd.f32 %v1024, %v1103
    %v1105 = vpop.f32.mrb[0].mxu0
    %1106 = vdwg.mxu0
    %1107 = vmatprep.subr.mxu0 0.0
    %1108 = vmatpush1.msra.mxu0 %v1015
    %1109 = vmatprep.subr.mxu0 0.0
    %1110 = vmatpush1.msra.mxu0 %v1016
    %1111 = vmatprep.subr.mxu0 0.0
    %1112 = vmatpush1.msra.mxu0 %v1017
    %1113 = vmatprep.subr.mxu0 0.0
    %1114 = vmatpush1.msra.mxu0 %v1018
    %1115 = vmatprep.subr.mxu0 0.0
    %1116 = vmatpush1.msra.mxu0 0.0
    %1117 = vmatprep.subr.mxu0 0.0
    %1118 = vmatpush1.msra.mxu0 0.0
    %1119 = vmatprep.subr.mxu0 0.0
    %1120 = vmatpush1.msra.mxu0 0.0
    %1121 = vmatprep.subr.mxu0 0.0
    %1122 = vmatpush1.msra.mxu0 0.0
    %1123 = vmatprep.subr.mxu0 0.0
    %1124 = vmatpush1.msra.mxu0 0.0
    %1125 = vmatprep.subr.mxu0 0.0
    %1126 = vmatpush1.msra.mxu0 0.0
    %1127 = vmatprep.subr.mxu0 0.0
    %1128 = vmatpush1.msra.mxu0 0.0
    %1129 = vmatprep.subr.mxu0 0.0
    %1130 = vmatpush1.msra.mxu0 0.0
    %1131 = vmatprep.subr.mxu0 0.0
    %1132 = vmatpush1.msra.mxu0 0.0
    %1133 = vmatprep.subr.mxu0 0.0
    %1134 = vmatpush1.msra.mxu0 0.0
    %1135 = vmatprep.subr.mxu0 0.0
    %1136 = vmatpush1.msra.mxu0 0.0
    %1137 = vmatprep.subr.mxu0 0.0
    %1138 = vmatpush1.msra.mxu0 0.0
    %1139 = vmatprep.subr.mxu0 0.0
    %1140 = vmatpush1.msra.mxu0 0.0
    %1141 = vmatprep.subr.mxu0 0.0
    %1142 = vmatpush1.msra.mxu0 0.0
    %1143 = vmatprep.subr.mxu0 0.0
    %1144 = vmatpush1.msra.mxu0 0.0
    %1145 = vmatprep.subr.mxu0 0.0
    %1146 = vmatpush1.msra.mxu0 0.0
    %1147 = vmatprep.subr.mxu0 0.0
    %1148 = vmatpush1.msra.mxu0 0.0
    %1149 = vmatprep.subr.mxu0 0.0
    %1150 = vmatpush1.msra.mxu0 0.0
    %1151 = vmatprep.subr.mxu0 0.0
    %1152 = vmatpush1.msra.mxu0 0.0
    %1153 = vmatprep.subr.mxu0 0.0
    %1154 = vmatpush1.msra.mxu0 0.0
    %1155 = vmatprep.subr.mxu0 0.0
    %1156 = vmatpush1.msra.mxu0 0.0
    %1157 = vmatprep.subr.mxu0 0.0
    %1158 = vmatpush1.msra.mxu0 0.0
    %1159 = vmatprep.subr.mxu0 0.0
    %1160 = vmatpush1.msra.mxu0 0.0
    %1161 = vmatprep.subr.mxu0 0.0
    %1162 = vmatpush1.msra.mxu0 0.0
    %1163 = vmatprep.subr.mxu0 0.0
    %1164 = vmatpush1.msra.mxu0 0.0
    %1165 = vmatprep.subr.mxu0 0.0
    %1166 = vmatpush1.msra.mxu0 0.0
    %1167 = vmatprep.subr.mxu0 0.0
    %1168 = vmatpush1.msra.mxu0 0.0
    %1169 = vmatprep.subr.mxu0 0.0
    %1170 = vmatpush1.msra.mxu0 0.0
    %1171 = vmatprep.mubr.f32.mxu0 0.0
    %1172 = vmatmul.mubr.f32.gmra.mrb[0].mxu0 %v135
    %v1173 = vpop.f32.mrb[0].mxu0
    %v1174 = vadd.f32 0.0, %v1173
    %v1175 = vpop.f32.mrb[0].mxu0
    %1176 = vdwg.mxu0
    %v1177 = vadd.f32 %v1099, %v1174
    %v1178 = vxor.u32 %v1177, 2147483648
    %v1179 = vmul.f32 %v1178, 1.442695
    %v1180 = vpow.pop %v1179
    %v1181 = vadd.f32 %v1180, 1.0
    %v1182 = vrcp.pop %v1181
    %v1183 = vmul.f32 1.0, %v1182
    %v1184 = vtanh.pop %v1177
    %v1185 = vmul.f32 %v1183, 0.0
    %1187 = vrot.lane.b32.xlu0 %v1184, 32
    %v1188 = vpop.permute.xlu0 %1187
    %v1190 = vmul.f32 %v1183, %v1188
    %1192 = vrot.lane.b32.xlu0 %v1190, 32
    %v1193 = vpop.permute.xlu0 %1192
    %v1195 = vadd.f32 %v1185, %v1193
    %v1196 = vtanh.pop %v1195
    %1198 = vrot.lane.b32.xlu0 %v1196, 32
    %v1199 = vpop.permute.xlu0 %1198
    %v1201 = vmul.f32 %v1183, %v1199
    %v1202 = vtanh.pop %v1201
    %v1203 = vld [vmem:[%s7] sm:$0xff]
    %v1204 = vld [vmem:[%s7 + $0x8] sm:$0xff]
    %v1205 = vld [vmem:[%s7 + $0x10] sm:$0xff]
    %v1206 = vld [vmem:[%s7 + $0x18] sm:$0xff]
    %1208 = vrot.lane.b32.xlu0 %v1201, 64
    %v1209 = vpop.permute.xlu0 %1208
    %v1210 = vsel %vm133, %v1209, 0
    %1212 = vmatprep.subr.mxu0 0.0
    %1213 = vmatpush1.msra.mxu0 %v1015
    %1214 = vmatprep.subr.mxu0 0.0
    %1215 = vmatpush1.msra.mxu0 %v1016
    %1216 = vmatprep.subr.mxu0 0.0
    %1217 = vmatpush1.msra.mxu0 %v1017
    %1218 = vmatprep.subr.mxu0 0.0
    %1219 = vmatpush1.msra.mxu0 %v1018
    %1220 = vmatprep.subr.mxu0 0.0
    %1221 = vmatpush1.msra.mxu0 0.0
    %1222 = vmatprep.subr.mxu0 0.0
    %1223 = vmatpush1.msra.mxu0 0.0
    %1224 = vmatprep.subr.mxu0 0.0
    %1225 = vmatpush1.msra.mxu0 0.0
    %1226 = vmatprep.subr.mxu0 0.0
    %1227 = vmatpush1.msra.mxu0 0.0
    %1228 = vmatprep.subr.mxu0 0.0
    %1229 = vmatpush1.msra.mxu0 0.0
    %1230 = vmatprep.subr.mxu0 0.0
    %1231 = vmatpush1.msra.mxu0 0.0
    %1232 = vmatprep.subr.mxu0 0.0
    %1233 = vmatpush1.msra.mxu0 0.0
    %1234 = vmatprep.subr.mxu0 0.0
    %1235 = vmatpush1.msra.mxu0 0.0
    %1236 = vmatprep.subr.mxu0 0.0
    %1237 = vmatpush1.msra.mxu0 0.0
    %1238 = vmatprep.subr.mxu0 0.0
    %1239 = vmatpush1.msra.mxu0 0.0
    %1240 = vmatprep.subr.mxu0 0.0
    %1241 = vmatpush1.msra.mxu0 0.0
    %1242 = vmatprep.subr.mxu0 0.0
    %1243 = vmatpush1.msra.mxu0 0.0
    %1244 = vmatprep.subr.mxu0 0.0
    %1245 = vmatpush1.msra.mxu0 0.0
    %1246 = vmatprep.subr.mxu0 0.0
    %1247 = vmatpush1.msra.mxu0 0.0
    %1248 = vmatprep.subr.mxu0 0.0
    %1249 = vmatpush1.msra.mxu0 0.0
    %1250 = vmatprep.subr.mxu0 0.0
    %1251 = vmatpush1.msra.mxu0 0.0
    %1252 = vmatprep.subr.mxu0 0.0
    %1253 = vmatpush1.msra.mxu0 0.0
    %1254 = vmatprep.subr.mxu0 0.0
    %1255 = vmatpush1.msra.mxu0 0.0
    %1256 = vmatprep.subr.mxu0 0.0
    %1257 = vmatpush1.msra.mxu0 0.0
    %1258 = vmatprep.subr.mxu0 0.0
    %1259 = vmatpush1.msra.mxu0 0.0
    %1260 = vmatprep.subr.mxu0 0.0
    %1261 = vmatpush1.msra.mxu0 0.0
    %1262 = vmatprep.subr.mxu0 0.0
    %1263 = vmatpush1.msra.mxu0 0.0
    %1264 = vmatprep.subr.mxu0 0.0
    %1265 = vmatpush1.msra.mxu0 0.0
    %1266 = vmatprep.subr.mxu0 0.0
    %1267 = vmatpush1.msra.mxu0 0.0
    %1268 = vmatprep.subr.mxu0 0.0
    %1269 = vmatpush1.msra.mxu0 0.0
    %1270 = vmatprep.subr.mxu0 0.0
    %1271 = vmatpush1.msra.mxu0 0.0
    %1272 = vmatprep.subr.mxu0 0.0
    %1273 = vmatpush1.msra.mxu0 0.0
    %1274 = vmatprep.subr.mxu0 0.0
    %1275 = vmatpush1.msra.mxu0 0.0
    %1276 = vmatprep.mubr.f32.mxu0 0.0
    %1277 = vmatmul.mubr.f32.gmra.mrb[0].mxu0 %v1210
    %v1278 = vpop.f32.mrb[0].mxu0
    %v1279 = vadd.f32 0.0, %v1278
    %v1280 = vpop.f32.mrb[0].mxu0
    %1281 = vdwg.mxu0
    %v1283 = vrot.slane %v1279, 6
    %v1285 = vadd.f32 %v1099, %v1283
    %v1286 = vxor.u32 %v1285, 2147483648
    %v1287 = vmul.f32 %v1286, 1.442695
    %v1288 = vpow.pop %v1287
    %v1289 = vadd.f32 %v1288, 1.0
    %v1290 = vrcp.pop %v1289
    %v1291 = vmul.f32 1.0, %v1290
    %v1292 = vtanh.pop %v1285
    %v1294 = vrot.slane %v1195, 6
    %v1296 = vmul.f32 %v1291, %v1294
    %1298 = vrot.lane.b32.xlu0 %v1292, 32
    %v1299 = vpop.permute.xlu0 %1298
    %v1301 = vmul.f32 %v1291, %v1299
    %1303 = vrot.lane.b32.xlu0 %v1301, 32
    %v1304 = vpop.permute.xlu0 %1303
    %v1306 = vadd.f32 %v1296, %v1304
    %v1307 = vtanh.pop %v1306
    %1309 = vrot.lane.b32.xlu0 %v1307, 32
    %v1310 = vpop.permute.xlu0 %1309
    %v1312 = vmul.f32 %v1291, %v1310
    %v1313 = vtanh.pop %v1312
    %v1314 = vld [vmem:[%s7 + $0x20] sm:$0xff]
    %v1315 = vld [vmem:[%s7 + $0x28] sm:$0xff]
    %v1316 = vld [vmem:[%s7 + $0x30] sm:$0xff]
    %v1317 = vld [vmem:[%s7 + $0x38] sm:$0xff]
    %v1319 = vrot.slane %v1313, 2
    %1320 = vrot.lane.b32.xlu0 %v1319, 64
    %v1321 = vpop.permute.xlu0 %1320
    %v1322 = vsel %vm133, %v1321, 0
    %1324 = vmatprep.subr.mxu0 0.0
    %1325 = vmatpush1.msra.mxu0 %v1314
    %1326 = vmatprep.subr.mxu0 0.0
    %1327 = vmatpush1.msra.mxu0 %v1315
    %1328 = vmatprep.subr.mxu0 0.0
    %1329 = vmatpush1.msra.mxu0 %v1316
    %1330 = vmatprep.subr.mxu0 0.0
    %1331 = vmatpush1.msra.mxu0 %v1317
    %1332 = vmatprep.subr.mxu0 0.0
    %1333 = vmatpush1.msra.mxu0 0.0
    %1334 = vmatprep.subr.mxu0 0.0
    %1335 = vmatpush1.msra.mxu0 0.0
    %1336 = vmatprep.subr.mxu0 0.0
    %1337 = vmatpush1.msra.mxu0 0.0
    %1338 = vmatprep.subr.mxu0 0.0
    %1339 = vmatpush1.msra.mxu0 0.0
    %1340 = vmatprep.subr.mxu0 0.0
    %1341 = vmatpush1.msra.mxu0 0.0
    %1342 = vmatprep.subr.mxu0 0.0
    %1343 = vmatpush1.msra.mxu0 0.0
    %1344 = vmatprep.subr.mxu0 0.0
    %1345 = vmatpush1.msra.mxu0 0.0
    %1346 = vmatprep.subr.mxu0 0.0
    %1347 = vmatpush1.msra.mxu0 0.0
    %1348 = vmatprep.subr.mxu0 0.0
    %1349 = vmatpush1.msra.mxu0 0.0
    %1350 = vmatprep.subr.mxu0 0.0
    %1351 = vmatpush1.msra.mxu0 0.0
    %1352 = vmatprep.subr.mxu0 0.0
    %1353 = vmatpush1.msra.mxu0 0.0
    %1354 = vmatprep.subr.mxu0 0.0
    %1355 = vmatpush1.msra.mxu0 0.0
    %1356 = vmatprep.subr.mxu0 0.0
    %1357 = vmatpush1.msra.mxu0 0.0
    %1358 = vmatprep.subr.mxu0 0.0
    %1359 = vmatpush1.msra.mxu0 0.0
    %1360 = vmatprep.subr.mxu0 0.0
    %1361 = vmatpush1.msra.mxu0 0.0
    %1362 = vmatprep.subr.mxu0 0.0
    %1363 = vmatpush1.msra.mxu0 0.0
    %1364 = vmatprep.subr.mxu0 0.0
    %1365 = vmatpush1.msra.mxu0 0.0
    %1366 = vmatprep.subr.mxu0 0.0
    %1367 = vmatpush1.msra.mxu0 0.0
    %1368 = vmatprep.subr.mxu0 0.0
    %1369 = vmatpush1.msra.mxu0 0.0
    %1370 = vmatprep.subr.mxu0 0.0
    %1371 = vmatpush1.msra.mxu0 0.0
    %1372 = vmatprep.subr.mxu0 0.0
    %1373 = vmatpush1.msra.mxu0 0.0
    %1374 = vmatprep.subr.mxu0 0.0
    %1375 = vmatpush1.msra.mxu0 0.0
    %1376 = vmatprep.subr.mxu0 0.0
    %1377 = vmatpush1.msra.mxu0 0.0
    %1378 = vmatprep.subr.mxu0 0.0
    %1379 = vmatpush1.msra.mxu0 0.0
    %1380 = vmatprep.subr.mxu0 0.0
    %1381 = vmatpush1.msra.mxu0 0.0
    %1382 = vmatprep.subr.mxu0 0.0
    %1383 = vmatpush1.msra.mxu0 0.0
    %1384 = vmatprep.subr.mxu0 0.0
    %1385 = vmatpush1.msra.mxu0 0.0
    %1386 = vmatprep.subr.mxu0 0.0
    %1387 = vmatpush1.msra.mxu0 0.0
    %1388 = vmatprep.mubr.f32.mxu0 0.0
    %1389 = vmatmul.mubr.f32.gmra.mrb[0].mxu0 %v1322
    %v1390 = vpop.f32.mrb[0].mxu0
    %v1391 = vadd.f32 0.0, %v1390
    %v1392 = vpop.f32.mrb[0].mxu0
    %1393 = vdwg.mxu0
    %1395 = vrot.lane.b32.xlu0 %v1202, 64
    %v1396 = vpop.permute.xlu0 %1395
    %v1397 = vsel %vm133, %v1396, 0
    %1399 = vmatprep.subr.mxu0 0.0
    %1400 = vmatpush1.msra.mxu0 %v1203
    %1401 = vmatprep.subr.mxu0 0.0
    %1402 = vmatpush1.msra.mxu0 %v1204
    %1403 = vmatprep.subr.mxu0 0.0
    %1404 = vmatpush1.msra.mxu0 %v1205
    %1405 = vmatprep.subr.mxu0 0.0
    %1406 = vmatpush1.msra.mxu0 %v1206
    %1407 = vmatprep.subr.mxu0 0.0
    %1408 = vmatpush1.msra.mxu0 0.0
    %1409 = vmatprep.subr.mxu0 0.0
    %1410 = vmatpush1.msra.mxu0 0.0
    %1411 = vmatprep.subr.mxu0 0.0
    %1412 = vmatpush1.msra.mxu0 0.0
    %1413 = vmatprep.subr.mxu0 0.0
    %1414 = vmatpush1.msra.mxu0 0.0
    %1415 = vmatprep.subr.mxu0 0.0
    %1416 = vmatpush1.msra.mxu0 0.0
    %1417 = vmatprep.subr.mxu0 0.0
    %1418 = vmatpush1.msra.mxu0 0.0
    %1419 = vmatprep.subr.mxu0 0.0
    %1420 = vmatpush1.msra.mxu0 0.0
    %1421 = vmatprep.subr.mxu0 0.0
    %1422 = vmatpush1.msra.mxu0 0.0
    %1423 = vmatprep.subr.mxu0 0.0
    %1424 = vmatpush1.msra.mxu0 0.0
    %1425 = vmatprep.subr.mxu0 0.0
    %1426 = vmatpush1.msra.mxu0 0.0
    %1427 = vmatprep.subr.mxu0 0.0
    %1428 = vmatpush1.msra.mxu0 0.0
    %1429 = vmatprep.subr.mxu0 0.0
    %1430 = vmatpush1.msra.mxu0 0.0
    %1431 = vmatprep.subr.mxu0 0.0
    %1432 = vmatpush1.msra.mxu0 0.0
    %1433 = vmatprep.subr.mxu0 0.0
    %1434 = vmatpush1.msra.mxu0 0.0
    %1435 = vmatprep.subr.mxu0 0.0
    %1436 = vmatpush1.msra.mxu0 0.0
    %1437 = vmatprep.subr.mxu0 0.0
    %1438 = vmatpush1.msra.mxu0 0.0
    %1439 = vmatprep.subr.mxu0 0.0
    %1440 = vmatpush1.msra.mxu0 0.0
    %1441 = vmatprep.subr.mxu0 0.0
    %1442 = vmatpush1.msra.mxu0 0.0
    %1443 = vmatprep.subr.mxu0 0.0
    %1444 = vmatpush1.msra.mxu0 0.0
    %1445 = vmatprep.subr.mxu0 0.0
    %1446 = vmatpush1.msra.mxu0 0.0
    %1447 = vmatprep.subr.mxu0 0.0
    %1448 = vmatpush1.msra.mxu0 0.0
    %1449 = vmatprep.subr.mxu0 0.0
    %1450 = vmatpush1.msra.mxu0 0.0
    %1451 = vmatprep.subr.mxu0 0.0
    %1452 = vmatpush1.msra.mxu0 0.0
    %1453 = vmatprep.subr.mxu0 0.0
    %1454 = vmatpush1.msra.mxu0 0.0
    %1455 = vmatprep.subr.mxu0 0.0
    %1456 = vmatpush1.msra.mxu0 0.0
    %1457 = vmatprep.subr.mxu0 0.0
    %1458 = vmatpush1.msra.mxu0 0.0
    %1459 = vmatprep.subr.mxu0 0.0
    %1460 = vmatpush1.msra.mxu0 0.0
    %1461 = vmatprep.subr.mxu0 0.0
    %1462 = vmatpush1.msra.mxu0 0.0
    %1463 = vmatprep.mubr.f32.mxu0 0.0
    %1464 = vmatmul.mubr.f32.gmra.mrb[0].mxu0 %v1397
    %v1465 = vpop.f32.mrb[0].mxu0
    %v1466 = vadd.f32 %v1391, %v1465
    %v1467 = vpop.f32.mrb[0].mxu0
    %1468 = vdwg.mxu0
    %v1470 = vrot.slane %v1312, 2
    %1471 = vrot.lane.b32.xlu0 %v1470, 64
    %v1472 = vpop.permute.xlu0 %1471
    %v1473 = vsel %vm133, %v1472, 0
    %1475 = vmatprep.subr.mxu0 0.0
    %1476 = vmatpush1.msra.mxu0 %v1015
    %1477 = vmatprep.subr.mxu0 0.0
    %1478 = vmatpush1.msra.mxu0 %v1016
    %1479 = vmatprep.subr.mxu0 0.0
    %1480 = vmatpush1.msra.mxu0 %v1017
    %1481 = vmatprep.subr.mxu0 0.0
    %1482 = vmatpush1.msra.mxu0 %v1018
    %1483 = vmatprep.subr.mxu0 0.0
    %1484 = vmatpush1.msra.mxu0 0.0
    %1485 = vmatprep.subr.mxu0 0.0
    %1486 = vmatpush1.msra.mxu0 0.0
    %1487 = vmatprep.subr.mxu0 0.0
    %1488 = vmatpush1.msra.mxu0 0.0
    %1489 = vmatprep.subr.mxu0 0.0
    %1490 = vmatpush1.msra.mxu0 0.0
    %1491 = vmatprep.subr.mxu0 0.0
    %1492 = vmatpush1.msra.mxu0 0.0
    %1493 = vmatprep.subr.mxu0 0.0
    %1494 = vmatpush1.msra.mxu0 0.0
    %1495 = vmatprep.subr.mxu0 0.0
    %1496 = vmatpush1.msra.mxu0 0.0
    %1497 = vmatprep.subr.mxu0 0.0
    %1498 = vmatpush1.msra.mxu0 0.0
    %1499 = vmatprep.subr.mxu0 0.0
    %1500 = vmatpush1.msra.mxu0 0.0
    %1501 = vmatprep.subr.mxu0 0.0
    %1502 = vmatpush1.msra.mxu0 0.0
    %1503 = vmatprep.subr.mxu0 0.0
    %1504 = vmatpush1.msra.mxu0 0.0
    %1505 = vmatprep.subr.mxu0 0.0
    %1506 = vmatpush1.msra.mxu0 0.0
    %1507 = vmatprep.subr.mxu0 0.0
    %1508 = vmatpush1.msra.mxu0 0.0
    %1509 = vmatprep.subr.mxu0 0.0
    %1510 = vmatpush1.msra.mxu0 0.0
    %1511 = vmatprep.subr.mxu0 0.0
    %1512 = vmatpush1.msra.mxu0 0.0
    %1513 = vmatprep.subr.mxu0 0.0
    %1514 = vmatpush1.msra.mxu0 0.0
    %1515 = vmatprep.subr.mxu0 0.0
    %1516 = vmatpush1.msra.mxu0 0.0
    %1517 = vmatprep.subr.mxu0 0.0
    %1518 = vmatpush1.msra.mxu0 0.0
    %1519 = vmatprep.subr.mxu0 0.0
    %1520 = vmatpush1.msra.mxu0 0.0
    %1521 = vmatprep.subr.mxu0 0.0
    %1522 = vmatpush1.msra.mxu0 0.0
    %1523 = vmatprep.subr.mxu0 0.0
    %1524 = vmatpush1.msra.mxu0 0.0
    %1525 = vmatprep.subr.mxu0 0.0
    %1526 = vmatpush1.msra.mxu0 0.0
    %1527 = vmatprep.subr.mxu0 0.0
    %1528 = vmatpush1.msra.mxu0 0.0
    %1529 = vmatprep.subr.mxu0 0.0
    %1530 = vmatpush1.msra.mxu0 0.0
    %1531 = vmatprep.subr.mxu0 0.0
    %1532 = vmatpush1.msra.mxu0 0.0
    %1533 = vmatprep.subr.mxu0 0.0
    %1534 = vmatpush1.msra.mxu0 0.0
    %1535 = vmatprep.subr.mxu0 0.0
    %1536 = vmatpush1.msra.mxu0 0.0
    %1537 = vmatprep.subr.mxu0 0.0
    %1538 = vmatpush1.msra.mxu0 0.0
    %1539 = vmatprep.mubr.f32.mxu0 0.0
    %1540 = vmatmul.mubr.f32.gmra.mrb[0].mxu0 %v1473
    %v1541 = vpop.f32.mrb[0].mxu0
    %v1542 = vadd.f32 0.0, %v1541
    %v1543 = vpop.f32.mrb[0].mxu0
    %1544 = vdwg.mxu0
    %v1546 = vrot.slane %v1542, 4
    %v1548 = vadd.f32 %v1099, %v1546
    %v1549 = vxor.u32 %v1548, 2147483648
    %v1550 = vmul.f32 %v1549, 1.442695
    %v1551 = vpow.pop %v1550
    %v1552 = vadd.f32 %v1551, 1.0
    %v1553 = vrcp.pop %v1552
    %v1554 = vmul.f32 1.0, %v1553
    %v1555 = vtanh.pop %v1548
    %v1557 = vrot.slane %v1306, 6
    %v1559 = vmul.f32 %v1554, %v1557
    %1561 = vrot.lane.b32.xlu0 %v1555, 32
    %v1562 = vpop.permute.xlu0 %1561
    %v1564 = vmul.f32 %v1554, %v1562
    %1566 = vrot.lane.b32.xlu0 %v1564, 32
    %v1567 = vpop.permute.xlu0 %1566
    %v1569 = vadd.f32 %v1559, %v1567
    %v1570 = vtanh.pop %v1569
    %1572 = vrot.lane.b32.xlu0 %v1570, 32
    %v1573 = vpop.permute.xlu0 %1572
    %v1575 = vmul.f32 %v1554, %v1573
    %v1576 = vtanh.pop %v1575
    %v1577 = vld [vmem:[%s7 + $0x40] sm:$0xff]
    %v1578 = vld [vmem:[%s7 + $0x48] sm:$0xff]
    %v1579 = vld [vmem:[%s7 + $0x50] sm:$0xff]
    %v1580 = vld [vmem:[%s7 + $0x58] sm:$0xff]
    %v1582 = vrot.slane %v1576, 4
    %1583 = vrot.lane.b32.xlu0 %v1582, 64
    %v1584 = vpop.permute.xlu0 %1583
    %v1585 = vsel %vm133, %v1584, 0
    %1587 = vmatprep.subr.mxu0 0.0
    %1588 = vmatpush1.msra.mxu0 %v1577
    %1589 = vmatprep.subr.mxu0 0.0
    %1590 = vmatpush1.msra.mxu0 %v1578
    %1591 = vmatprep.subr.mxu0 0.0
    %1592 = vmatpush1.msra.mxu0 %v1579
    %1593 = vmatprep.subr.mxu0 0.0
    %1594 = vmatpush1.msra.mxu0 %v1580
    %1595 = vmatprep.subr.mxu0 0.0
    %1596 = vmatpush1.msra.mxu0 0.0
    %1597 = vmatprep.subr.mxu0 0.0
    %1598 = vmatpush1.msra.mxu0 0.0
    %1599 = vmatprep.subr.mxu0 0.0
    %1600 = vmatpush1.msra.mxu0 0.0
    %1601 = vmatprep.subr.mxu0 0.0
    %1602 = vmatpush1.msra.mxu0 0.0
    %1603 = vmatprep.subr.mxu0 0.0
    %1604 = vmatpush1.msra.mxu0 0.0
    %1605 = vmatprep.subr.mxu0 0.0
    %1606 = vmatpush1.msra.mxu0 0.0
    %1607 = vmatprep.subr.mxu0 0.0
    %1608 = vmatpush1.msra.mxu0 0.0
    %1609 = vmatprep.subr.mxu0 0.0
    %1610 = vmatpush1.msra.mxu0 0.0
    %1611 = vmatprep.subr.mxu0 0.0
    %1612 = vmatpush1.msra.mxu0 0.0
    %1613 = vmatprep.subr.mxu0 0.0
    %1614 = vmatpush1.msra.mxu0 0.0
    %1615 = vmatprep.subr.mxu0 0.0
    %1616 = vmatpush1.msra.mxu0 0.0
    %1617 = vmatprep.subr.mxu0 0.0
    %1618 = vmatpush1.msra.mxu0 0.0
    %1619 = vmatprep.subr.mxu0 0.0
    %1620 = vmatpush1.msra.mxu0 0.0
    %1621 = vmatprep.subr.mxu0 0.0
    %1622 = vmatpush1.msra.mxu0 0.0
    %1623 = vmatprep.subr.mxu0 0.0
    %1624 = vmatpush1.msra.mxu0 0.0
    %1625 = vmatprep.subr.mxu0 0.0
    %1626 = vmatpush1.msra.mxu0 0.0
    %1627 = vmatprep.subr.mxu0 0.0
    %1628 = vmatpush1.msra.mxu0 0.0
    %1629 = vmatprep.subr.mxu0 0.0
    %1630 = vmatpush1.msra.mxu0 0.0
    %1631 = vmatprep.subr.mxu0 0.0
    %1632 = vmatpush1.msra.mxu0 0.0
    %1633 = vmatprep.subr.mxu0 0.0
    %1634 = vmatpush1.msra.mxu0 0.0
    %1635 = vmatprep.subr.mxu0 0.0
    %1636 = vmatpush1.msra.mxu0 0.0
    %1637 = vmatprep.subr.mxu0 0.0
    %1638 = vmatpush1.msra.mxu0 0.0
    %1639 = vmatprep.subr.mxu0 0.0
    %1640 = vmatpush1.msra.mxu0 0.0
    %1641 = vmatprep.subr.mxu0 0.0
    %1642 = vmatpush1.msra.mxu0 0.0
    %1643 = vmatprep.subr.mxu0 0.0
    %1644 = vmatpush1.msra.mxu0 0.0
    %1645 = vmatprep.subr.mxu0 0.0
    %1646 = vmatpush1.msra.mxu0 0.0
    %1647 = vmatprep.subr.mxu0 0.0
    %1648 = vmatpush1.msra.mxu0 0.0
    %1649 = vmatprep.subr.mxu0 0.0
    %1650 = vmatpush1.msra.mxu0 0.0
    %1651 = vmatprep.mubr.f32.mxu0 0.0
    %1652 = vmatmul.mubr.f32.gmra.mrb[0].mxu0 %v1585
    %v1653 = vpop.f32.mrb[0].mxu0
    %v1654 = vadd.f32 0.0, %v1653
    %v1655 = vpop.f32.mrb[0].mxu0
    %1656 = vdwg.mxu0
    %v1657 = vadd.f32 %v1466, %v1654
    %v1659 = vrot.slane %v1575, 4
    %1660 = vrot.lane.b32.xlu0 %v1659, 64
    %v1661 = vpop.permute.xlu0 %1660
    %v1662 = vsel %vm133, %v1661, 0
    %1664 = vmatprep.subr.mxu0 0.0
    %1665 = vmatpush1.msra.mxu0 %v1015
    %1666 = vmatprep.subr.mxu0 0.0
    %1667 = vmatpush1.msra.mxu0 %v1016
    %1668 = vmatprep.subr.mxu0 0.0
    %1669 = vmatpush1.msra.mxu0 %v1017
    %1670 = vmatprep.subr.mxu0 0.0
    %1671 = vmatpush1.msra.mxu0 %v1018
    %1672 = vmatprep.subr.mxu0 0.0
    %1673 = vmatpush1.msra.mxu0 0.0
    %1674 = vmatprep.subr.mxu0 0.0
    %1675 = vmatpush1.msra.mxu0 0.0
    %1676 = vmatprep.subr.mxu0 0.0
    %1677 = vmatpush1.msra.mxu0 0.0
    %1678 = vmatprep.subr.mxu0 0.0
    %1679 = vmatpush1.msra.mxu0 0.0
    %1680 = vmatprep.subr.mxu0 0.0
    %1681 = vmatpush1.msra.mxu0 0.0
    %1682 = vmatprep.subr.mxu0 0.0
    %1683 = vmatpush1.msra.mxu0 0.0
    %1684 = vmatprep.subr.mxu0 0.0
    %1685 = vmatpush1.msra.mxu0 0.0
    %1686 = vmatprep.subr.mxu0 0.0
    %1687 = vmatpush1.msra.mxu0 0.0
    %1688 = vmatprep.subr.mxu0 0.0
    %1689 = vmatpush1.msra.mxu0 0.0
    %1690 = vmatprep.subr.mxu0 0.0
    %1691 = vmatpush1.msra.mxu0 0.0
    %1692 = vmatprep.subr.mxu0 0.0
    %1693 = vmatpush1.msra.mxu0 0.0
    %1694 = vmatprep.subr.mxu0 0.0
    %1695 = vmatpush1.msra.mxu0 0.0
    %1696 = vmatprep.subr.mxu0 0.0
    %1697 = vmatpush1.msra.mxu0 0.0
    %1698 = vmatprep.subr.mxu0 0.0
    %1699 = vmatpush1.msra.mxu0 0.0
    %1700 = vmatprep.subr.mxu0 0.0
    %1701 = vmatpush1.msra.mxu0 0.0
    %1702 = vmatprep.subr.mxu0 0.0
    %1703 = vmatpush1.msra.mxu0 0.0
    %1704 = vmatprep.subr.mxu0 0.0
    %1705 = vmatpush1.msra.mxu0 0.0
    %1706 = vmatprep.subr.mxu0 0.0
    %1707 = vmatpush1.msra.mxu0 0.0
    %1708 = vmatprep.subr.mxu0 0.0
    %1709 = vmatpush1.msra.mxu0 0.0
    %1710 = vmatprep.subr.mxu0 0.0
    %1711 = vmatpush1.msra.mxu0 0.0
    %1712 = vmatprep.subr.mxu0 0.0
    %1713 = vmatpush1.msra.mxu0 0.0
    %1714 = vmatprep.subr.mxu0 0.0
    %1715 = vmatpush1.msra.mxu0 0.0
    %1716 = vmatprep.subr.mxu0 0.0
    %1717 = vmatpush1.msra.mxu0 0.0
    %1718 = vmatprep.subr.mxu0 0.0
    %1719 = vmatpush1.msra.mxu0 0.0
    %1720 = vmatprep.subr.mxu0 0.0
    %1721 = vmatpush1.msra.mxu0 0.0
    %1722 = vmatprep.subr.mxu0 0.0
    %1723 = vmatpush1.msra.mxu0 0.0
    %1724 = vmatprep.subr.mxu0 0.0
    %1725 = vmatpush1.msra.mxu0 0.0
    %1726 = vmatprep.subr.mxu0 0.0
    %1727 = vmatpush1.msra.mxu0 0.0
    %1728 = vmatprep.mubr.f32.mxu0 0.0
    %1729 = vmatmul.mubr.f32.gmra.mrb[0].mxu0 %v1662
    %v1730 = vpop.f32.mrb[0].mxu0
    %v1731 = vadd.f32 0.0, %v1730
    %v1732 = vpop.f32.mrb[0].mxu0
    %1733 = vdwg.mxu0
    %v1735 = vrot.slane %v1731, 2
    %v1737 = vadd.f32 %v1099, %v1735
    %v1738 = vxor.u32 %v1737, 2147483648
    %v1739 = vmul.f32 %v1738, 1.442695
    %v1740 = vpow.pop %v1739
    %v1741 = vadd.f32 %v1740, 1.0
    %v1742 = vrcp.pop %v1741
    %v1743 = vmul.f32 1.0, %v1742
    %v1744 = vtanh.pop %v1737
    %v1746 = vrot.slane %v1569, 6
    %v1748 = vmul.f32 %v1743, %v1746
    %1750 = vrot.lane.b32.xlu0 %v1744, 32
    %v1751 = vpop.permute.xlu0 %1750
    %v1753 = vmul.f32 %v1743, %v1751
    %1755 = vrot.lane.b32.xlu0 %v1753, 32
    %v1756 = vpop.permute.xlu0 %1755
    %v1758 = vadd.f32 %v1748, %v1756
    %v1759 = vtanh.pop %v1758
    %1761 = vrot.lane.b32.xlu0 %v1759, 32
    %v1762 = vpop.permute.xlu0 %1761
    %v1764 = vmul.f32 %v1743, %v1762
    %v1765 = vtanh.pop %v1764
    %v1766 = vld [vmem:[%s7 + $0x60] sm:$0xff]
    %v1767 = vld [vmem:[%s7 + $0x68] sm:$0xff]
    %v1768 = vld [vmem:[%s7 + $0x70] sm:$0xff]
    %v1769 = vld [vmem:[%s7 + $0x78] sm:$0xff]
    %v1771 = vrot.slane %v1765, 6
    %1772 = vrot.lane.b32.xlu0 %v1771, 64
    %v1773 = vpop.permute.xlu0 %1772
    %v1774 = vsel %vm133, %v1773, 0
    %1776 = vmatprep.subr.mxu0 0.0
    %1777 = vmatpush1.msra.mxu0 %v1766
    %1778 = vmatprep.subr.mxu0 0.0
    %1779 = vmatpush1.msra.mxu0 %v1767
    %1780 = vmatprep.subr.mxu0 0.0
    %1781 = vmatpush1.msra.mxu0 %v1768
    %1782 = vmatprep.subr.mxu0 0.0
    %1783 = vmatpush1.msra.mxu0 %v1769
    %1784 = vmatprep.subr.mxu0 0.0
    %1785 = vmatpush1.msra.mxu0 0.0
    %1786 = vmatprep.subr.mxu0 0.0
    %1787 = vmatpush1.msra.mxu0 0.0
    %1788 = vmatprep.subr.mxu0 0.0
    %1789 = vmatpush1.msra.mxu0 0.0
    %1790 = vmatprep.subr.mxu0 0.0
    %1791 = vmatpush1.msra.mxu0 0.0
    %1792 = vmatprep.subr.mxu0 0.0
    %1793 = vmatpush1.msra.mxu0 0.0
    %1794 = vmatprep.subr.mxu0 0.0
    %1795 = vmatpush1.msra.mxu0 0.0
    %1796 = vmatprep.subr.mxu0 0.0
    %1797 = vmatpush1.msra.mxu0 0.0
    %1798 = vmatprep.subr.mxu0 0.0
    %1799 = vmatpush1.msra.mxu0 0.0
    %1800 = vmatprep.subr.mxu0 0.0
    %1801 = vmatpush1.msra.mxu0 0.0
    %1802 = vmatprep.subr.mxu0 0.0
    %1803 = vmatpush1.msra.mxu0 0.0
    %1804 = vmatprep.subr.mxu0 0.0
    %1805 = vmatpush1.msra.mxu0 0.0
    %1806 = vmatprep.subr.mxu0 0.0
    %1807 = vmatpush1.msra.mxu0 0.0
    %1808 = vmatprep.subr.mxu0 0.0
    %1809 = vmatpush1.msra.mxu0 0.0
    %1810 = vmatprep.subr.mxu0 0.0
    %1811 = vmatpush1.msra.mxu0 0.0
    %1812 = vmatprep.subr.mxu0 0.0
    %1813 = vmatpush1.msra.mxu0 0.0
    %1814 = vmatprep.subr.mxu0 0.0
    %1815 = vmatpush1.msra.mxu0 0.0
    %1816 = vmatprep.subr.mxu0 0.0
    %1817 = vmatpush1.msra.mxu0 0.0
    %1818 = vmatprep.subr.mxu0 0.0
    %1819 = vmatpush1.msra.mxu0 0.0
    %1820 = vmatprep.subr.mxu0 0.0
    %1821 = vmatpush1.msra.mxu0 0.0
    %1822 = vmatprep.subr.mxu0 0.0
    %1823 = vmatpush1.msra.mxu0 0.0
    %1824 = vmatprep.subr.mxu0 0.0
    %1825 = vmatpush1.msra.mxu0 0.0
    %1826 = vmatprep.subr.mxu0 0.0
    %1827 = vmatpush1.msra.mxu0 0.0
    %1828 = vmatprep.subr.mxu0 0.0
    %1829 = vmatpush1.msra.mxu0 0.0
    %1830 = vmatprep.subr.mxu0 0.0
    %1831 = vmatpush1.msra.mxu0 0.0
    %1832 = vmatprep.subr.mxu0 0.0
    %1833 = vmatpush1.msra.mxu0 0.0
    %1834 = vmatprep.subr.mxu0 0.0
    %1835 = vmatpush1.msra.mxu0 0.0
    %1836 = vmatprep.subr.mxu0 0.0
    %1837 = vmatpush1.msra.mxu0 0.0
    %1838 = vmatprep.subr.mxu0 0.0
    %1839 = vmatpush1.msra.mxu0 0.0
    %1840 = vmatprep.mubr.f32.mxu0 0.0
    %1841 = vmatmul.mubr.f32.gmra.mrb[0].mxu0 %v1774
    %v1842 = vpop.f32.mrb[0].mxu0
    %v1843 = vadd.f32 0.0, %v1842
    %v1844 = vpop.f32.mrb[0].mxu0
    %1845 = vdwg.mxu0
    %v1846 = vadd.f32 %v1657, %v1843
    %v1848 = vrot.slane %v1764, 6
    %1849 = vrot.lane.b32.xlu0 %v1848, 64
    %v1850 = vpop.permute.xlu0 %1849
    %v1851 = vsel %vm133, %v1850, 0
    %1853 = vmatprep.subr.mxu0 0.0
    %1854 = vmatpush1.msra.mxu0 %v1015
    %1855 = vmatprep.subr.mxu0 0.0
    %1856 = vmatpush1.msra.mxu0 %v1016
    %1857 = vmatprep.subr.mxu0 0.0
    %1858 = vmatpush1.msra.mxu0 %v1017
    %1859 = vmatprep.subr.mxu0 0.0
    %1860 = vmatpush1.msra.mxu0 %v1018
    %1861 = vmatprep.subr.mxu0 0.0
    %1862 = vmatpush1.msra.mxu0 0.0
    %1863 = vmatprep.subr.mxu0 0.0
    %1864 = vmatpush1.msra.mxu0 0.0
    %1865 = vmatprep.subr.mxu0 0.0
    %1866 = vmatpush1.msra.mxu0 0.0
    %1867 = vmatprep.subr.mxu0 0.0
    %1868 = vmatpush1.msra.mxu0 0.0
    %1869 = vmatprep.subr.mxu0 0.0
    %1870 = vmatpush1.msra.mxu0 0.0
    %1871 = vmatprep.subr.mxu0 0.0
    %1872 = vmatpush1.msra.mxu0 0.0
    %1873 = vmatprep.subr.mxu0 0.0
    %1874 = vmatpush1.msra.mxu0 0.0
    %1875 = vmatprep.subr.mxu0 0.0
    %1876 = vmatpush1.msra.mxu0 0.0
    %1877 = vmatprep.subr.mxu0 0.0
    %1878 = vmatpush1.msra.mxu0 0.0
    %1879 = vmatprep.subr.mxu0 0.0
    %1880 = vmatpush1.msra.mxu0 0.0
    %1881 = vmatprep.subr.mxu0 0.0
    %1882 = vmatpush1.msra.mxu0 0.0
    %1883 = vmatprep.subr.mxu0 0.0
    %1884 = vmatpush1.msra.mxu0 0.0
    %1885 = vmatprep.subr.mxu0 0.0
    %1886 = vmatpush1.msra.mxu0 0.0
    %1887 = vmatprep.subr.mxu0 0.0
    %1888 = vmatpush1.msra.mxu0 0.0
    %1889 = vmatprep.subr.mxu0 0.0
    %1890 = vmatpush1.msra.mxu0 0.0
    %1891 = vmatprep.subr.mxu0 0.0
    %1892 = vmatpush1.msra.mxu0 0.0
    %1893 = vmatprep.subr.mxu0 0.0
    %1894 = vmatpush1.msra.mxu0 0.0
    %1895 = vmatprep.subr.mxu0 0.0
    %1896 = vmatpush1.msra.mxu0 0.0
    %1897 = vmatprep.subr.mxu0 0.0
    %1898 = vmatpush1.msra.mxu0 0.0
    %1899 = vmatprep.subr.mxu0 0.0
    %1900 = vmatpush1.msra.mxu0 0.0
    %1901 = vmatprep.subr.mxu0 0.0
    %1902 = vmatpush1.msra.mxu0 0.0
    %1903 = vmatprep.subr.mxu0 0.0
    %1904 = vmatpush1.msra.mxu0 0.0
    %1905 = vmatprep.subr.mxu0 0.0
    %1906 = vmatpush1.msra.mxu0 0.0
    %1907 = vmatprep.subr.mxu0 0.0
    %1908 = vmatpush1.msra.mxu0 0.0
    %1909 = vmatprep.subr.mxu0 0.0
    %1910 = vmatpush1.msra.mxu0 0.0
    %1911 = vmatprep.subr.mxu0 0.0
    %1912 = vmatpush1.msra.mxu0 0.0
    %1913 = vmatprep.subr.mxu0 0.0
    %1914 = vmatpush1.msra.mxu0 0.0
    %1915 = vmatprep.subr.mxu0 0.0
    %1916 = vmatpush1.msra.mxu0 0.0
    %1917 = vmatprep.mubr.f32.mxu0 0.0
    %1918 = vmatmul.mubr.f32.gmra.mrb[0].mxu0 %v1851
    %v1919 = vpop.f32.mrb[0].mxu0
    %v1920 = vadd.f32 0.0, %v1919
    %v1921 = vpop.f32.mrb[0].mxu0
    %1922 = vdwg.mxu0
    %v1923 = vadd.f32 %v1104, %v1920
    %v1924 = vxor.u32 %v1923, 2147483648
    %v1925 = vmul.f32 %v1924, 1.442695
    %v1926 = vpow.pop %v1925
    %v1927 = vadd.f32 %v1926, 1.0
    %v1928 = vrcp.pop %v1927
    %v1929 = vmul.f32 1.0, %v1928
    %v1930 = vtanh.pop %v1923
    %v1932 = vrot.slane %v1758, 6
    %v1934 = vmul.f32 %v1929, %v1932
    %1936 = vrot.lane.b32.xlu0 %v1930, 32
    %v1937 = vpop.permute.xlu0 %1936
    %v1939 = vmul.f32 %v1929, %v1937
    %1941 = vrot.lane.b32.xlu0 %v1939, 32
    %v1942 = vpop.permute.xlu0 %1941
    %v1944 = vadd.f32 %v1934, %v1942
    %v1945 = vtanh.pop %v1944
    %1947 = vrot.lane.b32.xlu0 %v1945, 32
    %v1948 = vpop.permute.xlu0 %1947
    %v1950 = vmul.f32 %v1929, %v1948
    %v1951 = vtanh.pop %v1950
    %v1952 = vld [vmem:[%s7 + $0x80] sm:$0xff]
    %v1953 = vld [vmem:[%s7 + $0x88] sm:$0xff]
    %v1954 = vld [vmem:[%s7 + $0x90] sm:$0xff]
    %v1955 = vld [vmem:[%s7 + $0x98] sm:$0xff]
    %1957 = vrot.lane.b32.xlu0 %v1951, 64
    %v1958 = vpop.permute.xlu0 %1957
    %v1959 = vsel %vm133, %v1958, 0
    %1961 = vmatprep.subr.mxu0 0.0
    %1962 = vmatpush1.msra.mxu0 %v1952
    %1963 = vmatprep.subr.mxu0 0.0
    %1964 = vmatpush1.msra.mxu0 %v1953
    %1965 = vmatprep.subr.mxu0 0.0
    %1966 = vmatpush1.msra.mxu0 %v1954
    %1967 = vmatprep.subr.mxu0 0.0
    %1968 = vmatpush1.msra.mxu0 %v1955
    %1969 = vmatprep.subr.mxu0 0.0
    %1970 = vmatpush1.msra.mxu0 0.0
    %1971 = vmatprep.subr.mxu0 0.0
    %1972 = vmatpush1.msra.mxu0 0.0
    %1973 = vmatprep.subr.mxu0 0.0
    %1974 = vmatpush1.msra.mxu0 0.0
    %1975 = vmatprep.subr.mxu0 0.0
    %1976 = vmatpush1.msra.mxu0 0.0
    %1977 = vmatprep.subr.mxu0 0.0
    %1978 = vmatpush1.msra.mxu0 0.0
    %1979 = vmatprep.subr.mxu0 0.0
    %1980 = vmatpush1.msra.mxu0 0.0
    %1981 = vmatprep.subr.mxu0 0.0
    %1982 = vmatpush1.msra.mxu0 0.0
    %1983 = vmatprep.subr.mxu0 0.0
    %1984 = vmatpush1.msra.mxu0 0.0
    %1985 = vmatprep.subr.mxu0 0.0
    %1986 = vmatpush1.msra.mxu0 0.0
    %1987 = vmatprep.subr.mxu0 0.0
    %1988 = vmatpush1.msra.mxu0 0.0
    %1989 = vmatprep.subr.mxu0 0.0
    %1990 = vmatpush1.msra.mxu0 0.0
    %1991 = vmatprep.subr.mxu0 0.0
    %1992 = vmatpush1.msra.mxu0 0.0
    %1993 = vmatprep.subr.mxu0 0.0
    %1994 = vmatpush1.msra.mxu0 0.0
    %1995 = vmatprep.subr.mxu0 0.0
    %1996 = vmatpush1.msra.mxu0 0.0
    %1997 = vmatprep.subr.mxu0 0.0
    %1998 = vmatpush1.msra.mxu0 0.0
    %1999 = vmatprep.subr.mxu0 0.0
    %2000 = vmatpush1.msra.mxu0 0.0
    %2001 = vmatprep.subr.mxu0 0.0
    %2002 = vmatpush1.msra.mxu0 0.0
    %2003 = vmatprep.subr.mxu0 0.0
    %2004 = vmatpush1.msra.mxu0 0.0
    %2005 = vmatprep.subr.mxu0 0.0
    %2006 = vmatpush1.msra.mxu0 0.0
    %2007 = vmatprep.subr.mxu0 0.0
    %2008 = vmatpush1.msra.mxu0 0.0
    %2009 = vmatprep.subr.mxu0 0.0
    %2010 = vmatpush1.msra.mxu0 0.0
    %2011 = vmatprep.subr.mxu0 0.0
    %2012 = vmatpush1.msra.mxu0 0.0
    %2013 = vmatprep.subr.mxu0 0.0
    %2014 = vmatpush1.msra.mxu0 0.0
    %2015 = vmatprep.subr.mxu0 0.0
    %2016 = vmatpush1.msra.mxu0 0.0
    %2017 = vmatprep.subr.mxu0 0.0
    %2018 = vmatpush1.msra.mxu0 0.0
    %2019 = vmatprep.subr.mxu0 0.0
    %2020 = vmatpush1.msra.mxu0 0.0
    %2021 = vmatprep.subr.mxu0 0.0
    %2022 = vmatpush1.msra.mxu0 0.0
    %2023 = vmatprep.subr.mxu0 0.0
    %2024 = vmatpush1.msra.mxu0 0.0
    %2025 = vmatprep.mubr.f32.mxu0 0.0
    %2026 = vmatmul.mubr.f32.gmra.mrb[0].mxu0 %v1959
    %v2027 = vpop.f32.mrb[0].mxu0
    %v2028 = vadd.f32 0.0, %v2027
    %v2029 = vpop.f32.mrb[0].mxu0
    %2030 = vdwg.mxu0
    %v2031 = vadd.f32 %v1846, %v2028
    %2033 = vrot.lane.b32.xlu0 %v1950, 64
    %v2034 = vpop.permute.xlu0 %2033
    %v2035 = vsel %vm133, %v2034, 0
    %2037 = vmatprep.subr.mxu0 0.0
    %2038 = vmatpush1.msra.mxu0 %v1015
    %2039 = vmatprep.subr.mxu0 0.0
    %2040 = vmatpush1.msra.mxu0 %v1016
    %2041 = vmatprep.subr.mxu0 0.0
    %2042 = vmatpush1.msra.mxu0 %v1017
    %2043 = vmatprep.subr.mxu0 0.0
    %2044 = vmatpush1.msra.mxu0 %v1018
    %2045 = vmatprep.subr.mxu0 0.0
    %2046 = vmatpush1.msra.mxu0 0.0
    %2047 = vmatprep.subr.mxu0 0.0
    %2048 = vmatpush1.msra.mxu0 0.0
    %2049 = vmatprep.subr.mxu0 0.0
    %2050 = vmatpush1.msra.mxu0 0.0
    %2051 = vmatprep.subr.mxu0 0.0
    %2052 = vmatpush1.msra.mxu0 0.0
    %2053 = vmatprep.subr.mxu0 0.0
    %2054 = vmatpush1.msra.mxu0 0.0
    %2055 = vmatprep.subr.mxu0 0.0
    %2056 = vmatpush1.msra.mxu0 0.0
    %2057 = vmatprep.subr.mxu0 0.0
    %2058 = vmatpush1.msra.mxu0 0.0
    %2059 = vmatprep.subr.mxu0 0.0
    %2060 = vmatpush1.msra.mxu0 0.0
    %2061 = vmatprep.subr.mxu0 0.0
    %2062 = vmatpush1.msra.mxu0 0.0
    %2063 = vmatprep.subr.mxu0 0.0
    %2064 = vmatpush1.msra.mxu0 0.0
    %2065 = vmatprep.subr.mxu0 0.0
    %2066 = vmatpush1.msra.mxu0 0.0
    %2067 = vmatprep.subr.mxu0 0.0
    %2068 = vmatpush1.msra.mxu0 0.0
    %2069 = vmatprep.subr.mxu0 0.0
    %2070 = vmatpush1.msra.mxu0 0.0
    %2071 = vmatprep.subr.mxu0 0.0
    %2072 = vmatpush1.msra.mxu0 0.0
    %2073 = vmatprep.subr.mxu0 0.0
    %2074 = vmatpush1.msra.mxu0 0.0
    %2075 = vmatprep.subr.mxu0 0.0
    %2076 = vmatpush1.msra.mxu0 0.0
    %2077 = vmatprep.subr.mxu0 0.0
    %2078 = vmatpush1.msra.mxu0 0.0
    %2079 = vmatprep.subr.mxu0 0.0
    %2080 = vmatpush1.msra.mxu0 0.0
    %2081 = vmatprep.subr.mxu0 0.0
    %2082 = vmatpush1.msra.mxu0 0.0
    %2083 = vmatprep.subr.mxu0 0.0
    %2084 = vmatpush1.msra.mxu0 0.0
    %2085 = vmatprep.subr.mxu0 0.0
    %2086 = vmatpush1.msra.mxu0 0.0
    %2087 = vmatprep.subr.mxu0 0.0
    %2088 = vmatpush1.msra.mxu0 0.0
    %2089 = vmatprep.subr.mxu0 0.0
    %2090 = vmatpush1.msra.mxu0 0.0
    %2091 = vmatprep.subr.mxu0 0.0
    %2092 = vmatpush1.msra.mxu0 0.0
    %2093 = vmatprep.subr.mxu0 0.0
    %2094 = vmatpush1.msra.mxu0 0.0
    %2095 = vmatprep.subr.mxu0 0.0
    %2096 = vmatpush1.msra.mxu0 0.0
    %2097 = vmatprep.subr.mxu0 0.0
    %2098 = vmatpush1.msra.mxu0 0.0
    %2099 = vmatprep.subr.mxu0 0.0
    %2100 = vmatpush1.msra.mxu0 0.0
    %2101 = vmatprep.mubr.f32.mxu0 0.0
    %2102 = vmatmul.mubr.f32.gmra.mrb[0].mxu0 %v2035
    %v2103 = vpop.f32.mrb[0].mxu0
    %v2104 = vadd.f32 0.0, %v2103
    %v2105 = vpop.f32.mrb[0].mxu0
    %2106 = vdwg.mxu0
    %v2108 = vrot.slane %v2104, 6
    %v2110 = vadd.f32 %v1104, %v2108
    %v2111 = vxor.u32 %v2110, 2147483648
    %v2112 = vmul.f32 %v2111, 1.442695
    %v2113 = vpow.pop %v2112
    %v2114 = vadd.f32 %v2113, 1.0
    %v2115 = vrcp.pop %v2114
    %v2116 = vmul.f32 1.0, %v2115
    %v2117 = vtanh.pop %v2110
    %v2119 = vrot.slane %v1944, 6
    %v2121 = vmul.f32 %v2116, %v2119
    %2123 = vrot.lane.b32.xlu0 %v2117, 32
    %v2124 = vpop.permute.xlu0 %2123
    %v2126 = vmul.f32 %v2116, %v2124
    %2128 = vrot.lane.b32.xlu0 %v2126, 32
    %v2129 = vpop.permute.xlu0 %2128
    %v2131 = vadd.f32 %v2121, %v2129
    %v2132 = vtanh.pop %v2131
    %2134 = vrot.lane.b32.xlu0 %v2132, 32
    %v2135 = vpop.permute.xlu0 %2134
    %v2137 = vmul.f32 %v2116, %v2135
    %v2138 = vtanh.pop %v2137
    %v2139 = vld [vmem:[%s7 + $0xa0] sm:$0xff]
    %v2140 = vld [vmem:[%s7 + $0xa8] sm:$0xff]
    %v2141 = vld [vmem:[%s7 + $0xb0] sm:$0xff]
    %v2142 = vld [vmem:[%s7 + $0xb8] sm:$0xff]
    %v2144 = vrot.slane %v2138, 2
    %2145 = vrot.lane.b32.xlu0 %v2144, 64
    %v2146 = vpop.permute.xlu0 %2145
    %v2147 = vsel %vm133, %v2146, 0
    %2149 = vmatprep.subr.mxu0 0.0
    %2150 = vmatpush1.msra.mxu0 %v2139
    %2151 = vmatprep.subr.mxu0 0.0
    %2152 = vmatpush1.msra.mxu0 %v2140
    %2153 = vmatprep.subr.mxu0 0.0
    %2154 = vmatpush1.msra.mxu0 %v2141
    %2155 = vmatprep.subr.mxu0 0.0
    %2156 = vmatpush1.msra.mxu0 %v2142
    %2157 = vmatprep.subr.mxu0 0.0
    %2158 = vmatpush1.msra.mxu0 0.0
    %2159 = vmatprep.subr.mxu0 0.0
    %2160 = vmatpush1.msra.mxu0 0.0
    %2161 = vmatprep.subr.mxu0 0.0
    %2162 = vmatpush1.msra.mxu0 0.0
    %2163 = vmatprep.subr.mxu0 0.0
    %2164 = vmatpush1.msra.mxu0 0.0
    %2165 = vmatprep.subr.mxu0 0.0
    %2166 = vmatpush1.msra.mxu0 0.0
    %2167 = vmatprep.subr.mxu0 0.0
    %2168 = vmatpush1.msra.mxu0 0.0
    %2169 = vmatprep.subr.mxu0 0.0
    %2170 = vmatpush1.msra.mxu0 0.0
    %2171 = vmatprep.subr.mxu0 0.0
    %2172 = vmatpush1.msra.mxu0 0.0
    %2173 = vmatprep.subr.mxu0 0.0
    %2174 = vmatpush1.msra.mxu0 0.0
    %2175 = vmatprep.subr.mxu0 0.0
    %2176 = vmatpush1.msra.mxu0 0.0
    %2177 = vmatprep.subr.mxu0 0.0
    %2178 = vmatpush1.msra.mxu0 0.0
    %2179 = vmatprep.subr.mxu0 0.0
    %2180 = vmatpush1.msra.mxu0 0.0
    %2181 = vmatprep.subr.mxu0 0.0
    %2182 = vmatpush1.msra.mxu0 0.0
    %2183 = vmatprep.subr.mxu0 0.0
    %2184 = vmatpush1.msra.mxu0 0.0
    %2185 = vmatprep.subr.mxu0 0.0
    %2186 = vmatpush1.msra.mxu0 0.0
    %2187 = vmatprep.subr.mxu0 0.0
    %2188 = vmatpush1.msra.mxu0 0.0
    %2189 = vmatprep.subr.mxu0 0.0
    %2190 = vmatpush1.msra.mxu0 0.0
    %2191 = vmatprep.subr.mxu0 0.0
    %2192 = vmatpush1.msra.mxu0 0.0
    %2193 = vmatprep.subr.mxu0 0.0
    %2194 = vmatpush1.msra.mxu0 0.0
    %2195 = vmatprep.subr.mxu0 0.0
    %2196 = vmatpush1.msra.mxu0 0.0
    %2197 = vmatprep.subr.mxu0 0.0
    %2198 = vmatpush1.msra.mxu0 0.0
    %2199 = vmatprep.subr.mxu0 0.0
    %2200 = vmatpush1.msra.mxu0 0.0
    %2201 = vmatprep.subr.mxu0 0.0
    %2202 = vmatpush1.msra.mxu0 0.0
    %2203 = vmatprep.subr.mxu0 0.0
    %2204 = vmatpush1.msra.mxu0 0.0
    %2205 = vmatprep.subr.mxu0 0.0
    %2206 = vmatpush1.msra.mxu0 0.0
    %2207 = vmatprep.subr.mxu0 0.0
    %2208 = vmatpush1.msra.mxu0 0.0
    %2209 = vmatprep.subr.mxu0 0.0
    %2210 = vmatpush1.msra.mxu0 0.0
    %2211 = vmatprep.subr.mxu0 0.0
    %2212 = vmatpush1.msra.mxu0 0.0
    %2213 = vmatprep.mubr.f32.mxu0 0.0
    %2214 = vmatmul.mubr.f32.gmra.mrb[0].mxu0 %v2147
    %v2215 = vpop.f32.mrb[0].mxu0
    %v2216 = vadd.f32 0.0, %v2215
    %v2217 = vpop.f32.mrb[0].mxu0
    %2218 = vdwg.mxu0
    %v2219 = vadd.f32 %v2031, %v2216
    %v2221 = vrot.slane %v2137, 2
    %2222 = vrot.lane.b32.xlu0 %v2221, 64
    %v2223 = vpop.permute.xlu0 %2222
    %v2224 = vsel %vm133, %v2223, 0
    %2226 = vmatprep.subr.mxu0 0.0
    %2227 = vmatpush1.msra.mxu0 %v1015
    %2228 = vmatprep.subr.mxu0 0.0
    %2229 = vmatpush1.msra.mxu0 %v1016
    %2230 = vmatprep.subr.mxu0 0.0
    %2231 = vmatpush1.msra.mxu0 %v1017
    %2232 = vmatprep.subr.mxu0 0.0
    %2233 = vmatpush1.msra.mxu0 %v1018
    %2234 = vmatprep.subr.mxu0 0.0
    %2235 = vmatpush1.msra.mxu0 0.0
    %2236 = vmatprep.subr.mxu0 0.0
    %2237 = vmatpush1.msra.mxu0 0.0
    %2238 = vmatprep.subr.mxu0 0.0
    %2239 = vmatpush1.msra.mxu0 0.0
    %2240 = vmatprep.subr.mxu0 0.0
    %2241 = vmatpush1.msra.mxu0 0.0
    %2242 = vmatprep.subr.mxu0 0.0
    %2243 = vmatpush1.msra.mxu0 0.0
    %2244 = vmatprep.subr.mxu0 0.0
    %2245 = vmatpush1.msra.mxu0 0.0
    %2246 = vmatprep.subr.mxu0 0.0
    %2247 = vmatpush1.msra.mxu0 0.0
    %2248 = vmatprep.subr.mxu0 0.0
    %2249 = vmatpush1.msra.mxu0 0.0
    %2250 = vmatprep.subr.mxu0 0.0
    %2251 = vmatpush1.msra.mxu0 0.0
    %2252 = vmatprep.subr.mxu0 0.0
    %2253 = vmatpush1.msra.mxu0 0.0
    %2254 = vmatprep.subr.mxu0 0.0
    %2255 = vmatpush1.msra.mxu0 0.0
    %2256 = vmatprep.subr.mxu0 0.0
    %2257 = vmatpush1.msra.mxu0 0.0
    %2258 = vmatprep.subr.mxu0 0.0
    %2259 = vmatpush1.msra.mxu0 0.0
    %2260 = vmatprep.subr.mxu0 0.0
    %2261 = vmatpush1.msra.mxu0 0.0
    %2262 = vmatprep.subr.mxu0 0.0
    %2263 = vmatpush1.msra.mxu0 0.0
    %2264 = vmatprep.subr.mxu0 0.0
    %2265 = vmatpush1.msra.mxu0 0.0
    %2266 = vmatprep.subr.mxu0 0.0
    %2267 = vmatpush1.msra.mxu0 0.0
    %2268 = vmatprep.subr.mxu0 0.0
    %2269 = vmatpush1.msra.mxu0 0.0
    %2270 = vmatprep.subr.mxu0 0.0
    %2271 = vmatpush1.msra.mxu0 0.0
    %2272 = vmatprep.subr.mxu0 0.0
    %2273 = vmatpush1.msra.mxu0 0.0
    %2274 = vmatprep.subr.mxu0 0.0
    %2275 = vmatpush1.msra.mxu0 0.0
    %2276 = vmatprep.subr.mxu0 0.0
    %2277 = vmatpush1.msra.mxu0 0.0
    %2278 = vmatprep.subr.mxu0 0.0
    %2279 = vmatpush1.msra.mxu0 0.0
    %2280 = vmatprep.subr.mxu0 0.0
    %2281 = vmatpush1.msra.mxu0 0.0
    %2282 = vmatprep.subr.mxu0 0.0
    %2283 = vmatpush1.msra.mxu0 0.0
    %2284 = vmatprep.subr.mxu0 0.0
    %2285 = vmatpush1.msra.mxu0 0.0
    %2286 = vmatprep.subr.mxu0 0.0
    %2287 = vmatpush1.msra.mxu0 0.0
    %2288 = vmatprep.subr.mxu0 0.0
    %2289 = vmatpush1.msra.mxu0 0.0
    %2290 = vmatprep.mubr.f32.mxu0 0.0
    %2291 = vmatmul.mubr.f32.gmra.mrb[0].mxu0 %v2224
    %v2292 = vpop.f32.mrb[0].mxu0
    %v2293 = vadd.f32 0.0, %v2292
    %v2294 = vpop.f32.mrb[0].mxu0
    %2295 = vdwg.mxu0
    %v2297 = vrot.slane %v2293, 4
    %v2299 = vadd.f32 %v1104, %v2297
    %v2300 = vxor.u32 %v2299, 2147483648
    %v2301 = vmul.f32 %v2300, 1.442695
    %v2302 = vpow.pop %v2301
    %v2303 = vadd.f32 %v2302, 1.0
    %v2304 = vrcp.pop %v2303
    %v2305 = vmul.f32 1.0, %v2304
    %v2306 = vtanh.pop %v2299
    %v2308 = vrot.slane %v2131, 6
    %v2310 = vmul.f32 %v2305, %v2308
    %2312 = vrot.lane.b32.xlu0 %v2306, 32
    %v2313 = vpop.permute.xlu0 %2312
    %v2315 = vmul.f32 %v2305, %v2313
    %2317 = vrot.lane.b32.xlu0 %v2315, 32
    %v2318 = vpop.permute.xlu0 %2317
    %v2320 = vadd.f32 %v2310, %v2318
    %v2321 = vtanh.pop %v2320
    %2323 = vrot.lane.b32.xlu0 %v2321, 32
    %v2324 = vpop.permute.xlu0 %2323
    %v2326 = vmul.f32 %v2305, %v2324
    %v2327 = vtanh.pop %v2326
    %v2328 = vld [vmem:[%s7 + $0xc0] sm:$0xff]
    %v2329 = vld [vmem:[%s7 + $0xc8] sm:$0xff]
    %v2330 = vld [vmem:[%s7 + $0xd0] sm:$0xff]
    %v2331 = vld [vmem:[%s7 + $0xd8] sm:$0xff]
    %v2333 = vrot.slane %v2327, 4
    %2334 = vrot.lane.b32.xlu0 %v2333, 64
    %v2335 = vpop.permute.xlu0 %2334
    %v2336 = vsel %vm133, %v2335, 0
    %2338 = vmatprep.subr.mxu0 0.0
    %2339 = vmatpush1.msra.mxu0 %v2328
    %2340 = vmatprep.subr.mxu0 0.0
    %2341 = vmatpush1.msra.mxu0 %v2329
    %2342 = vmatprep.subr.mxu0 0.0
    %2343 = vmatpush1.msra.mxu0 %v2330
    %2344 = vmatprep.subr.mxu0 0.0
    %2345 = vmatpush1.msra.mxu0 %v2331
    %2346 = vmatprep.subr.mxu0 0.0
    %2347 = vmatpush1.msra.mxu0 0.0
    %2348 = vmatprep.subr.mxu0 0.0
    %2349 = vmatpush1.msra.mxu0 0.0
    %2350 = vmatprep.subr.mxu0 0.0
    %2351 = vmatpush1.msra.mxu0 0.0
    %2352 = vmatprep.subr.mxu0 0.0
    %2353 = vmatpush1.msra.mxu0 0.0
    %2354 = vmatprep.subr.mxu0 0.0
    %2355 = vmatpush1.msra.mxu0 0.0
    %2356 = vmatprep.subr.mxu0 0.0
    %2357 = vmatpush1.msra.mxu0 0.0
    %2358 = vmatprep.subr.mxu0 0.0
    %2359 = vmatpush1.msra.mxu0 0.0
    %2360 = vmatprep.subr.mxu0 0.0
    %2361 = vmatpush1.msra.mxu0 0.0
    %2362 = vmatprep.subr.mxu0 0.0
    %2363 = vmatpush1.msra.mxu0 0.0
    %2364 = vmatprep.subr.mxu0 0.0
    %2365 = vmatpush1.msra.mxu0 0.0
    %2366 = vmatprep.subr.mxu0 0.0
    %2367 = vmatpush1.msra.mxu0 0.0
    %2368 = vmatprep.subr.mxu0 0.0
    %2369 = vmatpush1.msra.mxu0 0.0
    %2370 = vmatprep.subr.mxu0 0.0
    %2371 = vmatpush1.msra.mxu0 0.0
    %2372 = vmatprep.subr.mxu0 0.0
    %2373 = vmatpush1.msra.mxu0 0.0
    %2374 = vmatprep.subr.mxu0 0.0
    %2375 = vmatpush1.msra.mxu0 0.0
    %2376 = vmatprep.subr.mxu0 0.0
    %2377 = vmatpush1.msra.mxu0 0.0
    %2378 = vmatprep.subr.mxu0 0.0
    %2379 = vmatpush1.msra.mxu0 0.0
    %2380 = vmatprep.subr.mxu0 0.0
    %2381 = vmatpush1.msra.mxu0 0.0
    %2382 = vmatprep.subr.mxu0 0.0
    %2383 = vmatpush1.msra.mxu0 0.0
    %2384 = vmatprep.subr.mxu0 0.0
    %2385 = vmatpush1.msra.mxu0 0.0
    %2386 = vmatprep.subr.mxu0 0.0
    %2387 = vmatpush1.msra.mxu0 0.0
    %2388 = vmatprep.subr.mxu0 0.0
    %2389 = vmatpush1.msra.mxu0 0.0
    %2390 = vmatprep.subr.mxu0 0.0
    %2391 = vmatpush1.msra.mxu0 0.0
    %2392 = vmatprep.subr.mxu0 0.0
    %2393 = vmatpush1.msra.mxu0 0.0
    %2394 = vmatprep.subr.mxu0 0.0
    %2395 = vmatpush1.msra.mxu0 0.0
    %2396 = vmatprep.subr.mxu0 0.0
    %2397 = vmatpush1.msra.mxu0 0.0
    %2398 = vmatprep.subr.mxu0 0.0
    %2399 = vmatpush1.msra.mxu0 0.0
    %2400 = vmatprep.subr.mxu0 0.0
    %2401 = vmatpush1.msra.mxu0 0.0
    %2402 = vmatprep.mubr.f32.mxu0 0.0
    %2403 = vmatmul.mubr.f32.gmra.mrb[0].mxu0 %v2336
    %v2404 = vpop.f32.mrb[0].mxu0
    %v2405 = vadd.f32 0.0, %v2404
    %v2406 = vpop.f32.mrb[0].mxu0
    %2407 = vdwg.mxu0
    %v2408 = vadd.f32 %v2219, %v2405
    %v2410 = vrot.slane %v2326, 4
    %2411 = vrot.lane.b32.xlu0 %v2410, 64
    %v2412 = vpop.permute.xlu0 %2411
    %v2413 = vsel %vm133, %v2412, 0
    %2415 = vmatprep.subr.mxu0 0.0
    %2416 = vmatpush1.msra.mxu0 %v1015
    %2417 = vmatprep.subr.mxu0 0.0
    %2418 = vmatpush1.msra.mxu0 %v1016
    %2419 = vmatprep.subr.mxu0 0.0
    %2420 = vmatpush1.msra.mxu0 %v1017
    %2421 = vmatprep.subr.mxu0 0.0
    %2422 = vmatpush1.msra.mxu0 %v1018
    %2423 = vmatprep.subr.mxu0 0.0
    %2424 = vmatpush1.msra.mxu0 0.0
    %2425 = vmatprep.subr.mxu0 0.0
    %2426 = vmatpush1.msra.mxu0 0.0
    %2427 = vmatprep.subr.mxu0 0.0
    %2428 = vmatpush1.msra.mxu0 0.0
    %2429 = vmatprep.subr.mxu0 0.0
    %2430 = vmatpush1.msra.mxu0 0.0
    %2431 = vmatprep.subr.mxu0 0.0
    %2432 = vmatpush1.msra.mxu0 0.0
    %2433 = vmatprep.subr.mxu0 0.0
    %2434 = vmatpush1.msra.mxu0 0.0
    %2435 = vmatprep.subr.mxu0 0.0
    %2436 = vmatpush1.msra.mxu0 0.0
    %2437 = vmatprep.subr.mxu0 0.0
    %2438 = vmatpush1.msra.mxu0 0.0
    %2439 = vmatprep.subr.mxu0 0.0
    %2440 = vmatpush1.msra.mxu0 0.0
    %2441 = vmatprep.subr.mxu0 0.0
    %2442 = vmatpush1.msra.mxu0 0.0
    %2443 = vmatprep.subr.mxu0 0.0
    %2444 = vmatpush1.msra.mxu0 0.0
    %2445 = vmatprep.subr.mxu0 0.0
    %2446 = vmatpush1.msra.mxu0 0.0
    %2447 = vmatprep.subr.mxu0 0.0
    %2448 = vmatpush1.msra.mxu0 0.0
    %2449 = vmatprep.subr.mxu0 0.0
    %2450 = vmatpush1.msra.mxu0 0.0
    %2451 = vmatprep.subr.mxu0 0.0
    %2452 = vmatpush1.msra.mxu0 0.0
    %2453 = vmatprep.subr.mxu0 0.0
    %2454 = vmatpush1.msra.mxu0 0.0
    %2455 = vmatprep.subr.mxu0 0.0
    %2456 = vmatpush1.msra.mxu0 0.0
    %2457 = vmatprep.subr.mxu0 0.0
    %2458 = vmatpush1.msra.mxu0 0.0
    %2459 = vmatprep.subr.mxu0 0.0
    %2460 = vmatpush1.msra.mxu0 0.0
    %2461 = vmatprep.subr.mxu0 0.0
    %2462 = vmatpush1.msra.mxu0 0.0
    %2463 = vmatprep.subr.mxu0 0.0
    %2464 = vmatpush1.msra.mxu0 0.0
    %2465 = vmatprep.subr.mxu0 0.0
    %2466 = vmatpush1.msra.mxu0 0.0
    %2467 = vmatprep.subr.mxu0 0.0
    %2468 = vmatpush1.msra.mxu0 0.0
    %2469 = vmatprep.subr.mxu0 0.0
    %2470 = vmatpush1.msra.mxu0 0.0
    %2471 = vmatprep.subr.mxu0 0.0
    %2472 = vmatpush1.msra.mxu0 0.0
    %2473 = vmatprep.subr.mxu0 0.0
    %2474 = vmatpush1.msra.mxu0 0.0
    %2475 = vmatprep.subr.mxu0 0.0
    %2476 = vmatpush1.msra.mxu0 0.0
    %2477 = vmatprep.subr.mxu0 0.0
    %2478 = vmatpush1.msra.mxu0 0.0
    %2479 = vmatprep.mubr.f32.mxu0 0.0
    %2480 = vmatmul.mubr.f32.gmra.mrb[0].mxu0 %v2413
    %v2481 = vpop.f32.mrb[0].mxu0
    %v2482 = vadd.f32 0.0, %v2481
    %v2483 = vpop.f32.mrb[0].mxu0
    %2484 = vdwg.mxu0
    %v2486 = vrot.slane %v2482, 2
    %v2488 = vadd.f32 %v1104, %v2486
    %v2489 = vxor.u32 %v2488, 2147483648
    %v2490 = vmul.f32 %v2489, 1.442695
    %v2491 = vpow.pop %v2490
    %v2492 = vadd.f32 %v2491, 1.0
    %v2493 = vrcp.pop %v2492
    %v2494 = vmul.f32 1.0, %v2493
    %v2495 = vtanh.pop %v2488
    %v2497 = vrot.slane %v2320, 6
    %v2499 = vmul.f32 %v2494, %v2497
    %2501 = vrot.lane.b32.xlu0 %v2495, 32
    %v2502 = vpop.permute.xlu0 %2501
    %v2504 = vmul.f32 %v2494, %v2502
    %2506 = vrot.lane.b32.xlu0 %v2504, 32
    %v2507 = vpop.permute.xlu0 %2506
    %v2509 = vadd.f32 %v2499, %v2507
    %v2510 = vtanh.pop %v2509
    %2512 = vrot.lane.b32.xlu0 %v2510, 32
    %v2513 = vpop.permute.xlu0 %2512
    %v2515 = vmul.f32 %v2494, %v2513
    %v2516 = vtanh.pop %v2515
    %v2517 = vld [vmem:[%s7 + $0xe0] sm:$0xff]
    %v2518 = vld [vmem:[%s7 + $0xe8] sm:$0xff]
    %v2519 = vld [vmem:[%s7 + $0xf0] sm:$0xff]
    %v2520 = vld [vmem:[%s7 + $0xf8] sm:$0xff]
    %v2522 = vrot.slane %v2516, 6
    %2523 = vrot.lane.b32.xlu0 %v2522, 64
    %v2524 = vpop.permute.xlu0 %2523
    %v2525 = vsel %vm133, %v2524, 0
    %2527 = vmatprep.subr.mxu0 0.0
    %2528 = vmatpush1.msra.mxu0 %v2517
    %2529 = vmatprep.subr.mxu0 0.0
    %2530 = vmatpush1.msra.mxu0 %v2518
    %2531 = vmatprep.subr.mxu0 0.0
    %2532 = vmatpush1.msra.mxu0 %v2519
    %2533 = vmatprep.subr.mxu0 0.0
    %2534 = vmatpush1.msra.mxu0 %v2520
    %2535 = vmatprep.subr.mxu0 0.0
    %2536 = vmatpush1.msra.mxu0 0.0
    %2537 = vmatprep.subr.mxu0 0.0
    %2538 = vmatpush1.msra.mxu0 0.0
    %2539 = vmatprep.subr.mxu0 0.0
    %2540 = vmatpush1.msra.mxu0 0.0
    %2541 = vmatprep.subr.mxu0 0.0
    %2542 = vmatpush1.msra.mxu0 0.0
    %2543 = vmatprep.subr.mxu0 0.0
    %2544 = vmatpush1.msra.mxu0 0.0
    %2545 = vmatprep.subr.mxu0 0.0
    %2546 = vmatpush1.msra.mxu0 0.0
    %2547 = vmatprep.subr.mxu0 0.0
    %2548 = vmatpush1.msra.mxu0 0.0
    %2549 = vmatprep.subr.mxu0 0.0
    %2550 = vmatpush1.msra.mxu0 0.0
    %2551 = vmatprep.subr.mxu0 0.0
    %2552 = vmatpush1.msra.mxu0 0.0
    %2553 = vmatprep.subr.mxu0 0.0
    %2554 = vmatpush1.msra.mxu0 0.0
    %2555 = vmatprep.subr.mxu0 0.0
    %2556 = vmatpush1.msra.mxu0 0.0
    %2557 = vmatprep.subr.mxu0 0.0
    %2558 = vmatpush1.msra.mxu0 0.0
    %2559 = vmatprep.subr.mxu0 0.0
    %2560 = vmatpush1.msra.mxu0 0.0
    %2561 = vmatprep.subr.mxu0 0.0
    %2562 = vmatpush1.msra.mxu0 0.0
    %2563 = vmatprep.subr.mxu0 0.0
    %2564 = vmatpush1.msra.mxu0 0.0
    %2565 = vmatprep.subr.mxu0 0.0
    %2566 = vmatpush1.msra.mxu0 0.0
    %2567 = vmatprep.subr.mxu0 0.0
    %2568 = vmatpush1.msra.mxu0 0.0
    %2569 = vmatprep.subr.mxu0 0.0
    %2570 = vmatpush1.msra.mxu0 0.0
    %2571 = vmatprep.subr.mxu0 0.0
    %2572 = vmatpush1.msra.mxu0 0.0
    %2573 = vmatprep.subr.mxu0 0.0
    %2574 = vmatpush1.msra.mxu0 0.0
    %2575 = vmatprep.subr.mxu0 0.0
    %2576 = vmatpush1.msra.mxu0 0.0
    %2577 = vmatprep.subr.mxu0 0.0
    %2578 = vmatpush1.msra.mxu0 0.0
    %2579 = vmatprep.subr.mxu0 0.0
    %2580 = vmatpush1.msra.mxu0 0.0
    %2581 = vmatprep.subr.mxu0 0.0
    %2582 = vmatpush1.msra.mxu0 0.0
    %2583 = vmatprep.subr.mxu0 0.0
    %2584 = vmatpush1.msra.mxu0 0.0
    %2585 = vmatprep.subr.mxu0 0.0
    %2586 = vmatpush1.msra.mxu0 0.0
    %2587 = vmatprep.subr.mxu0 0.0
    %2588 = vmatpush1.msra.mxu0 0.0
    %2589 = vmatprep.subr.mxu0 0.0
    %2590 = vmatpush1.msra.mxu0 0.0
    %2591 = vmatprep.mubr.f32.mxu0 0.0
    %2592 = vmatmul.mubr.f32.gmra.mrb[0].mxu0 %v2525
    %v2593 = vpop.f32.mrb[0].mxu0
    %v2594 = vadd.f32 0.0, %v2593
    %v2595 = vpop.f32.mrb[0].mxu0
    %2596 = vdwg.mxu0
    %v2597 = vadd.f32 %v2408, %v2594
    %v2598 = vld [vmem:[%s8] sm:$0x1]
    %v2600 = vlaneseq
    %v2601 = vshrl.u32 %v2600, 7
    %v2602 = vsub.s32 0, %v2601
    %v2603 = vrot.slane %v2598, %v2602
    %v2605 = vadd.f32 %v2597, %v2603
    %vm2606 = vcmask 25600
    %2607 = vst.msk [vmem:[#allocation3] sm:$0x3] %vm2606, %v2605
    // Predicated region
    $region38: #{tpu_custom_call.1} parent=1 // pred_check
      _
    $region39: #{tpu_custom_call.1} parent=1 // pred_check_branch
      %2609 = sbr.rel (0) target = $region41
    $region40: #{tpu_custom_call.1} parent=1 // pred_region
      %s2611 = ssub.s32 32, 32
      %2612 = vsyncadd [#allocation4], %s2611
      %s2614 = sshll.u32 [#allocation3], 4
      %s2615 = int_to_ptr.vmem [resolvable:$true] %s2614
      %2617 = dma.vmem_to_hbm [thread:$0]  %s2615, 32, %s9, [#allocation4]
    $region41: #{tpu_custom_call.1} parent=1 // pred_fallthru
      _
    // Predicated region
    $region42: #{tpu_custom_call.1} parent=1 // pred_check
      _
    $region43: #{tpu_custom_call.1} parent=1 // pred_check_branch
      %2619 = sbr.rel (0) target = $region45
    $region44: #{tpu_custom_call.1} parent=1 // pred_region
      %2620 = dma.done [#allocation4], 32
    $region45: #{tpu_custom_call.1} parent=1 // pred_fallthru
      _
    %2621 = vsyncpa [#allocation4], 1

</llo_original>
